<compile_context>
chip_gen: v7x
topology: tpu7x:2x2x1
jax: 0.10.0
libtpu: 0.0.40
codegen_flags: <defaults>
</compile_context>

<pallas_src>
import math
import functools

import jax
import jax.numpy as jnp
from jax import lax
from jax.experimental import pallas as pl
from jax.experimental.pallas import tpu as pltpu


def _attention_kernel(xq_ref, xk_ref, xv_ref,
                      wq_ref, bq_ref, wk_ref, bk_ref, wv_ref, bv_ref,
                      wo_ref, bo_ref,
                      o_ref, pv_ref, *, d_k, d_v, h):
    # One batch element per grid step; the leading batch dim is Squeezed away.
    # Fused all-head projections: (n, d_model) @ (d_model, h*d_k | h*d_v).
    # 1/sqrt(d_k) is already folded into wq/bq on the host.
    q = (jnp.dot(xq_ref[...], wq_ref[...], preferred_element_type=jnp.float32)
         + bq_ref[...]).astype(jnp.bfloat16)                     # (nq, h*d_k)
    k = (jnp.dot(xk_ref[...], wk_ref[...], preferred_element_type=jnp.float32)
         + bk_ref[...]).astype(jnp.bfloat16)                     # (nk, h*d_k)
    v = (jnp.dot(xv_ref[...], wv_ref[...], preferred_element_type=jnp.float32)
         + bv_ref[...]).astype(jnp.bfloat16)                     # (nk, h*d_v)

    # Small static h -> unrolled at trace time.  (For large h switch to
    # lax.fori_loop or put heads on a grid axis to bound vreg live ranges.)
    for hi in range(h):
        qh = q[:, hi * d_k:(hi + 1) * d_k]                        # (nq, d_k)
        kh = k[:, hi * d_k:(hi + 1) * d_k]                        # (nk, d_k)
        vh = v[:, hi * d_v:(hi + 1) * d_v]                        # (nk, d_v)

        # Scores: contract last dims of q and k directly (no kh.T / XLU pass).
        s = lax.dot_general(qh, kh, dimension_numbers=(((1,), (1,)), ((), ())),
                            preferred_element_type=jnp.float32)   # (nq, nk) f32

        m = jnp.max(s, axis=-1, keepdims=True)
        p = jnp.exp(s - m)                                        # unnormalized
        denom = jnp.sum(p, axis=-1, keepdims=True)                # (nq, 1)

        pv = jnp.dot(p.astype(jnp.bfloat16), vh,
                     preferred_element_type=jnp.float32)          # (nq, d_v)
        # Normalize AFTER the PV matmul (d_v lanes instead of nk), EUP recip.
        pv = pv * pl.reciprocal(denom, approx=True)

        # Static lane-offset write into the (nq, h*d_v) scratch.
        pv_ref[:, hi * d_v:(hi + 1) * d_v] = pv.astype(jnp.bfloat16)

    # Single wide output projection: K = h*d_v, N = d_model.
    out = jnp.dot(pv_ref[...], wo_ref[...],
                  preferred_element_type=jnp.float32) + bo_ref[...]
    o_ref[...] = out.astype(o_ref.dtype)


def _vmem_limit_bytes():
    # v7x has only 64 MiB physical VMEM per TensorCore -> leave headroom;
    # v5e/v6e (128 MiB physical) comfortably scope 64 MiB.
    try:
        cap = pltpu.get_tpu_info().vmem_capacity_bytes
    except Exception:  # unknown device / API mismatch: be conservative
        cap = 64 * 1024 * 1024
    return int(min(64 * 1024 * 1024, (cap * 3) // 4))


def scaled_dot_product_attention(queries, keys, values, params, *, d_k, d_v, h):
    b_s, nq, d_model = queries.shape
    nk = keys.shape[1]
    out_dtype = queries.dtype
    wq, bq, wk, bk, wv, bv, wo, bo = params
    scale = 1.0 / math.sqrt(d_k)

    # Host-side layout / dtype plumbing (outside the kernel): fused-projection
    # weights in bf16, 1/sqrt(d_k) folded into the Q projection, biases f32.
    wq2 = (wq * scale).astype(jnp.bfloat16)          # (d_model, h*d_k)
    bq2 = (bq * scale).reshape(1, h * d_k).astype(jnp.float32)
    wk2 = wk.astype(jnp.bfloat16)                    # (d_model, h*d_k)
    bk2 = bk.reshape(1, h * d_k).astype(jnp.float32)
    wv2 = wv.astype(jnp.bfloat16)                    # (d_model, h*d_v)
    bv2 = bv.reshape(1, h * d_v).astype(jnp.float32)
    wo2 = wo.astype(jnp.bfloat16)                    # (h*d_v, d_model)
    bo2 = bo.reshape(1, d_model).astype(jnp.float32)

    # bf16 activation DMA: half the HBM->VMEM bytes, no in-kernel casts.
    xq = queries.astype(jnp.bfloat16)
    xk = keys.astype(jnp.bfloat16)
    xv = values.astype(jnp.bfloat16)

    operands = (xq, xk, xv, wq2, bq2, wk2, bk2, wv2, bv2, wo2, bo2)
    kernel = functools.partial(_attention_kernel, d_k=d_k, d_v=d_v, h=h)

    def build(weight_buffer_count):
        def const_spec(shape):
            kwargs = {}
            if weight_buffer_count is not None:
                # Constant index_map -> no need to double-buffer these blocks.
                kwargs["pipeline_mode"] = pl.Buffered(weight_buffer_count)
            return pl.BlockSpec(shape, lambda b: (0, 0), **kwargs)

        def act_spec(n):
            return pl.BlockSpec((pl.Squeezed(), n, d_model), lambda b: (b, 0, 0))

        return pl.pallas_call(
            kernel,
            out_shape=jax.ShapeDtypeStruct((b_s, nq, d_model), out_dtype),
            grid_spec=pltpu.PrefetchScalarGridSpec(
                num_scalar_prefetch=0,
                grid=(b_s,),
                in_specs=[
                    act_spec(nq), act_spec(nk), act_spec(nk),
                    const_spec(wq2.shape), const_spec(bq2.shape),
                    const_spec(wk2.shape), const_spec(bk2.shape),
                    const_spec(wv2.shape), const_spec(bv2.shape),
                    const_spec(wo2.shape), const_spec(bo2.shape),
                ],
                out_specs=pl.BlockSpec((pl.Squeezed(), nq, d_model),
                                       lambda b: (b, 0, 0)),
                scratch_shapes=[pltpu.VMEM((nq, h * d_v), jnp.bfloat16)],
            ),
            compiler_params=pltpu.CompilerParams(
                dimension_semantics=("parallel",),
                vmem_limit_bytes=_vmem_limit_bytes(),
            ),
        )

    try:
        out = build(weight_buffer_count=1)(*operands)
        return jax.block_until_ready(out)
    except Exception:
        # Fallback if this jax build rejects pl.Buffered(1) on pallas_call
        # BlockSpecs: same kernel, default (double) weight buffering.
        return build(weight_buffer_count=None)(*operands)


def _xavier_normal(key, out_features, in_features, gain=1.0):
    # Matches nn.init.xavier_normal_ on an (out, in) weight; returned
    # transposed so the projection is x @ W.
    std = gain * math.sqrt(2.0 / (in_features + out_features))
    w = std * jax.random.normal(key, (out_features, in_features), dtype=jnp.float32)
    return w.T  # (in, out)


def init_params(key, d_model, d_k, d_v, h):
    k1, k2, k3, k4 = jax.random.split(key, 4)
    wq = _xavier_normal(k1, h * d_k, d_model)
    wk = _xavier_normal(k2, h * d_k, d_model)
    wv = _xavier_normal(k3, h * d_v, d_model)
    wo = _xavier_normal(k4, d_model, h * d_v)
    bq = jnp.zeros((1, h * d_k), jnp.float32)
    bk = jnp.zeros((1, h * d_k), jnp.float32)
    bv = jnp.zeros((1, h * d_v), jnp.float32)
    bo = jnp.zeros((1, d_model), jnp.float32)
    return (wq, bq, wk, bk, wv, bv, wo, bo)


def reference_attention(queries, keys, values, params, *, d_k, d_v, h):
    # Pure-JAX f32 reference mirroring the PyTorch forward, for verification.
    wq, bq, wk, bk, wv, bv, wo, bo = params
    b_s, nq, d_model = queries.shape
    nk = keys.shape[1]
    q = (queries @ wq + bq).reshape(b_s, nq, h, d_k).transpose(0, 2, 1, 3)
    k = (keys @ wk + bk).reshape(b_s, nk, h, d_k).transpose(0, 2, 3, 1)
    v = (values @ wv + bv).reshape(b_s, nk, h, d_v).transpose(0, 2, 1, 3)
    att = jnp.einsum('bhqd,bhdk->bhqk', q, k) / math.sqrt(d_k)
    att = jax.nn.softmax(att, axis=-1)
    out = jnp.einsum('bhqk,bhkd->bhqd', att, v).transpose(0, 2, 1, 3)
    out = out.reshape(b_s, nq, h * d_v)
    return out @ wo + bo


if __name__ == "__main__":
    # Small but lane-dense shapes: d_model and h*d_k / h*d_v are multiples of
    # 128 so the output stores are unmasked and the fused projections fill the
    # MXU lane dimension.
    b_s, nq, nk = 2, 8, 8
    d_model, d_k, d_v, h = 128, 32, 32, 4

    key = jax.random.PRNGKey(0)
    kq, kk, kv, kp = jax.random.split(key, 4)
    queries = jax.random.normal(kq, (b_s, nq, d_model), dtype=jnp.float32)
    keys = jax.random.normal(kk, (b_s, nk, d_model), dtype=jnp.float32)
    values = jax.random.normal(kv, (b_s, nk, d_model), dtype=jnp.float32)
    params = init_params(kp, d_model, d_k, d_v, h)

    out = scaled_dot_product_attention(queries, keys, values, params,
                                       d_k=d_k, d_v=d_v, h=h)
    out = jax.block_until_ready(out)

    ref = reference_attention(queries, keys, values, params,
                              d_k=d_k, d_v=d_v, h=h)
    assert out.shape == (b_s, nq, d_model)
    # bf16 MXU operands (f32 accumulation) + approx reciprocal -> relaxed
    # tolerance vs the f32 reference.
    err = float(jnp.max(jnp.abs(out - ref)))
    assert jnp.allclose(out, ref, atol=1e-1, rtol=1e-1), f"max abs err = {err}"
    print("KERNEL_OK")
</pallas_src>

<mosaic_0001>
module attributes {stable_mosaic.version = 11 : i64} {
  func.func @_attention_kernel(%arg0: i32, %arg1: memref<1x8x128xbf16, #tpu.memory_space<vmem>>, %arg2: memref<1x8x128xbf16, #tpu.memory_space<vmem>>, %arg3: memref<1x8x128xbf16, #tpu.memory_space<vmem>>, %arg4: memref<128x128xbf16, #tpu.memory_space<vmem>>, %arg5: memref<1x128xf32, #tpu.memory_space<vmem>>, %arg6: memref<128x128xbf16, #tpu.memory_space<vmem>>, %arg7: memref<1x128xf32, #tpu.memory_space<vmem>>, %arg8: memref<128x128xbf16, #tpu.memory_space<vmem>>, %arg9: memref<1x128xf32, #tpu.memory_space<vmem>>, %arg10: memref<128x128xbf16, #tpu.memory_space<vmem>>, %arg11: memref<1x128xf32, #tpu.memory_space<vmem>>, %arg12: memref<1x8x128xf32, #tpu.memory_space<vmem>>, %arg13: memref<8x128xbf16, #tpu.memory_space<vmem>>) attributes {dimension_semantics = [#tpu.dimension_semantics<parallel>], iteration_bounds = array<i64: 2>, scalar_prefetch = 0 : i64, scratch_operands = 1 : i64, tpu.core_type = #tpu.core_type<tc>, window_params = [{transform_indices = @transform_0, window_bounds = array<i64: 1, 8, 128>}, {transform_indices = @transform_1, window_bounds = array<i64: 1, 8, 128>}, {transform_indices = @transform_2, window_bounds = array<i64: 1, 8, 128>}, {pipeline_mode = #tpu.pipeline_mode<synchronous>, transform_indices = @transform_3, window_bounds = array<i64: 128, 128>}, {pipeline_mode = #tpu.pipeline_mode<synchronous>, transform_indices = @transform_4, window_bounds = array<i64: 1, 128>}, {pipeline_mode = #tpu.pipeline_mode<synchronous>, transform_indices = @transform_5, window_bounds = array<i64: 128, 128>}, {pipeline_mode = #tpu.pipeline_mode<synchronous>, transform_indices = @transform_6, window_bounds = array<i64: 1, 128>}, {pipeline_mode = #tpu.pipeline_mode<synchronous>, transform_indices = @transform_7, window_bounds = array<i64: 128, 128>}, {pipeline_mode = #tpu.pipeline_mode<synchronous>, transform_indices = @transform_8, window_bounds = array<i64: 1, 128>}, {pipeline_mode = #tpu.pipeline_mode<synchronous>, transform_indices = @transform_9, window_bounds = array<i64: 128, 128>}, {pipeline_mode = #tpu.pipeline_mode<synchronous>, transform_indices = @transform_10, window_bounds = array<i64: 1, 128>}, {transform_indices = @transform_11, window_bounds = array<i64: 1, 8, 128>}]} {
    %c0 = arith.constant 0 : index
    %c0_0 = arith.constant 0 : index
    %c0_1 = arith.constant 0 : index
    %0 = vector.load %arg1[%c0, %c0_0, %c0_1] : memref<1x8x128xbf16, #tpu.memory_space<vmem>>, vector<1x8x128xbf16>
    %1 = vector.shape_cast %0 : vector<1x8x128xbf16> to vector<8x128xbf16>
    %c0_2 = arith.constant 0 : index
    %c0_3 = arith.constant 0 : index
    %2 = vector.load %arg4[%c0_2, %c0_3] : memref<128x128xbf16, #tpu.memory_space<vmem>>, vector<128x128xbf16>
    %cst = arith.constant dense<0.000000e+00> : vector<8x128xf32>
    %3 = tpu.matmul %1, %2, %cst {dimension_numbers = #tpu.dot_dimension_numbers<[1], [0], [0], [1], [0, 0, 1, 1], [], []>} : vector<8x128xbf16>, vector<128x128xbf16>, vector<8x128xf32> -> vector<8x128xf32>
    %c0_4 = arith.constant 0 : index
    %c0_5 = arith.constant 0 : index
    %4 = vector.load %arg5[%c0_4, %c0_5] : memref<1x128xf32, #tpu.memory_space<vmem>>, vector<1x128xf32>
    %5 = vector.broadcast %4 : vector<1x128xf32> to vector<8x128xf32>
    %6 = arith.addf %3, %5 : vector<8x128xf32>
    %7 = arith.truncf %6 : vector<8x128xf32> to vector<8x128xbf16>
    %c0_6 = arith.constant 0 : index
    %c0_7 = arith.constant 0 : index
    %c0_8 = arith.constant 0 : index
    %8 = vector.load %arg2[%c0_6, %c0_7, %c0_8] : memref<1x8x128xbf16, #tpu.memory_space<vmem>>, vector<1x8x128xbf16>
    %9 = vector.shape_cast %8 : vector<1x8x128xbf16> to vector<8x128xbf16>
    %c0_9 = arith.constant 0 : index
    %c0_10 = arith.constant 0 : index
    %10 = vector.load %arg6[%c0_9, %c0_10] : memref<128x128xbf16, #tpu.memory_space<vmem>>, vector<128x128xbf16>
    %cst_11 = arith.constant dense<0.000000e+00> : vector<8x128xf32>
    %11 = tpu.matmul %9, %10, %cst_11 {dimension_numbers = #tpu.dot_dimension_numbers<[1], [0], [0], [1], [0, 0, 1, 1], [], []>} : vector<8x128xbf16>, vector<128x128xbf16>, vector<8x128xf32> -> vector<8x128xf32>
    %c0_12 = arith.constant 0 : index
    %c0_13 = arith.constant 0 : index
    %12 = vector.load %arg7[%c0_12, %c0_13] : memref<1x128xf32, #tpu.memory_space<vmem>>, vector<1x128xf32>
    %13 = vector.broadcast %12 : vector<1x128xf32> to vector<8x128xf32>
    %14 = arith.addf %11, %13 : vector<8x128xf32>
    %15 = arith.truncf %14 : vector<8x128xf32> to vector<8x128xbf16>
    %c0_14 = arith.constant 0 : index
    %c0_15 = arith.constant 0 : index
    %c0_16 = arith.constant 0 : index
    %16 = vector.load %arg3[%c0_14, %c0_15, %c0_16] : memref<1x8x128xbf16, #tpu.memory_space<vmem>>, vector<1x8x128xbf16>
    %17 = vector.shape_cast %16 : vector<1x8x128xbf16> to vector<8x128xbf16>
    %c0_17 = arith.constant 0 : index
    %c0_18 = arith.constant 0 : index
    %18 = vector.load %arg8[%c0_17, %c0_18] : memref<128x128xbf16, #tpu.memory_space<vmem>>, vector<128x128xbf16>
    %cst_19 = arith.constant dense<0.000000e+00> : vector<8x128xf32>
    %19 = tpu.matmul %17, %18, %cst_19 {dimension_numbers = #tpu.dot_dimension_numbers<[1], [0], [0], [1], [0, 0, 1, 1], [], []>} : vector<8x128xbf16>, vector<128x128xbf16>, vector<8x128xf32> -> vector<8x128xf32>
    %c0_20 = arith.constant 0 : index
    %c0_21 = arith.constant 0 : index
    %20 = vector.load %arg9[%c0_20, %c0_21] : memref<1x128xf32, #tpu.memory_space<vmem>>, vector<1x128xf32>
    %21 = vector.broadcast %20 : vector<1x128xf32> to vector<8x128xf32>
    %22 = arith.addf %19, %21 : vector<8x128xf32>
    %23 = arith.truncf %22 : vector<8x128xf32> to vector<8x128xbf16>
    %24 = vector.extract_strided_slice %7 {offsets = [0, 0], sizes = [8, 32], strides = [1, 1]} : vector<8x128xbf16> to vector<8x32xbf16>
    %25 = vector.extract_strided_slice %15 {offsets = [0, 0], sizes = [8, 32], strides = [1, 1]} : vector<8x128xbf16> to vector<8x32xbf16>
    %26 = vector.extract_strided_slice %23 {offsets = [0, 0], sizes = [8, 32], strides = [1, 1]} : vector<8x128xbf16> to vector<8x32xbf16>
    %cst_22 = arith.constant dense<0.000000e+00> : vector<8x8xf32>
    %27 = tpu.matmul %24, %25, %cst_22 {dimension_numbers = #tpu.dot_dimension_numbers<[1], [1], [0], [0], [0, 0, 1, 0], [], []>} : vector<8x32xbf16>, vector<8x32xbf16>, vector<8x8xf32> -> vector<8x8xf32>
    %cst_23 = arith.constant dense<0xFF800000> : vector<8xf32>
    %28 = vector.multi_reduction <maximumf>, %27, %cst_23 [1] : vector<8x8xf32> to vector<8xf32>
    %29 = vector.shape_cast %28 : vector<8xf32> to vector<8x1xf32>
    %30 = vector.broadcast %29 : vector<8x1xf32> to vector<8x8xf32>
    %31 = arith.subf %27, %30 : vector<8x8xf32>
    %32 = math.exp %31 : vector<8x8xf32>
    %cst_24 = arith.constant dense<0.000000e+00> : vector<8xf32>
    %33 = vector.multi_reduction <add>, %32, %cst_24 [1] : vector<8x8xf32> to vector<8xf32>
    %34 = vector.shape_cast %33 : vector<8xf32> to vector<8x1xf32>
    %35 = arith.truncf %32 : vector<8x8xf32> to vector<8x8xbf16>
    %cst_25 = arith.constant dense<0.000000e+00> : vector<8x32xf32>
    %36 = tpu.matmul %35, %26, %cst_25 {dimension_numbers = #tpu.dot_dimension_numbers<[1], [0], [0], [1], [0, 0, 1, 1], [], []>} : vector<8x8xbf16>, vector<8x32xbf16>, vector<8x32xf32> -> vector<8x32xf32>
    %37 = tpu.reciprocal %34 {approx = true} : vector<8x1xf32> -> vector<8x1xf32>
    %38 = vector.broadcast %37 : vector<8x1xf32> to vector<8x32xf32>
    %39 = arith.mulf %36, %38 : vector<8x32xf32>
    %40 = arith.truncf %39 : vector<8x32xf32> to vector<8x32xbf16>
    %c0_26 = arith.constant 0 : index
    %c0_27 = arith.constant 0 : index
    %41 = vector.load %arg13[%c0_26, %c0_27] : memref<8x128xbf16, #tpu.memory_space<vmem>>, vector<8x32xbf16>
    tpu.vector_store %arg13[%c0_26, %c0_27], %40 {strides = array<i32>} : memref<8x128xbf16, #tpu.memory_space<vmem>>, vector<8x32xbf16>,
    %42 = vector.extract_strided_slice %7 {offsets = [0, 32], sizes = [8, 32], strides = [1, 1]} : vector<8x128xbf16> to vector<8x32xbf16>
    %43 = vector.extract_strided_slice %15 {offsets = [0, 32], sizes = [8, 32], strides = [1, 1]} : vector<8x128xbf16> to vector<8x32xbf16>
    %44 = vector.extract_strided_slice %23 {offsets = [0, 32], sizes = [8, 32], strides = [1, 1]} : vector<8x128xbf16> to vector<8x32xbf16>
    %cst_28 = arith.constant dense<0.000000e+00> : vector<8x8xf32>
    %45 = tpu.matmul %42, %43, %cst_28 {dimension_numbers = #tpu.dot_dimension_numbers<[1], [1], [0], [0], [0, 0, 1, 0], [], []>} : vector<8x32xbf16>, vector<8x32xbf16>, vector<8x8xf32> -> vector<8x8xf32>
    %cst_29 = arith.constant dense<0xFF800000> : vector<8xf32>
    %46 = vector.multi_reduction <maximumf>, %45, %cst_29 [1] : vector<8x8xf32> to vector<8xf32>
    %47 = vector.shape_cast %46 : vector<8xf32> to vector<8x1xf32>
    %48 = vector.broadcast %47 : vector<8x1xf32> to vector<8x8xf32>
    %49 = arith.subf %45, %48 : vector<8x8xf32>
    %50 = math.exp %49 : vector<8x8xf32>
    %cst_30 = arith.constant dense<0.000000e+00> : vector<8xf32>
    %51 = vector.multi_reduction <add>, %50, %cst_30 [1] : vector<8x8xf32> to vector<8xf32>
    %52 = vector.shape_cast %51 : vector<8xf32> to vector<8x1xf32>
    %53 = arith.truncf %50 : vector<8x8xf32> to vector<8x8xbf16>
    %cst_31 = arith.constant dense<0.000000e+00> : vector<8x32xf32>
    %54 = tpu.matmul %53, %44, %cst_31 {dimension_numbers = #tpu.dot_dimension_numbers<[1], [0], [0], [1], [0, 0, 1, 1], [], []>} : vector<8x8xbf16>, vector<8x32xbf16>, vector<8x32xf32> -> vector<8x32xf32>
    %55 = tpu.reciprocal %52 {approx = true} : vector<8x1xf32> -> vector<8x1xf32>
    %56 = vector.broadcast %55 : vector<8x1xf32> to vector<8x32xf32>
    %57 = arith.mulf %54, %56 : vector<8x32xf32>
    %58 = arith.truncf %57 : vector<8x32xf32> to vector<8x32xbf16>
    %c0_32 = arith.constant 0 : index
    %c32 = arith.constant 32 : index
    %59 = vector.load %arg13[%c0_32, %c32] : memref<8x128xbf16, #tpu.memory_space<vmem>>, vector<8x32xbf16>
    tpu.vector_store %arg13[%c0_32, %c32], %58 {strides = array<i32>} : memref<8x128xbf16, #tpu.memory_space<vmem>>, vector<8x32xbf16>,
    %60 = vector.extract_strided_slice %7 {offsets = [0, 64], sizes = [8, 32], strides = [1, 1]} : vector<8x128xbf16> to vector<8x32xbf16>
    %61 = vector.extract_strided_slice %15 {offsets = [0, 64], sizes = [8, 32], strides = [1, 1]} : vector<8x128xbf16> to vector<8x32xbf16>
    %62 = vector.extract_strided_slice %23 {offsets = [0, 64], sizes = [8, 32], strides = [1, 1]} : vector<8x128xbf16> to vector<8x32xbf16>
    %cst_33 = arith.constant dense<0.000000e+00> : vector<8x8xf32>
    %63 = tpu.matmul %60, %61, %cst_33 {dimension_numbers = #tpu.dot_dimension_numbers<[1], [1], [0], [0], [0, 0, 1, 0], [], []>} : vector<8x32xbf16>, vector<8x32xbf16>, vector<8x8xf32> -> vector<8x8xf32>
    %cst_34 = arith.constant dense<0xFF800000> : vector<8xf32>
    %64 = vector.multi_reduction <maximumf>, %63, %cst_34 [1] : vector<8x8xf32> to vector<8xf32>
    %65 = vector.shape_cast %64 : vector<8xf32> to vector<8x1xf32>
    %66 = vector.broadcast %65 : vector<8x1xf32> to vector<8x8xf32>
    %67 = arith.subf %63, %66 : vector<8x8xf32>
    %68 = math.exp %67 : vector<8x8xf32>
    %cst_35 = arith.constant dense<0.000000e+00> : vector<8xf32>
    %69 = vector.multi_reduction <add>, %68, %cst_35 [1] : vector<8x8xf32> to vector<8xf32>
    %70 = vector.shape_cast %69 : vector<8xf32> to vector<8x1xf32>
    %71 = arith.truncf %68 : vector<8x8xf32> to vector<8x8xbf16>
    %cst_36 = arith.constant dense<0.000000e+00> : vector<8x32xf32>
    %72 = tpu.matmul %71, %62, %cst_36 {dimension_numbers = #tpu.dot_dimension_numbers<[1], [0], [0], [1], [0, 0, 1, 1], [], []>} : vector<8x8xbf16>, vector<8x32xbf16>, vector<8x32xf32> -> vector<8x32xf32>
    %73 = tpu.reciprocal %70 {approx = true} : vector<8x1xf32> -> vector<8x1xf32>
    %74 = vector.broadcast %73 : vector<8x1xf32> to vector<8x32xf32>
    %75 = arith.mulf %72, %74 : vector<8x32xf32>
    %76 = arith.truncf %75 : vector<8x32xf32> to vector<8x32xbf16>
    %c0_37 = arith.constant 0 : index
    %c64 = arith.constant 64 : index
    %77 = vector.load %arg13[%c0_37, %c64] : memref<8x128xbf16, #tpu.memory_space<vmem>>, vector<8x32xbf16>
    tpu.vector_store %arg13[%c0_37, %c64], %76 {strides = array<i32>} : memref<8x128xbf16, #tpu.memory_space<vmem>>, vector<8x32xbf16>,
    %78 = vector.extract_strided_slice %7 {offsets = [0, 96], sizes = [8, 32], strides = [1, 1]} : vector<8x128xbf16> to vector<8x32xbf16>
    %79 = vector.extract_strided_slice %15 {offsets = [0, 96], sizes = [8, 32], strides = [1, 1]} : vector<8x128xbf16> to vector<8x32xbf16>
    %80 = vector.extract_strided_slice %23 {offsets = [0, 96], sizes = [8, 32], strides = [1, 1]} : vector<8x128xbf16> to vector<8x32xbf16>
    %cst_38 = arith.constant dense<0.000000e+00> : vector<8x8xf32>
    %81 = tpu.matmul %78, %79, %cst_38 {dimension_numbers = #tpu.dot_dimension_numbers<[1], [1], [0], [0], [0, 0, 1, 0], [], []>} : vector<8x32xbf16>, vector<8x32xbf16>, vector<8x8xf32> -> vector<8x8xf32>
    %cst_39 = arith.constant dense<0xFF800000> : vector<8xf32>
    %82 = vector.multi_reduction <maximumf>, %81, %cst_39 [1] : vector<8x8xf32> to vector<8xf32>
    %83 = vector.shape_cast %82 : vector<8xf32> to vector<8x1xf32>
    %84 = vector.broadcast %83 : vector<8x1xf32> to vector<8x8xf32>
    %85 = arith.subf %81, %84 : vector<8x8xf32>
    %86 = math.exp %85 : vector<8x8xf32>
    %cst_40 = arith.constant dense<0.000000e+00> : vector<8xf32>
    %87 = vector.multi_reduction <add>, %86, %cst_40 [1] : vector<8x8xf32> to vector<8xf32>
    %88 = vector.shape_cast %87 : vector<8xf32> to vector<8x1xf32>
    %89 = arith.truncf %86 : vector<8x8xf32> to vector<8x8xbf16>
    %cst_41 = arith.constant dense<0.000000e+00> : vector<8x32xf32>
    %90 = tpu.matmul %89, %80, %cst_41 {dimension_numbers = #tpu.dot_dimension_numbers<[1], [0], [0], [1], [0, 0, 1, 1], [], []>} : vector<8x8xbf16>, vector<8x32xbf16>, vector<8x32xf32> -> vector<8x32xf32>
    %91 = tpu.reciprocal %88 {approx = true} : vector<8x1xf32> -> vector<8x1xf32>
    %92 = vector.broadcast %91 : vector<8x1xf32> to vector<8x32xf32>
    %93 = arith.mulf %90, %92 : vector<8x32xf32>
    %94 = arith.truncf %93 : vector<8x32xf32> to vector<8x32xbf16>
    %c0_42 = arith.constant 0 : index
    %c96 = arith.constant 96 : index
    %95 = vector.load %arg13[%c0_42, %c96] : memref<8x128xbf16, #tpu.memory_space<vmem>>, vector<8x32xbf16>
    tpu.vector_store %arg13[%c0_42, %c96], %94 {strides = array<i32>} : memref<8x128xbf16, #tpu.memory_space<vmem>>, vector<8x32xbf16>,
    %c0_43 = arith.constant 0 : index
    %c0_44 = arith.constant 0 : index
    %96 = vector.load %arg13[%c0_43, %c0_44] : memref<8x128xbf16, #tpu.memory_space<vmem>>, vector<8x128xbf16>
    %c0_45 = arith.constant 0 : index
    %c0_46 = arith.constant 0 : index
    %97 = vector.load %arg10[%c0_45, %c0_46] : memref<128x128xbf16, #tpu.memory_space<vmem>>, vector<128x128xbf16>
    %cst_47 = arith.constant dense<0.000000e+00> : vector<8x128xf32>
    %98 = tpu.matmul %96, %97, %cst_47 {dimension_numbers = #tpu.dot_dimension_numbers<[1], [0], [0], [1], [0, 0, 1, 1], [], []>} : vector<8x128xbf16>, vector<128x128xbf16>, vector<8x128xf32> -> vector<8x128xf32>
    %c0_48 = arith.constant 0 : index
    %c0_49 = arith.constant 0 : index
    %99 = vector.load %arg11[%c0_48, %c0_49] : memref<1x128xf32, #tpu.memory_space<vmem>>, vector<1x128xf32>
    %100 = vector.broadcast %99 : vector<1x128xf32> to vector<8x128xf32>
    %101 = arith.addf %98, %100 : vector<8x128xf32>
    %c0_50 = arith.constant 0 : index
    %c0_51 = arith.constant 0 : index
    %c0_52 = arith.constant 0 : index
    %102 = vector.load %arg12[%c0_50, %c0_51, %c0_52] : memref<1x8x128xf32, #tpu.memory_space<vmem>>, vector<1x8x128xf32>
    %103 = vector.shape_cast %102 : vector<1x8x128xf32> to vector<8x128xf32>
    %104 = vector.shape_cast %101 : vector<8x128xf32> to vector<1x8x128xf32>
    tpu.vector_store %arg12[%c0_50, %c0_51, %c0_52], %104 {strides = array<i32>} : memref<1x8x128xf32, #tpu.memory_space<vmem>>, vector<1x8x128xf32>,
    return
  }
  func.func @transform_0(%arg0: i32) -> (i32, i32, i32) {
    %c0_i32 = arith.constant 0 : i32
    %c0_i32_0 = arith.constant 0 : i32
    %c0_i32_1 = arith.constant 0 : i32
    return %arg0, %c0_i32, %c0_i32_0 : i32, i32, i32
  }
  func.func @transform_1(%arg0: i32) -> (i32, i32, i32) {
    %c0_i32 = arith.constant 0 : i32
    %c0_i32_0 = arith.constant 0 : i32
    %c0_i32_1 = arith.constant 0 : i32
    return %arg0, %c0_i32, %c0_i32_0 : i32, i32, i32
  }
  func.func @transform_2(%arg0: i32) -> (i32, i32, i32) {
    %c0_i32 = arith.constant 0 : i32
    %c0_i32_0 = arith.constant 0 : i32
    %c0_i32_1 = arith.constant 0 : i32
    return %arg0, %c0_i32, %c0_i32_0 : i32, i32, i32
  }
  func.func @transform_3(%arg0: i32) -> (i32, i32) {
    %c0_i32 = arith.constant 0 : i32
    %c0_i32_0 = arith.constant 0 : i32
    %c0_i32_1 = arith.constant 0 : i32
    return %c0_i32, %c0_i32_0 : i32, i32
  }
  func.func @transform_4(%arg0: i32) -> (i32, i32) {
    %c0_i32 = arith.constant 0 : i32
    %c0_i32_0 = arith.constant 0 : i32
    %c0_i32_1 = arith.constant 0 : i32
    return %c0_i32, %c0_i32_0 : i32, i32
  }
  func.func @transform_5(%arg0: i32) -> (i32, i32) {
    %c0_i32 = arith.constant 0 : i32
    %c0_i32_0 = arith.constant 0 : i32
    %c0_i32_1 = arith.constant 0 : i32
    return %c0_i32, %c0_i32_0 : i32, i32
  }
  func.func @transform_6(%arg0: i32) -> (i32, i32) {
    %c0_i32 = arith.constant 0 : i32
    %c0_i32_0 = arith.constant 0 : i32
    %c0_i32_1 = arith.constant 0 : i32
    return %c0_i32, %c0_i32_0 : i32, i32
  }
  func.func @transform_7(%arg0: i32) -> (i32, i32) {
    %c0_i32 = arith.constant 0 : i32
    %c0_i32_0 = arith.constant 0 : i32
    %c0_i32_1 = arith.constant 0 : i32
    return %c0_i32, %c0_i32_0 : i32, i32
  }
  func.func @transform_8(%arg0: i32) -> (i32, i32) {
    %c0_i32 = arith.constant 0 : i32
    %c0_i32_0 = arith.constant 0 : i32
    %c0_i32_1 = arith.constant 0 : i32
    return %c0_i32, %c0_i32_0 : i32, i32
  }
  func.func @transform_9(%arg0: i32) -> (i32, i32) {
    %c0_i32 = arith.constant 0 : i32
    %c0_i32_0 = arith.constant 0 : i32
    %c0_i32_1 = arith.constant 0 : i32
    return %c0_i32, %c0_i32_0 : i32, i32
  }
  func.func @transform_10(%arg0: i32) -> (i32, i32) {
    %c0_i32 = arith.constant 0 : i32
    %c0_i32_0 = arith.constant 0 : i32
    %c0_i32_1 = arith.constant 0 : i32
    return %c0_i32, %c0_i32_0 : i32, i32
  }
  func.func @transform_11(%arg0: i32) -> (i32, i32, i32) {
    %c0_i32 = arith.constant 0 : i32
    %c0_i32_0 = arith.constant 0 : i32
    %c0_i32_1 = arith.constant 0 : i32
    return %arg0, %c0_i32, %c0_i32_0 : i32, i32, i32
  }
}

module attributes {stable_mosaic.version = 11 : i64} {
  func.func @_attention_kernel(%arg0: i32, %arg1: memref<1x8x128xbf16, #tpu.memory_space<vmem>>, %arg2: memref<1x8x128xbf16, #tpu.memory_space<vmem>>, %arg3: memref<1x8x128xbf16, #tpu.memory_space<vmem>>, %arg4: memref<128x128xbf16, #tpu.memory_space<vmem>>, %arg5: memref<1x128xf32, #tpu.memory_space<vmem>>, %arg6: memref<128x128xbf16, #tpu.memory_space<vmem>>, %arg7: memref<1x128xf32, #tpu.memory_space<vmem>>, %arg8: memref<128x128xbf16, #tpu.memory_space<vmem>>, %arg9: memref<1x128xf32, #tpu.memory_space<vmem>>, %arg10: memref<128x128xbf16, #tpu.memory_space<vmem>>, %arg11: memref<1x128xf32, #tpu.memory_space<vmem>>, %arg12: memref<1x8x128xf32, #tpu.memory_space<vmem>>, %arg13: memref<8x128xbf16, #tpu.memory_space<vmem>>) attributes {dimension_semantics = [#tpu.dimension_semantics<parallel>], iteration_bounds = array<i64: 2>, scalar_prefetch = 0 : i64, scratch_operands = 1 : i64, tpu.core_type = #tpu.core_type<tc>, window_params = [{transform_indices = @transform_0, window_bounds = array<i64: 1, 8, 128>}, {transform_indices = @transform_1, window_bounds = array<i64: 1, 8, 128>}, {transform_indices = @transform_2, window_bounds = array<i64: 1, 8, 128>}, {pipeline_mode = #tpu.pipeline_mode<synchronous>, transform_indices = @transform_3, window_bounds = array<i64: 128, 128>}, {pipeline_mode = #tpu.pipeline_mode<synchronous>, transform_indices = @transform_4, window_bounds = array<i64: 1, 128>}, {pipeline_mode = #tpu.pipeline_mode<synchronous>, transform_indices = @transform_5, window_bounds = array<i64: 128, 128>}, {pipeline_mode = #tpu.pipeline_mode<synchronous>, transform_indices = @transform_6, window_bounds = array<i64: 1, 128>}, {pipeline_mode = #tpu.pipeline_mode<synchronous>, transform_indices = @transform_7, window_bounds = array<i64: 128, 128>}, {pipeline_mode = #tpu.pipeline_mode<synchronous>, transform_indices = @transform_8, window_bounds = array<i64: 1, 128>}, {pipeline_mode = #tpu.pipeline_mode<synchronous>, transform_indices = @transform_9, window_bounds = array<i64: 128, 128>}, {pipeline_mode = #tpu.pipeline_mode<synchronous>, transform_indices = @transform_10, window_bounds = array<i64: 1, 128>}, {transform_indices = @transform_11, window_bounds = array<i64: 1, 8, 128>}]} {
    %c0 = arith.constant 0 : index
    %c0_0 = arith.constant 0 : index
    %c0_1 = arith.constant 0 : index
    %0 = vector.load %arg1[%c0, %c0_0, %c0_1] : memref<1x8x128xbf16, #tpu.memory_space<vmem>>, vector<1x8x128xbf16>
    %1 = vector.shape_cast %0 : vector<1x8x128xbf16> to vector<8x128xbf16>
    %c0_2 = arith.constant 0 : index
    %c0_3 = arith.constant 0 : index
    %2 = vector.load %arg4[%c0_2, %c0_3] : memref<128x128xbf16, #tpu.memory_space<vmem>>, vector<128x128xbf16>
    %cst = arith.constant dense<0.000000e+00> : vector<8x128xf32>
    %3 = tpu.matmul %1, %2, %cst {dimension_numbers = #tpu.dot_dimension_numbers<[1], [0], [0], [1], [0, 0, 1, 1], [], []>} : vector<8x128xbf16>, vector<128x128xbf16>, vector<8x128xf32> -> vector<8x128xf32>
    %c0_4 = arith.constant 0 : index
    %c0_5 = arith.constant 0 : index
    %4 = vector.load %arg5[%c0_4, %c0_5] : memref<1x128xf32, #tpu.memory_space<vmem>>, vector<1x128xf32>
    %5 = vector.broadcast %4 : vector<1x128xf32> to vector<8x128xf32>
    %6 = arith.addf %3, %5 : vector<8x128xf32>
    %7 = arith.truncf %6 : vector<8x128xf32> to vector<8x128xbf16>
    %c0_6 = arith.constant 0 : index
    %c0_7 = arith.constant 0 : index
    %c0_8 = arith.constant 0 : index
    %8 = vector.load %arg2[%c0_6, %c0_7, %c0_8] : memref<1x8x128xbf16, #tpu.memory_space<vmem>>, vector<1x8x128xbf16>
    %9 = vector.shape_cast %8 : vector<1x8x128xbf16> to vector<8x128xbf16>
    %c0_9 = arith.constant 0 : index
    %c0_10 = arith.constant 0 : index
    %10 = vector.load %arg6[%c0_9, %c0_10] : memref<128x128xbf16, #tpu.memory_space<vmem>>, vector<128x128xbf16>
    %cst_11 = arith.constant dense<0.000000e+00> : vector<8x128xf32>
    %11 = tpu.matmul %9, %10, %cst_11 {dimension_numbers = #tpu.dot_dimension_numbers<[1], [0], [0], [1], [0, 0, 1, 1], [], []>} : vector<8x128xbf16>, vector<128x128xbf16>, vector<8x128xf32> -> vector<8x128xf32>
    %c0_12 = arith.constant 0 : index
    %c0_13 = arith.constant 0 : index
    %12 = vector.load %arg7[%c0_12, %c0_13] : memref<1x128xf32, #tpu.memory_space<vmem>>, vector<1x128xf32>
    %13 = vector.broadcast %12 : vector<1x128xf32> to vector<8x128xf32>
    %14 = arith.addf %11, %13 : vector<8x128xf32>
    %15 = arith.truncf %14 : vector<8x128xf32> to vector<8x128xbf16>
    %c0_14 = arith.constant 0 : index
    %c0_15 = arith.constant 0 : index
    %c0_16 = arith.constant 0 : index
    %16 = vector.load %arg3[%c0_14, %c0_15, %c0_16] : memref<1x8x128xbf16, #tpu.memory_space<vmem>>, vector<1x8x128xbf16>
    %17 = vector.shape_cast %16 : vector<1x8x128xbf16> to vector<8x128xbf16>
    %c0_17 = arith.constant 0 : index
    %c0_18 = arith.constant 0 : index
    %18 = vector.load %arg8[%c0_17, %c0_18] : memref<128x128xbf16, #tpu.memory_space<vmem>>, vector<128x128xbf16>
    %cst_19 = arith.constant dense<0.000000e+00> : vector<8x128xf32>
    %19 = tpu.matmul %17, %18, %cst_19 {dimension_numbers = #tpu.dot_dimension_numbers<[1], [0], [0], [1], [0, 0, 1, 1], [], []>} : vector<8x128xbf16>, vector<128x128xbf16>, vector<8x128xf32> -> vector<8x128xf32>
    %c0_20 = arith.constant 0 : index
    %c0_21 = arith.constant 0 : index
    %20 = vector.load %arg9[%c0_20, %c0_21] : memref<1x128xf32, #tpu.memory_space<vmem>>, vector<1x128xf32>
    %21 = vector.broadcast %20 : vector<1x128xf32> to vector<8x128xf32>
    %22 = arith.addf %19, %21 : vector<8x128xf32>
    %23 = arith.truncf %22 : vector<8x128xf32> to vector<8x128xbf16>
    %24 = vector.extract_strided_slice %7 {offsets = [0, 0], sizes = [8, 32], strides = [1, 1]} : vector<8x128xbf16> to vector<8x32xbf16>
    %25 = vector.extract_strided_slice %15 {offsets = [0, 0], sizes = [8, 32], strides = [1, 1]} : vector<8x128xbf16> to vector<8x32xbf16>
    %26 = vector.extract_strided_slice %23 {offsets = [0, 0], sizes = [8, 32], strides = [1, 1]} : vector<8x128xbf16> to vector<8x32xbf16>
    %cst_22 = arith.constant dense<0.000000e+00> : vector<8x8xf32>
    %27 = tpu.matmul %24, %25, %cst_22 {dimension_numbers = #tpu.dot_dimension_numbers<[1], [1], [0], [0], [0, 0, 1, 0], [], []>} : vector<8x32xbf16>, vector<8x32xbf16>, vector<8x8xf32> -> vector<8x8xf32>
    %cst_23 = arith.constant dense<0xFF800000> : vector<8xf32>
    %28 = vector.multi_reduction <maximumf>, %27, %cst_23 [1] : vector<8x8xf32> to vector<8xf32>
    %29 = vector.shape_cast %28 : vector<8xf32> to vector<8x1xf32>
    %30 = vector.broadcast %29 : vector<8x1xf32> to vector<8x8xf32>
    %31 = arith.subf %27, %30 : vector<8x8xf32>
    %32 = math.exp %31 : vector<8x8xf32>
    %cst_24 = arith.constant dense<0.000000e+00> : vector<8xf32>
    %33 = vector.multi_reduction <add>, %32, %cst_24 [1] : vector<8x8xf32> to vector<8xf32>
    %34 = vector.shape_cast %33 : vector<8xf32> to vector<8x1xf32>
    %35 = arith.truncf %32 : vector<8x8xf32> to vector<8x8xbf16>
    %cst_25 = arith.constant dense<0.000000e+00> : vector<8x32xf32>
    %36 = tpu.matmul %35, %26, %cst_25 {dimension_numbers = #tpu.dot_dimension_numbers<[1], [0], [0], [1], [0, 0, 1, 1], [], []>} : vector<8x8xbf16>, vector<8x32xbf16>, vector<8x32xf32> -> vector<8x32xf32>
    %37 = tpu.reciprocal %34 {approx = true} : vector<8x1xf32> -> vector<8x1xf32>
    %38 = vector.broadcast %37 : vector<8x1xf32> to vector<8x32xf32>
    %39 = arith.mulf %36, %38 : vector<8x32xf32>
    %40 = arith.truncf %39 : vector<8x32xf32> to vector<8x32xbf16>
    %c0_26 = arith.constant 0 : index
    %c0_27 = arith.constant 0 : index
    %41 = vector.load %arg13[%c0_26, %c0_27] : memref<8x128xbf16, #tpu.memory_space<vmem>>, vector<8x32xbf16>
    tpu.vector_store %arg13[%c0_26, %c0_27], %40 {strides = array<i32>} : memref<8x128xbf16, #tpu.memory_space<vmem>>, vector<8x32xbf16>,
    %42 = vector.extract_strided_slice %7 {offsets = [0, 32], sizes = [8, 32], strides = [1, 1]} : vector<8x128xbf16> to vector<8x32xbf16>
    %43 = vector.extract_strided_slice %15 {offsets = [0, 32], sizes = [8, 32], strides = [1, 1]} : vector<8x128xbf16> to vector<8x32xbf16>
    %44 = vector.extract_strided_slice %23 {offsets = [0, 32], sizes = [8, 32], strides = [1, 1]} : vector<8x128xbf16> to vector<8x32xbf16>
    %cst_28 = arith.constant dense<0.000000e+00> : vector<8x8xf32>
    %45 = tpu.matmul %42, %43, %cst_28 {dimension_numbers = #tpu.dot_dimension_numbers<[1], [1], [0], [0], [0, 0, 1, 0], [], []>} : vector<8x32xbf16>, vector<8x32xbf16>, vector<8x8xf32> -> vector<8x8xf32>
    %cst_29 = arith.constant dense<0xFF800000> : vector<8xf32>
    %46 = vector.multi_reduction <maximumf>, %45, %cst_29 [1] : vector<8x8xf32> to vector<8xf32>
    %47 = vector.shape_cast %46 : vector<8xf32> to vector<8x1xf32>
    %48 = vector.broadcast %47 : vector<8x1xf32> to vector<8x8xf32>
    %49 = arith.subf %45, %48 : vector<8x8xf32>
    %50 = math.exp %49 : vector<8x8xf32>
    %cst_30 = arith.constant dense<0.000000e+00> : vector<8xf32>
    %51 = vector.multi_reduction <add>, %50, %cst_30 [1] : vector<8x8xf32> to vector<8xf32>
    %52 = vector.shape_cast %51 : vector<8xf32> to vector<8x1xf32>
    %53 = arith.truncf %50 : vector<8x8xf32> to vector<8x8xbf16>
    %cst_31 = arith.constant dense<0.000000e+00> : vector<8x32xf32>
    %54 = tpu.matmul %53, %44, %cst_31 {dimension_numbers = #tpu.dot_dimension_numbers<[1], [0], [0], [1], [0, 0, 1, 1], [], []>} : vector<8x8xbf16>, vector<8x32xbf16>, vector<8x32xf32> -> vector<8x32xf32>
    %55 = tpu.reciprocal %52 {approx = true} : vector<8x1xf32> -> vector<8x1xf32>
    %56 = vector.broadcast %55 : vector<8x1xf32> to vector<8x32xf32>
    %57 = arith.mulf %54, %56 : vector<8x32xf32>
    %58 = arith.truncf %57 : vector<8x32xf32> to vector<8x32xbf16>
    %c0_32 = arith.constant 0 : index
    %c32 = arith.constant 32 : index
    %59 = vector.load %arg13[%c0_32, %c32] : memref<8x128xbf16, #tpu.memory_space<vmem>>, vector<8x32xbf16>
    tpu.vector_store %arg13[%c0_32, %c32], %58 {strides = array<i32>} : memref<8x128xbf16, #tpu.memory_space<vmem>>, vector<8x32xbf16>,
    %60 = vector.extract_strided_slice %7 {offsets = [0, 64], sizes = [8, 32], strides = [1, 1]} : vector<8x128xbf16> to vector<8x32xbf16>
    %61 = vector.extract_strided_slice %15 {offsets = [0, 64], sizes = [8, 32], strides = [1, 1]} : vector<8x128xbf16> to vector<8x32xbf16>
    %62 = vector.extract_strided_slice %23 {offsets = [0, 64], sizes = [8, 32], strides = [1, 1]} : vector<8x128xbf16> to vector<8x32xbf16>
    %cst_33 = arith.constant dense<0.000000e+00> : vector<8x8xf32>
    %63 = tpu.matmul %60, %61, %cst_33 {dimension_numbers = #tpu.dot_dimension_numbers<[1], [1], [0], [0], [0, 0, 1, 0], [], []>} : vector<8x32xbf16>, vector<8x32xbf16>, vector<8x8xf32> -> vector<8x8xf32>
    %cst_34 = arith.constant dense<0xFF800000> : vector<8xf32>
    %64 = vector.multi_reduction <maximumf>, %63, %cst_34 [1] : vector<8x8xf32> to vector<8xf32>
    %65 = vector.shape_cast %64 : vector<8xf32> to vector<8x1xf32>
    %66 = vector.broadcast %65 : vector<8x1xf32> to vector<8x8xf32>
    %67 = arith.subf %63, %66 : vector<8x8xf32>
    %68 = math.exp %67 : vector<8x8xf32>
    %cst_35 = arith.constant dense<0.000000e+00> : vector<8xf32>
    %69 = vector.multi_reduction <add>, %68, %cst_35 [1] : vector<8x8xf32> to vector<8xf32>
    %70 = vector.shape_cast %69 : vector<8xf32> to vector<8x1xf32>
    %71 = arith.truncf %68 : vector<8x8xf32> to vector<8x8xbf16>
    %cst_36 = arith.constant dense<0.000000e+00> : vector<8x32xf32>
    %72 = tpu.matmul %71, %62, %cst_36 {dimension_numbers = #tpu.dot_dimension_numbers<[1], [0], [0], [1], [0, 0, 1, 1], [], []>} : vector<8x8xbf16>, vector<8x32xbf16>, vector<8x32xf32> -> vector<8x32xf32>
    %73 = tpu.reciprocal %70 {approx = true} : vector<8x1xf32> -> vector<8x1xf32>
    %74 = vector.broadcast %73 : vector<8x1xf32> to vector<8x32xf32>
    %75 = arith.mulf %72, %74 : vector<8x32xf32>
    %76 = arith.truncf %75 : vector<8x32xf32> to vector<8x32xbf16>
    %c0_37 = arith.constant 0 : index
    %c64 = arith.constant 64 : index
    %77 = vector.load %arg13[%c0_37, %c64] : memref<8x128xbf16, #tpu.memory_space<vmem>>, vector<8x32xbf16>
    tpu.vector_store %arg13[%c0_37, %c64], %76 {strides = array<i32>} : memref<8x128xbf16, #tpu.memory_space<vmem>>, vector<8x32xbf16>,
    %78 = vector.extract_strided_slice %7 {offsets = [0, 96], sizes = [8, 32], strides = [1, 1]} : vector<8x128xbf16> to vector<8x32xbf16>
    %79 = vector.extract_strided_slice %15 {offsets = [0, 96], sizes = [8, 32], strides = [1, 1]} : vector<8x128xbf16> to vector<8x32xbf16>
    %80 = vector.extract_strided_slice %23 {offsets = [0, 96], sizes = [8, 32], strides = [1, 1]} : vector<8x128xbf16> to vector<8x32xbf16>
    %cst_38 = arith.constant dense<0.000000e+00> : vector<8x8xf32>
    %81 = tpu.matmul %78, %79, %cst_38 {dimension_numbers = #tpu.dot_dimension_numbers<[1], [1], [0], [0], [0, 0, 1, 0], [], []>} : vector<8x32xbf16>, vector<8x32xbf16>, vector<8x8xf32> -> vector<8x8xf32>
    %cst_39 = arith.constant dense<0xFF800000> : vector<8xf32>
    %82 = vector.multi_reduction <maximumf>, %81, %cst_39 [1] : vector<8x8xf32> to vector<8xf32>
    %83 = vector.shape_cast %82 : vector<8xf32> to vector<8x1xf32>
    %84 = vector.broadcast %83 : vector<8x1xf32> to vector<8x8xf32>
    %85 = arith.subf %81, %84 : vector<8x8xf32>
    %86 = math.exp %85 : vector<8x8xf32>
    %cst_40 = arith.constant dense<0.000000e+00> : vector<8xf32>
    %87 = vector.multi_reduction <add>, %86, %cst_40 [1] : vector<8x8xf32> to vector<8xf32>
    %88 = vector.shape_cast %87 : vector<8xf32> to vector<8x1xf32>
    %89 = arith.truncf %86 : vector<8x8xf32> to vector<8x8xbf16>
    %cst_41 = arith.constant dense<0.000000e+00> : vector<8x32xf32>
    %90 = tpu.matmul %89, %80, %cst_41 {dimension_numbers = #tpu.dot_dimension_numbers<[1], [0], [0], [1], [0, 0, 1, 1], [], []>} : vector<8x8xbf16>, vector<8x32xbf16>, vector<8x32xf32> -> vector<8x32xf32>
    %91 = tpu.reciprocal %88 {approx = true} : vector<8x1xf32> -> vector<8x1xf32>
    %92 = vector.broadcast %91 : vector<8x1xf32> to vector<8x32xf32>
    %93 = arith.mulf %90, %92 : vector<8x32xf32>
    %94 = arith.truncf %93 : vector<8x32xf32> to vector<8x32xbf16>
    %c0_42 = arith.constant 0 : index
    %c96 = arith.constant 96 : index
    %95 = vector.load %arg13[%c0_42, %c96] : memref<8x128xbf16, #tpu.memory_space<vmem>>, vector<8x32xbf16>
    tpu.vector_store %arg13[%c0_42, %c96], %94 {strides = array<i32>} : memref<8x128xbf16, #tpu.memory_space<vmem>>, vector<8x32xbf16>,
    %c0_43 = arith.constant 0 : index
    %c0_44 = arith.constant 0 : index
    %96 = vector.load %arg13[%c0_43, %c0_44] : memref<8x128xbf16, #tpu.memory_space<vmem>>, vector<8x128xbf16>
    %c0_45 = arith.constant 0 : index
    %c0_46 = arith.constant 0 : index
    %97 = vector.load %arg10[%c0_45, %c0_46] : memref<128x128xbf16, #tpu.memory_space<vmem>>, vector<128x128xbf16>
    %cst_47 = arith.constant dense<0.000000e+00> : vector<8x128xf32>
    %98 = tpu.matmul %96, %97, %cst_47 {dimension_numbers = #tpu.dot_dimension_numbers<[1], [0], [0], [1], [0, 0, 1, 1], [], []>} : vector<8x128xbf16>, vector<128x128xbf16>, vector<8x128xf32> -> vector<8x128xf32>
    %c0_48 = arith.constant 0 : index
    %c0_49 = arith.constant 0 : index
    %99 = vector.load %arg11[%c0_48, %c0_49] : memref<1x128xf32, #tpu.memory_space<vmem>>, vector<1x128xf32>
    %100 = vector.broadcast %99 : vector<1x128xf32> to vector<8x128xf32>
    %101 = arith.addf %98, %100 : vector<8x128xf32>
    %c0_50 = arith.constant 0 : index
    %c0_51 = arith.constant 0 : index
    %c0_52 = arith.constant 0 : index
    %102 = vector.load %arg12[%c0_50, %c0_51, %c0_52] : memref<1x8x128xf32, #tpu.memory_space<vmem>>, vector<1x8x128xf32>
    %103 = vector.shape_cast %102 : vector<1x8x128xf32> to vector<8x128xf32>
    %104 = vector.shape_cast %101 : vector<8x128xf32> to vector<1x8x128xf32>
    tpu.vector_store %arg12[%c0_50, %c0_51, %c0_52], %104 {strides = array<i32>} : memref<1x8x128xf32, #tpu.memory_space<vmem>>, vector<1x8x128xf32>,
    return
  }
  func.func @transform_0(%arg0: i32) -> (i32, i32, i32) {
    %c0_i32 = arith.constant 0 : i32
    %c0_i32_0 = arith.constant 0 : i32
    %c0_i32_1 = arith.constant 0 : i32
    return %arg0, %c0_i32, %c0_i32_0 : i32, i32, i32
  }
  func.func @transform_1(%arg0: i32) -> (i32, i32, i32) {
    %c0_i32 = arith.constant 0 : i32
    %c0_i32_0 = arith.constant 0 : i32
    %c0_i32_1 = arith.constant 0 : i32
    return %arg0, %c0_i32, %c0_i32_0 : i32, i32, i32
  }
  func.func @transform_2(%arg0: i32) -> (i32, i32, i32) {
    %c0_i32 = arith.constant 0 : i32
    %c0_i32_0 = arith.constant 0 : i32
    %c0_i32_1 = arith.constant 0 : i32
    return %arg0, %c0_i32, %c0_i32_0 : i32, i32, i32
  }
  func.func @transform_3(%arg0: i32) -> (i32, i32) {
    %c0_i32 = arith.constant 0 : i32
    %c0_i32_0 = arith.constant 0 : i32
    %c0_i32_1 = arith.constant 0 : i32
    return %c0_i32, %c0_i32_0 : i32, i32
  }
  func.func @transform_4(%arg0: i32) -> (i32, i32) {
    %c0_i32 = arith.constant 0 : i32
    %c0_i32_0 = arith.constant 0 : i32
    %c0_i32_1 = arith.constant 0 : i32
    return %c0_i32, %c0_i32_0 : i32, i32
  }
  func.func @transform_5(%arg0: i32) -> (i32, i32) {
    %c0_i32 = arith.constant 0 : i32
    %c0_i32_0 = arith.constant 0 : i32
    %c0_i32_1 = arith.constant 0 : i32
    return %c0_i32, %c0_i32_0 : i32, i32
  }
  func.func @transform_6(%arg0: i32) -> (i32, i32) {
    %c0_i32 = arith.constant 0 : i32
    %c0_i32_0 = arith.constant 0 : i32
    %c0_i32_1 = arith.constant 0 : i32
    return %c0_i32, %c0_i32_0 : i32, i32
  }
  func.func @transform_7(%arg0: i32) -> (i32, i32) {
    %c0_i32 = arith.constant 0 : i32
    %c0_i32_0 = arith.constant 0 : i32
    %c0_i32_1 = arith.constant 0 : i32
    return %c0_i32, %c0_i32_0 : i32, i32
  }
  func.func @transform_8(%arg0: i32) -> (i32, i32) {
    %c0_i32 = arith.constant 0 : i32
    %c0_i32_0 = arith.constant 0 : i32
    %c0_i32_1 = arith.constant 0 : i32
    return %c0_i32, %c0_i32_0 : i32, i32
  }
  func.func @transform_9(%arg0: i32) -> (i32, i32) {
    %c0_i32 = arith.constant 0 : i32
    %c0_i32_0 = arith.constant 0 : i32
    %c0_i32_1 = arith.constant 0 : i32
    return %c0_i32, %c0_i32_0 : i32, i32
  }
  func.func @transform_10(%arg0: i32) -> (i32, i32) {
    %c0_i32 = arith.constant 0 : i32
    %c0_i32_0 = arith.constant 0 : i32
    %c0_i32_1 = arith.constant 0 : i32
    return %c0_i32, %c0_i32_0 : i32, i32
  }
  func.func @transform_11(%arg0: i32) -> (i32, i32, i32) {
    %c0_i32 = arith.constant 0 : i32
    %c0_i32_0 = arith.constant 0 : i32
    %c0_i32_1 = arith.constant 0 : i32
    return %arg0, %c0_i32, %c0_i32_0 : i32, i32, i32
  }
}

</mosaic_0001>

<llo_original>
// kernel: tpu_custom_call.1
$region0: #{tpu_custom_call.1}
  #allocation0 [shape = 'u32[]', space=smem, size = 0x4, offset = 0x4, fixed_abs, tag = 'smem constant byte address 0x4 - core index']
  #allocation1 [shape = 'u32[144,128]{1,0:T(1,128)}', space=vmem, size = 0x12000, scoped, tag = 'internal scratch']
  #allocation2 [shape = 'bf16[8,128]{1,0:T(8,128)(2,1)}', space=vmem, size = 0x800, scoped, tag = 'scratch operand']
  %s0 = inlined_call_operand.hbm [shape: bf16[2,8,128], index: 0, kind: input, shape index: {}]
  %s1 = inlined_call_operand.hbm [shape: bf16[2,8,128], index: 1, kind: input, shape index: {}]
  %s2 = inlined_call_operand.hbm [shape: bf16[2,8,128], index: 2, kind: input, shape index: {}]
  %s3 = inlined_call_operand.hbm [shape: bf16[128,128], index: 3, kind: input, shape index: {}]
  %s4 = inlined_call_operand.vmem [shape: f32[1,128], index: 4, kind: input, shape index: {}]
  %s5 = inlined_call_operand.hbm [shape: bf16[128,128], index: 5, kind: input, shape index: {}]
  %s6 = inlined_call_operand.vmem [shape: f32[1,128], index: 6, kind: input, shape index: {}]
  %s7 = inlined_call_operand.hbm [shape: bf16[128,128], index: 7, kind: input, shape index: {}]
  %s8 = inlined_call_operand.vmem [shape: f32[1,128], index: 8, kind: input, shape index: {}]
  %s9 = inlined_call_operand.hbm [shape: bf16[128,128], index: 9, kind: input, shape index: {}]
  %s10 = inlined_call_operand.vmem [shape: f32[1,128], index: 10, kind: input, shape index: {}]
  %s11 = inlined_call_operand.hbm [shape: f32[2,8,128], index: 11, kind: output, shape index: {}]
  %s12 = sld [smem:[#allocation0]]
  $region105: #{tpu_custom_call.1} parent=0
    _
  %s14 = ssub.s32 1, %s12
  %s15 = scalar_select 0, %s14, %s12
  $region1: #{tpu_custom_call.1} parent=0
    #allocation3 [shape = 'u8[4096]{0}', space=vmem, size = 0x1000, scoped, tag = 'input window, operand 0']
    #allocation4 [shape = 's32[2]{0}', space=sflag, size = 0x8, scoped, tag = 'scoped memory for tpu_custom_call.1']
    #allocation5 [shape = 's32[2]{0}', space=sflag, size = 0x8, scoped, tag = 'scoped memory for tpu_custom_call.1']
    #allocation6 [shape = 'u8[4096]{0}', space=vmem, size = 0x1000, scoped, tag = 'input window, operand 1']
    #allocation7 [shape = 's32[2]{0}', space=sflag, size = 0x8, scoped, tag = 'scoped memory for tpu_custom_call.1']
    #allocation8 [shape = 'u8[4096]{0}', space=vmem, size = 0x1000, scoped, tag = 'input window, operand 2']
    #allocation9 [shape = 'u8[32768]{0}', space=vmem, size = 0x8000, scoped, tag = 'input window, operand 3, single buffered']
    #allocation10 [shape = 's32[1]{0}', space=sflag, size = 0x4, scoped, tag = 'scoped memory for tpu_custom_call.1']
    #allocation11 [shape = 'u8[32768]{0}', space=vmem, size = 0x8000, scoped, tag = 'input window, operand 5, single buffered']
    #allocation12 [shape = 'u8[32768]{0}', space=vmem, size = 0x8000, scoped, tag = 'input window, operand 7, single buffered']
    #allocation13 [shape = 's32[1]{0}', space=sflag, size = 0x4, scoped, tag = 'scoped memory for tpu_custom_call.1']
    #allocation14 [shape = 'u8[32768]{0}', space=vmem, size = 0x8000, scoped, tag = 'input window, operand 9, single buffered']
    #allocation15 [shape = 'u8[8192]{0}', space=vmem, size = 0x2000, scoped, tag = 'output window, operand 0']
    %16 = vsyncpa [#allocation4], 0
    %s17 = scalar_lea.sflag [#allocation4], 1
    %18 = vsyncpa %s17, 0
    %19 = vsyncpa [#allocation7], 0
    %s20 = scalar_lea.sflag [#allocation7], 1
    %21 = vsyncpa %s20, 0
    %22 = vsyncpa [#allocation10], 0
    %23 = vsyncpa [#allocation13], 0
    %24 = vsyncpa [#allocation5], 0
    %s25 = scalar_lea.sflag [#allocation5], 1
    %26 = vsyncpa %s25, 0
    loop: start=0, step=1, limit=4
    $region2: #{tpu_custom_call.1} parent=1 // loop_pre_header
      _
    $region3: #{tpu_custom_call.1} parent=1 // loop_header
      %s28 = sphi 0, %s32
      %p29 = scmp.ge.s32.totalorder %s28, 4
      %s38 = sphi 0, %s40
      %s41 = sphi 0, %s38
      %s42 = sphi 0, %s41
      %s58 = sphi 0, %s42
      %s64 = sphi 0, %s66
      %s67 = sphi 0, %s64
      %s68 = sphi 0, %s67
      %s84 = sphi 0, %s68
      %s90 = sphi 0, %s92
      %s93 = sphi 0, %s90
      %s94 = sphi 0, %s93
      %s110 = sphi 0, %s94
      %s114 = sphi 0, %s114
      %s116 = sphi 0, %s114
      %s117 = sphi 0, %s116
      %s131 = sphi 0, %s117
      %s135 = sphi 0, %s135
      %s137 = sphi 0, %s135
      %s138 = sphi 0, %s137
      %s152 = sphi 0, %s138
      %s156 = sphi 0, %s156
      %s158 = sphi 0, %s156
      %s159 = sphi 0, %s158
      %s173 = sphi 0, %s159
      %s177 = sphi 0, %s177
      %s179 = sphi 0, %s177
      %s180 = sphi 0, %s179
      %s194 = sphi 0, %s180
      %s198 = sphi 0, %s198
      %s200 = sphi 0, %s198
      %s201 = sphi 0, %s200
      %s215 = sphi 0, %s201
      %s219 = sphi 0, %s219
      %s221 = sphi 0, %s219
      %s222 = sphi 0, %s221
      %s236 = sphi 0, %s222
      %s240 = sphi 0, %s240
      %s242 = sphi 0, %s240
      %s243 = sphi 0, %s242
      %s257 = sphi 0, %s243
      %s261 = sphi 0, %s261
      %s263 = sphi 0, %s261
      %s264 = sphi 0, %s263
      %s278 = sphi 0, %s264
      %s284 = sphi 0, %s286
      %s287 = sphi 0, %s284
      %s288 = sphi 0, %s287
      %s304 = sphi 0, %s288
    $region4: #{tpu_custom_call.1} parent=1 // loop_header_branch
      %31 = sbr.rel (%p29) target = $region8
    $region5: #{tpu_custom_call.1} parent=1 // loop_body
      %s33 = ssub.s32 %s28, 1
      %s34 = ssub.s32 %s28, 2
      %s35 = sadd.s32 %s28, 1
      %s36 = ssub.s32 %s28, %s35
      %p37 = scmp.eq.s32.totalorder %s36, 0
      %s39 = sadd.s32 %s38, 1
      %s40 = scalar_select %p37, %s38, %s39
      %p43 = pneg %p37
      %p44 = scmp.eq.s32.totalorder %s28, 1
      %p45 = por %p43, %p44
      %p46 = scmp.ne.s32.totalorder %s38, %s41
      %p47 = scmp.eq.s32.totalorder %s28, 0
      %p48 = por %p46, %p47
      %p49 = scmp.ne.s32.totalorder %s38, %s41
      %p50 = scmp.eq.s32.totalorder %s33, 1
      %p51 = por %p49, %p50
      %p52 = scmp.ne.s32.totalorder %s41, %s42
      %p53 = scmp.eq.s32.totalorder %s33, 0
      %p54 = por %p52, %p53
      %p55 = scmp.ne.s32.totalorder %s41, %s42
      %p56 = scmp.eq.s32.totalorder %s34, 1
      %p57 = por %p55, %p56
      %p59 = scmp.ne.s32.totalorder %s42, %s58
      %p60 = scmp.eq.s32.totalorder %s34, 0
      %p61 = por %p59, %p60
      %s62 = ssub.s32 %s28, %s35
      %p63 = scmp.eq.s32.totalorder %s62, 0
      %s65 = sadd.s32 %s64, 1
      %s66 = scalar_select %p63, %s64, %s65
      %p69 = pneg %p63
      %p70 = scmp.eq.s32.totalorder %s28, 1
      %p71 = por %p69, %p70
      %p72 = scmp.ne.s32.totalorder %s64, %s67
      %p73 = scmp.eq.s32.totalorder %s28, 0
      %p74 = por %p72, %p73
      %p75 = scmp.ne.s32.totalorder %s64, %s67
      %p76 = scmp.eq.s32.totalorder %s33, 1
      %p77 = por %p75, %p76
      %p78 = scmp.ne.s32.totalorder %s67, %s68
      %p79 = scmp.eq.s32.totalorder %s33, 0
      %p80 = por %p78, %p79
      %p81 = scmp.ne.s32.totalorder %s67, %s68
      %p82 = scmp.eq.s32.totalorder %s34, 1
      %p83 = por %p81, %p82
      %p85 = scmp.ne.s32.totalorder %s68, %s84
      %p86 = scmp.eq.s32.totalorder %s34, 0
      %p87 = por %p85, %p86
      %s88 = ssub.s32 %s28, %s35
      %p89 = scmp.eq.s32.totalorder %s88, 0
      %s91 = sadd.s32 %s90, 1
      %s92 = scalar_select %p89, %s90, %s91
      %p95 = pneg %p89
      %p96 = scmp.eq.s32.totalorder %s28, 1
      %p97 = por %p95, %p96
      %p98 = scmp.ne.s32.totalorder %s90, %s93
      %p99 = scmp.eq.s32.totalorder %s28, 0
      %p100 = por %p98, %p99
      %p101 = scmp.ne.s32.totalorder %s90, %s93
      %p102 = scmp.eq.s32.totalorder %s33, 1
      %p103 = por %p101, %p102
      %p104 = scmp.ne.s32.totalorder %s93, %s94
      %p105 = scmp.eq.s32.totalorder %s33, 0
      %p106 = por %p104, %p105
      %p107 = scmp.ne.s32.totalorder %s93, %s94
      %p108 = scmp.eq.s32.totalorder %s34, 1
      %p109 = por %p107, %p108
      %p111 = scmp.ne.s32.totalorder %s94, %s110
      %p112 = scmp.eq.s32.totalorder %s34, 0
      %p113 = por %p111, %p112
      %s115 = sadd.s32 %s114, 1
      %p118 = scmp.eq.s32.totalorder %s28, 1
      %p119 = scmp.ne.s32.totalorder %s114, %s116
      %p120 = scmp.eq.s32.totalorder %s28, 0
      %p121 = por %p119, %p120
      %p122 = scmp.ne.s32.totalorder %s114, %s116
      %p123 = scmp.eq.s32.totalorder %s33, 1
      %p124 = por %p122, %p123
      %p125 = scmp.ne.s32.totalorder %s116, %s117
      %p126 = scmp.eq.s32.totalorder %s33, 0
      %p127 = por %p125, %p126
      %p128 = scmp.ne.s32.totalorder %s116, %s117
      %p129 = scmp.eq.s32.totalorder %s34, 1
      %p130 = por %p128, %p129
      %p132 = scmp.ne.s32.totalorder %s117, %s131
      %p133 = scmp.eq.s32.totalorder %s34, 0
      %p134 = por %p132, %p133
      %s136 = sadd.s32 %s135, 1
      %p139 = scmp.eq.s32.totalorder %s28, 1
      %p140 = scmp.ne.s32.totalorder %s135, %s137
      %p141 = scmp.eq.s32.totalorder %s28, 0
      %p142 = por %p140, %p141
      %p143 = scmp.ne.s32.totalorder %s135, %s137
      %p144 = scmp.eq.s32.totalorder %s33, 1
      %p145 = por %p143, %p144
      %p146 = scmp.ne.s32.totalorder %s137, %s138
      %p147 = scmp.eq.s32.totalorder %s33, 0
      %p148 = por %p146, %p147
      %p149 = scmp.ne.s32.totalorder %s137, %s138
      %p150 = scmp.eq.s32.totalorder %s34, 1
      %p151 = por %p149, %p150
      %p153 = scmp.ne.s32.totalorder %s138, %s152
      %p154 = scmp.eq.s32.totalorder %s34, 0
      %p155 = por %p153, %p154
      %s157 = sadd.s32 %s156, 1
      %p160 = scmp.eq.s32.totalorder %s28, 1
      %p161 = scmp.ne.s32.totalorder %s156, %s158
      %p162 = scmp.eq.s32.totalorder %s28, 0
      %p163 = por %p161, %p162
      %p164 = scmp.ne.s32.totalorder %s156, %s158
      %p165 = scmp.eq.s32.totalorder %s33, 1
      %p166 = por %p164, %p165
      %p167 = scmp.ne.s32.totalorder %s158, %s159
      %p168 = scmp.eq.s32.totalorder %s33, 0
      %p169 = por %p167, %p168
      %p170 = scmp.ne.s32.totalorder %s158, %s159
      %p171 = scmp.eq.s32.totalorder %s34, 1
      %p172 = por %p170, %p171
      %p174 = scmp.ne.s32.totalorder %s159, %s173
      %p175 = scmp.eq.s32.totalorder %s34, 0
      %p176 = por %p174, %p175
      %s178 = sadd.s32 %s177, 1
      %p181 = scmp.eq.s32.totalorder %s28, 1
      %p182 = scmp.ne.s32.totalorder %s177, %s179
      %p183 = scmp.eq.s32.totalorder %s28, 0
      %p184 = por %p182, %p183
      %p185 = scmp.ne.s32.totalorder %s177, %s179
      %p186 = scmp.eq.s32.totalorder %s33, 1
      %p187 = por %p185, %p186
      %p188 = scmp.ne.s32.totalorder %s179, %s180
      %p189 = scmp.eq.s32.totalorder %s33, 0
      %p190 = por %p188, %p189
      %p191 = scmp.ne.s32.totalorder %s179, %s180
      %p192 = scmp.eq.s32.totalorder %s34, 1
      %p193 = por %p191, %p192
      %p195 = scmp.ne.s32.totalorder %s180, %s194
      %p196 = scmp.eq.s32.totalorder %s34, 0
      %p197 = por %p195, %p196
      %s199 = sadd.s32 %s198, 1
      %p202 = scmp.eq.s32.totalorder %s28, 1
      %p203 = scmp.ne.s32.totalorder %s198, %s200
      %p204 = scmp.eq.s32.totalorder %s28, 0
      %p205 = por %p203, %p204
      %p206 = scmp.ne.s32.totalorder %s198, %s200
      %p207 = scmp.eq.s32.totalorder %s33, 1
      %p208 = por %p206, %p207
      %p209 = scmp.ne.s32.totalorder %s200, %s201
      %p210 = scmp.eq.s32.totalorder %s33, 0
      %p211 = por %p209, %p210
      %p212 = scmp.ne.s32.totalorder %s200, %s201
      %p213 = scmp.eq.s32.totalorder %s34, 1
      %p214 = por %p212, %p213
      %p216 = scmp.ne.s32.totalorder %s201, %s215
      %p217 = scmp.eq.s32.totalorder %s34, 0
      %p218 = por %p216, %p217
      %s220 = sadd.s32 %s219, 1
      %p223 = scmp.eq.s32.totalorder %s28, 1
      %p224 = scmp.ne.s32.totalorder %s219, %s221
      %p225 = scmp.eq.s32.totalorder %s28, 0
      %p226 = por %p224, %p225
      %p227 = scmp.ne.s32.totalorder %s219, %s221
      %p228 = scmp.eq.s32.totalorder %s33, 1
      %p229 = por %p227, %p228
      %p230 = scmp.ne.s32.totalorder %s221, %s222
      %p231 = scmp.eq.s32.totalorder %s33, 0
      %p232 = por %p230, %p231
      %p233 = scmp.ne.s32.totalorder %s221, %s222
      %p234 = scmp.eq.s32.totalorder %s34, 1
      %p235 = por %p233, %p234
      %p237 = scmp.ne.s32.totalorder %s222, %s236
      %p238 = scmp.eq.s32.totalorder %s34, 0
      %p239 = por %p237, %p238
      %s241 = sadd.s32 %s240, 1
      %p244 = scmp.eq.s32.totalorder %s28, 1
      %p245 = scmp.ne.s32.totalorder %s240, %s242
      %p246 = scmp.eq.s32.totalorder %s28, 0
      %p247 = por %p245, %p246
      %p248 = scmp.ne.s32.totalorder %s240, %s242
      %p249 = scmp.eq.s32.totalorder %s33, 1
      %p250 = por %p248, %p249
      %p251 = scmp.ne.s32.totalorder %s242, %s243
      %p252 = scmp.eq.s32.totalorder %s33, 0
      %p253 = por %p251, %p252
      %p254 = scmp.ne.s32.totalorder %s242, %s243
      %p255 = scmp.eq.s32.totalorder %s34, 1
      %p256 = por %p254, %p255
      %p258 = scmp.ne.s32.totalorder %s243, %s257
      %p259 = scmp.eq.s32.totalorder %s34, 0
      %p260 = por %p258, %p259
      %s262 = sadd.s32 %s261, 1
      %p265 = scmp.eq.s32.totalorder %s28, 1
      %p266 = scmp.ne.s32.totalorder %s261, %s263
      %p267 = scmp.eq.s32.totalorder %s28, 0
      %p268 = por %p266, %p267
      %p269 = scmp.ne.s32.totalorder %s261, %s263
      %p270 = scmp.eq.s32.totalorder %s33, 1
      %p271 = por %p269, %p270
      %p272 = scmp.ne.s32.totalorder %s263, %s264
      %p273 = scmp.eq.s32.totalorder %s33, 0
      %p274 = por %p272, %p273
      %p275 = scmp.ne.s32.totalorder %s263, %s264
      %p276 = scmp.eq.s32.totalorder %s34, 1
      %p277 = por %p275, %p276
      %p279 = scmp.ne.s32.totalorder %s264, %s278
      %p280 = scmp.eq.s32.totalorder %s34, 0
      %p281 = por %p279, %p280
      %s282 = ssub.s32 %s28, %s35
      %p283 = scmp.eq.s32.totalorder %s282, 0
      %s285 = sadd.s32 %s284, 1
      %s286 = scalar_select %p283, %s284, %s285
      %p289 = pneg %p283
      %p290 = scmp.eq.s32.totalorder %s28, 1
      %p291 = por %p289, %p290
      %p292 = scmp.ne.s32.totalorder %s284, %s287
      %p293 = scmp.eq.s32.totalorder %s28, 0
      %p294 = por %p292, %p293
      %p295 = scmp.ne.s32.totalorder %s284, %s287
      %p296 = scmp.eq.s32.totalorder %s33, 1
      %p297 = por %p295, %p296
      %p298 = scmp.ne.s32.totalorder %s287, %s288
      %p299 = scmp.eq.s32.totalorder %s33, 0
      %p300 = por %p298, %p299
      %p301 = scmp.ne.s32.totalorder %s287, %s288
      %p302 = scmp.eq.s32.totalorder %s34, 1
      %p303 = por %p301, %p302
      %p305 = scmp.ne.s32.totalorder %s288, %s304
      %p306 = scmp.eq.s32.totalorder %s34, 0
      %p307 = por %p305, %p306
      %p308 = scmp.le.s32.totalorder 1, %s28
      %p309 = scmp.lt.s32.totalorder %s28, 3
      %p310 = pnand %p308, %p309
      %p311 = pneg %p310
      // Predicated region
      $region9: #{tpu_custom_call.1} parent=5 // pred_check
        _
      $region10: #{tpu_custom_call.1} parent=5 // pred_check_branch
        %313 = sbr.rel (%p310) target = $region12
      $region11: #{tpu_custom_call.1} parent=5 // pred_region
        %s314 = ssub.s32 %s28, 1
        // Predicated region
        $region13: #{tpu_custom_call.1} parent=11 // pred_check
          %p315 = pneg %p127
        $region14: #{tpu_custom_call.1} parent=11 // pred_check_branch
          %317 = sbr.rel (%p315) target = $region16
        $region15: #{tpu_custom_call.1} parent=11 // pred_region
          %s319 = ssub.s32 1024, 1024
          %320 = vsyncadd [#allocation10], %s319
          %s321 = sshll.u32 [#allocation9], 4
          %s322 = int_to_ptr.vmem [resolvable:$true] %s321
          %327 = dma.hbm_to_vmem [thread:$0]  %s3, 1024, %s322, [#allocation10], 64, 64, 4
        $region16: #{tpu_custom_call.1} parent=11 // pred_fallthru
          _
        // Predicated region
        $region17: #{tpu_custom_call.1} parent=11 // pred_check
          %p328 = pneg %p148
        $region18: #{tpu_custom_call.1} parent=11 // pred_check_branch
          %330 = sbr.rel (%p328) target = $region20
        $region19: #{tpu_custom_call.1} parent=11 // pred_region
          _
        $region20: #{tpu_custom_call.1} parent=11 // pred_fallthru
          _
        // Predicated region
        $region21: #{tpu_custom_call.1} parent=11 // pred_check
          %p331 = pneg %p169
        $region22: #{tpu_custom_call.1} parent=11 // pred_check_branch
          %333 = sbr.rel (%p331) target = $region24
        $region23: #{tpu_custom_call.1} parent=11 // pred_region
          %s335 = ssub.s32 1024, 1024
          %336 = vsyncadd [#allocation10], %s335
          %s337 = sshll.u32 [#allocation11], 4
          %s338 = int_to_ptr.vmem [resolvable:$true] %s337
          %343 = dma.hbm_to_vmem [thread:$0]  %s5, 1024, %s338, [#allocation10], 64, 64, 4
        $region24: #{tpu_custom_call.1} parent=11 // pred_fallthru
          _
        // Predicated region
        $region25: #{tpu_custom_call.1} parent=11 // pred_check
          %p344 = pneg %p190
        $region26: #{tpu_custom_call.1} parent=11 // pred_check_branch
          %346 = sbr.rel (%p344) target = $region28
        $region27: #{tpu_custom_call.1} parent=11 // pred_region
          _
        $region28: #{tpu_custom_call.1} parent=11 // pred_fallthru
          _
        // Predicated region
        $region29: #{tpu_custom_call.1} parent=11 // pred_check
          %p347 = pneg %p211
        $region30: #{tpu_custom_call.1} parent=11 // pred_check_branch
          %349 = sbr.rel (%p347) target = $region32
        $region31: #{tpu_custom_call.1} parent=11 // pred_region
          %s351 = ssub.s32 1024, 1024
          %352 = vsyncadd [#allocation13], %s351
          %s353 = sshll.u32 [#allocation12], 4
          %s354 = int_to_ptr.vmem [resolvable:$true] %s353
          %359 = dma.hbm_to_vmem [thread:$0]  %s7, 1024, %s354, [#allocation13], 64, 64, 4
        $region32: #{tpu_custom_call.1} parent=11 // pred_fallthru
          _
        // Predicated region
        $region33: #{tpu_custom_call.1} parent=11 // pred_check
          %p360 = pneg %p232
        $region34: #{tpu_custom_call.1} parent=11 // pred_check_branch
          %362 = sbr.rel (%p360) target = $region36
        $region35: #{tpu_custom_call.1} parent=11 // pred_region
          _
        $region36: #{tpu_custom_call.1} parent=11 // pred_fallthru
          _
        // Predicated region
        $region37: #{tpu_custom_call.1} parent=11 // pred_check
          %p363 = pneg %p253
        $region38: #{tpu_custom_call.1} parent=11 // pred_check_branch
          %365 = sbr.rel (%p363) target = $region40
        $region39: #{tpu_custom_call.1} parent=11 // pred_region
          %s367 = ssub.s32 1024, 1024
          %368 = vsyncadd [#allocation13], %s367
          %s369 = sshll.u32 [#allocation14], 4
          %s370 = int_to_ptr.vmem [resolvable:$true] %s369
          %375 = dma.hbm_to_vmem [thread:$0]  %s9, 1024, %s370, [#allocation13], 64, 64, 4
        $region40: #{tpu_custom_call.1} parent=11 // pred_fallthru
          _
        // Predicated region
        $region41: #{tpu_custom_call.1} parent=11 // pred_check
          %p376 = pneg %p274
        $region42: #{tpu_custom_call.1} parent=11 // pred_check_branch
          %378 = sbr.rel (%p376) target = $region44
        $region43: #{tpu_custom_call.1} parent=11 // pred_region
          _
        $region44: #{tpu_custom_call.1} parent=11 // pred_fallthru
          _
      $region12: #{tpu_custom_call.1} parent=5 // pred_fallthru
        _
      %p379 = scmp.lt.s32.totalorder %s28, 2
      // Predicated region
      $region45: #{tpu_custom_call.1} parent=5 // pred_check
        %p380 = pneg %p379
      $region46: #{tpu_custom_call.1} parent=5 // pred_check_branch
        %382 = sbr.rel (%p380) target = $region48
      $region47: #{tpu_custom_call.1} parent=5 // pred_region
        // Predicated region
        $region49: #{tpu_custom_call.1} parent=47 // pred_check
          %p383 = pneg %p48
        $region50: #{tpu_custom_call.1} parent=47 // pred_check_branch
          %385 = sbr.rel (%p383) target = $region52
        $region51: #{tpu_custom_call.1} parent=47 // pred_region
          %s386 = sand.u32 %s38, 1
          %s387 = scalar_lea.sflag [#allocation4], %s386
          %s388 = sand.u32 %s38, 1
          %s389 = smul.addr %s388, 4
          %s390 = scalar_lea.vmem [#allocation3], %s389
          %s392 = ssub.s32 64, 64
          %393 = vsyncadd %s387, %s392
          %s394 = smul.addr %s28, 64
          %s395 = scalar_lea.hbm %s0, %s394
          %s397 = sshll.u32 %s390, 4
          %s398 = int_to_ptr.vmem [resolvable:$true] %s397
          %400 = dma.hbm_to_vmem [thread:$0]  %s395, 64, %s398, %s387
        $region52: #{tpu_custom_call.1} parent=47 // pred_fallthru
          _
        // Predicated region
        $region53: #{tpu_custom_call.1} parent=47 // pred_check
          %p401 = pneg %p74
        $region54: #{tpu_custom_call.1} parent=47 // pred_check_branch
          %403 = sbr.rel (%p401) target = $region56
        $region55: #{tpu_custom_call.1} parent=47 // pred_region
          %s404 = sand.u32 %s28, 1
          %s405 = scalar_lea.sflag [#allocation7], %s404
          %s406 = sand.u32 %s64, 1
          %s407 = smul.addr %s406, 4
          %s408 = scalar_lea.vmem [#allocation6], %s407
          %s410 = ssub.s32 64, 64
          %411 = vsyncadd %s405, %s410
          %s412 = smul.addr %s28, 64
          %s413 = scalar_lea.hbm %s1, %s412
          %s415 = sshll.u32 %s408, 4
          %s416 = int_to_ptr.vmem [resolvable:$true] %s415
          %418 = dma.hbm_to_vmem [thread:$0]  %s413, 64, %s416, %s405
        $region56: #{tpu_custom_call.1} parent=47 // pred_fallthru
          _
        // Predicated region
        $region57: #{tpu_custom_call.1} parent=47 // pred_check
          %p419 = pneg %p100
        $region58: #{tpu_custom_call.1} parent=47 // pred_check_branch
          %421 = sbr.rel (%p419) target = $region60
        $region59: #{tpu_custom_call.1} parent=47 // pred_region
          %s422 = sand.u32 %s28, 1
          %s423 = scalar_lea.sflag [#allocation7], %s422
          %s424 = sand.u32 %s90, 1
          %s425 = smul.addr %s424, 4
          %s426 = scalar_lea.vmem [#allocation8], %s425
          %s428 = ssub.s32 64, 64
          %429 = vsyncadd %s423, %s428
          %s430 = smul.addr %s28, 64
          %s431 = scalar_lea.hbm %s2, %s430
          %s433 = sshll.u32 %s426, 4
          %s434 = int_to_ptr.vmem [resolvable:$true] %s433
          %436 = dma.hbm_to_vmem [thread:$0]  %s431, 64, %s434, %s423
        $region60: #{tpu_custom_call.1} parent=47 // pred_fallthru
          _
      $region48: #{tpu_custom_call.1} parent=5 // pred_fallthru
        _
      %p437 = scmp.le.s32.totalorder 1, %s28
      %p438 = scmp.lt.s32.totalorder %s28, 3
      %p439 = pnand %p437, %p438
      %p440 = pneg %p439
      // Predicated region
      $region61: #{tpu_custom_call.1} parent=5 // pred_check
        _
      $region62: #{tpu_custom_call.1} parent=5 // pred_check_branch
        %442 = sbr.rel (%p439) target = $region64
      $region63: #{tpu_custom_call.1} parent=5 // pred_region
        %s443 = ssub.s32 %s28, 1
        %s444 = sand.u32 %s41, 1
        %s445 = scalar_lea.sflag [#allocation4], %s444
        %s446 = sand.u32 %s41, 1
        %s447 = smul.addr %s446, 4
        %s448 = scalar_lea.vmem [#allocation3], %s447
        // Predicated region
        $region65: #{tpu_custom_call.1} parent=63 // pred_check
          %p449 = pneg %p54
        $region66: #{tpu_custom_call.1} parent=63 // pred_check_branch
          %451 = sbr.rel (%p449) target = $region68
        $region67: #{tpu_custom_call.1} parent=63 // pred_region
          %452 = dma.done %s445, 64
        $region68: #{tpu_custom_call.1} parent=63 // pred_fallthru
          _
        %s453 = sand.u32 %s33, 1
        %s454 = scalar_lea.sflag [#allocation7], %s453
        %s455 = sand.u32 %s67, 1
        %s456 = smul.addr %s455, 4
        %s457 = scalar_lea.vmem [#allocation6], %s456
        // Predicated region
        $region69: #{tpu_custom_call.1} parent=63 // pred_check
          %p458 = pneg %p80
        $region70: #{tpu_custom_call.1} parent=63 // pred_check_branch
          %460 = sbr.rel (%p458) target = $region72
        $region71: #{tpu_custom_call.1} parent=63 // pred_region
          %461 = dma.done %s454, 64
        $region72: #{tpu_custom_call.1} parent=63 // pred_fallthru
          _
        %s462 = sand.u32 %s33, 1
        %s463 = scalar_lea.sflag [#allocation7], %s462
        %s464 = sand.u32 %s93, 1
        %s465 = smul.addr %s464, 4
        %s466 = scalar_lea.vmem [#allocation8], %s465
        // Predicated region
        $region73: #{tpu_custom_call.1} parent=63 // pred_check
          %p467 = pneg %p106
        $region74: #{tpu_custom_call.1} parent=63 // pred_check_branch
          %469 = sbr.rel (%p467) target = $region76
        $region75: #{tpu_custom_call.1} parent=63 // pred_region
          %470 = dma.done %s463, 64
        $region76: #{tpu_custom_call.1} parent=63 // pred_fallthru
          _
        // Predicated region
        $region77: #{tpu_custom_call.1} parent=63 // pred_check
          %p471 = pneg %p127
        $region78: #{tpu_custom_call.1} parent=63 // pred_check_branch
          %473 = sbr.rel (%p471) target = $region80
        $region79: #{tpu_custom_call.1} parent=63 // pred_region
          %474 = dma.done [#allocation10], 1024
        $region80: #{tpu_custom_call.1} parent=63 // pred_fallthru
          _
        // Predicated region
        $region81: #{tpu_custom_call.1} parent=63 // pred_check
          %p475 = pneg %p169
        $region82: #{tpu_custom_call.1} parent=63 // pred_check_branch
          %477 = sbr.rel (%p475) target = $region84
        $region83: #{tpu_custom_call.1} parent=63 // pred_region
          %478 = dma.done [#allocation10], 1024
        $region84: #{tpu_custom_call.1} parent=63 // pred_fallthru
          _
        // Predicated region
        $region85: #{tpu_custom_call.1} parent=63 // pred_check
          %p479 = pneg %p211
        $region86: #{tpu_custom_call.1} parent=63 // pred_check_branch
          %481 = sbr.rel (%p479) target = $region88
        $region87: #{tpu_custom_call.1} parent=63 // pred_region
          %482 = dma.done [#allocation13], 1024
        $region88: #{tpu_custom_call.1} parent=63 // pred_fallthru
          _
        // Predicated region
        $region89: #{tpu_custom_call.1} parent=63 // pred_check
          %p483 = pneg %p253
        $region90: #{tpu_custom_call.1} parent=63 // pred_check_branch
          %485 = sbr.rel (%p483) target = $region92
        $region91: #{tpu_custom_call.1} parent=63 // pred_region
          %486 = dma.done [#allocation13], 1024
        $region92: #{tpu_custom_call.1} parent=63 // pred_fallthru
          _
        %s487 = sand.u32 %s41, 1
        %s488 = scalar_lea.sflag [#allocation4], %s487
        %s489 = sand.u32 %s41, 1
        %s490 = smul.addr %s489, 4
        %s491 = scalar_lea.vmem [#allocation3], %s490
        %p492 = pneg %p54
        %p493 = pneg %p51
        %s494 = sand.u32 %s33, 1
        %s495 = scalar_lea.sflag [#allocation7], %s494
        %s496 = sand.u32 %s67, 1
        %s497 = smul.addr %s496, 4
        %s498 = scalar_lea.vmem [#allocation6], %s497
        %p499 = pneg %p80
        %p500 = pneg %p77
        %s501 = sand.u32 %s33, 1
        %s502 = scalar_lea.sflag [#allocation7], %s501
        %s503 = sand.u32 %s93, 1
        %s504 = smul.addr %s503, 4
        %s505 = scalar_lea.vmem [#allocation8], %s504
        %p506 = pneg %p106
        %p507 = pneg %p103
        %p508 = pneg %p127
        %p509 = pneg %p124
        %p510 = pneg %p148
        %p511 = pneg %p145
        %p512 = pneg %p169
        %p513 = pneg %p166
        %p514 = pneg %p190
        %p515 = pneg %p187
        %p516 = pneg %p211
        %p517 = pneg %p208
        %p518 = pneg %p232
        %p519 = pneg %p229
        %p520 = pneg %p253
        %p521 = pneg %p250
        %p522 = pneg %p274
        %p523 = pneg %p271
        %p524 = pneg %p300
        %p525 = pneg %p297
        %s526 = sand.u32 %s287, 1
        %s527 = scalar_lea.sflag [#allocation5], %s526
        %s528 = sand.u32 %s287, 1
        %s529 = smul.addr %s528, 8
        %s530 = scalar_lea.vmem [#allocation15], %s529
        %v532 = vld [vmem:[%s448] sm:$0xf]
        %v533 = vld [vmem:[#allocation9] sm:$0xf]
        %v534 = vld [vmem:[#allocation9 + $0x4] sm:$0xf]
        %v535 = vld [vmem:[#allocation9 + $0x8] sm:$0xf]
        %v536 = vld [vmem:[#allocation9 + $0xc] sm:$0xf]
        %v537 = vld [vmem:[#allocation9 + $0x10] sm:$0xf]
        %v538 = vld [vmem:[#allocation9 + $0x14] sm:$0xf]
        %v539 = vld [vmem:[#allocation9 + $0x18] sm:$0xf]
        %v540 = vld [vmem:[#allocation9 + $0x1c] sm:$0xf]
        %v541 = vld [vmem:[#allocation9 + $0x20] sm:$0xf]
        %v542 = vld [vmem:[#allocation9 + $0x24] sm:$0xf]
        %v543 = vld [vmem:[#allocation9 + $0x28] sm:$0xf]
        %v544 = vld [vmem:[#allocation9 + $0x2c] sm:$0xf]
        %v545 = vld [vmem:[#allocation9 + $0x30] sm:$0xf]
        %v546 = vld [vmem:[#allocation9 + $0x34] sm:$0xf]
        %v547 = vld [vmem:[#allocation9 + $0x38] sm:$0xf]
        %v548 = vld [vmem:[#allocation9 + $0x3c] sm:$0xf]
        %v549 = vld [vmem:[%s4] sm:$0x1]
        %v551 = vlaneseq
        %v552 = vshrl.u32 %v551, 7
        %v553 = vsub.s32 0, %v552
        %v554 = vrot.slane %v549, %v553
        %v572 = vunpack.c.l.b16 %v533
        %v573 = vunpack.c.l.b16 %v534
        %v574 = vunpack.c.l.b16 %v535
        %v575 = vunpack.c.l.b16 %v536
        %v576 = vunpack.c.l.b16 %v537
        %v577 = vunpack.c.l.b16 %v538
        %v578 = vunpack.c.l.b16 %v539
        %v579 = vunpack.c.l.b16 %v540
        %v580 = vunpack.c.l.b16 %v541
        %v581 = vunpack.c.l.b16 %v542
        %v582 = vunpack.c.l.b16 %v543
        %v583 = vunpack.c.l.b16 %v544
        %v584 = vunpack.c.l.b16 %v545
        %v585 = vunpack.c.l.b16 %v546
        %v586 = vunpack.c.l.b16 %v547
        %v587 = vunpack.c.l.b16 %v548
        %v588 = vpack.c.b16 %v573, %v572
        %v589 = vpack.c.b16 %v575, %v574
        %v590 = vpack.c.b16 %v577, %v576
        %v591 = vpack.c.b16 %v579, %v578
        %v592 = vpack.c.b16 %v581, %v580
        %v593 = vpack.c.b16 %v583, %v582
        %v594 = vpack.c.b16 %v585, %v584
        %v595 = vpack.c.b16 %v587, %v586
        %604 = vmatprep.subr.bf16.mxu0 0
        %605 = vmatpush1.bf16.msra.mxu0 %v588
        %606 = vmatprep.subr.bf16.mxu0 0
        %607 = vmatpush1.bf16.msra.mxu0 %v589
        %608 = vmatprep.subr.bf16.mxu0 0
        %609 = vmatpush1.bf16.msra.mxu0 %v590
        %610 = vmatprep.subr.bf16.mxu0 0
        %611 = vmatpush1.bf16.msra.mxu0 %v591
        %612 = vmatprep.subr.bf16.mxu0 0
        %613 = vmatpush1.bf16.msra.mxu0 %v592
        %614 = vmatprep.subr.bf16.mxu0 0
        %615 = vmatpush1.bf16.msra.mxu0 %v593
        %616 = vmatprep.subr.bf16.mxu0 0
        %617 = vmatpush1.bf16.msra.mxu0 %v594
        %618 = vmatprep.subr.bf16.mxu0 0
        %619 = vmatpush1.bf16.msra.mxu0 %v595
        %620 = vmatprep.subr.bf16.mxu0 0
        %621 = vmatpush1.bf16.msra.mxu0 0
        %622 = vmatprep.subr.bf16.mxu0 0
        %623 = vmatpush1.bf16.msra.mxu0 0
        %624 = vmatprep.subr.bf16.mxu0 0
        %625 = vmatpush1.bf16.msra.mxu0 0
        %626 = vmatprep.subr.bf16.mxu0 0
        %627 = vmatpush1.bf16.msra.mxu0 0
        %628 = vmatprep.subr.bf16.mxu0 0
        %629 = vmatpush1.bf16.msra.mxu0 0
        %630 = vmatprep.subr.bf16.mxu0 0
        %631 = vmatpush1.bf16.msra.mxu0 0
        %632 = vmatprep.subr.bf16.mxu0 0
        %633 = vmatpush1.bf16.msra.mxu0 0
        %634 = vmatprep.subr.bf16.mxu0 0
        %635 = vmatpush1.bf16.msra.mxu0 0
        %636 = vmatprep.mubr.bf16.mxu0 0
        %637 = vmatmul.mubr.bf16.gmra.mrb[0].mxu0 %v532
        %v638 = vpop.f32.mrb[0].mxu0
        %v639 = vadd.f32 %v554, %v638
        %v640 = vpop.f32.mrb[0].mxu0
        %v641 = vpop.f32.mrb[0].mxu0
        %v642 = vpop.f32.mrb[0].mxu0
        %643 = vdwg.mxu0
        %v644 = vpack.c.bf16 %v639, %v639
        %v645 = vld [vmem:[%s457] sm:$0xf]
        %v646 = vld [vmem:[#allocation11] sm:$0xf]
        %v647 = vld [vmem:[#allocation11 + $0x4] sm:$0xf]
        %v648 = vld [vmem:[#allocation11 + $0x8] sm:$0xf]
        %v649 = vld [vmem:[#allocation11 + $0xc] sm:$0xf]
        %v650 = vld [vmem:[#allocation11 + $0x10] sm:$0xf]
        %v651 = vld [vmem:[#allocation11 + $0x14] sm:$0xf]
        %v652 = vld [vmem:[#allocation11 + $0x18] sm:$0xf]
        %v653 = vld [vmem:[#allocation11 + $0x1c] sm:$0xf]
        %v654 = vld [vmem:[#allocation11 + $0x20] sm:$0xf]
        %v655 = vld [vmem:[#allocation11 + $0x24] sm:$0xf]
        %v656 = vld [vmem:[#allocation11 + $0x28] sm:$0xf]
        %v657 = vld [vmem:[#allocation11 + $0x2c] sm:$0xf]
        %v658 = vld [vmem:[#allocation11 + $0x30] sm:$0xf]
        %v659 = vld [vmem:[#allocation11 + $0x34] sm:$0xf]
        %v660 = vld [vmem:[#allocation11 + $0x38] sm:$0xf]
        %v661 = vld [vmem:[#allocation11 + $0x3c] sm:$0xf]
        %v662 = vld [vmem:[%s6] sm:$0x1]
        %v664 = vlaneseq
        %v665 = vshrl.u32 %v664, 7
        %v666 = vsub.s32 0, %v665
        %v667 = vrot.slane %v662, %v666
        %v685 = vunpack.c.l.b16 %v646
        %v686 = vunpack.c.l.b16 %v647
        %v687 = vunpack.c.l.b16 %v648
        %v688 = vunpack.c.l.b16 %v649
        %v689 = vunpack.c.l.b16 %v650
        %v690 = vunpack.c.l.b16 %v651
        %v691 = vunpack.c.l.b16 %v652
        %v692 = vunpack.c.l.b16 %v653
        %v693 = vunpack.c.l.b16 %v654
        %v694 = vunpack.c.l.b16 %v655
        %v695 = vunpack.c.l.b16 %v656
        %v696 = vunpack.c.l.b16 %v657
        %v697 = vunpack.c.l.b16 %v658
        %v698 = vunpack.c.l.b16 %v659
        %v699 = vunpack.c.l.b16 %v660
        %v700 = vunpack.c.l.b16 %v661
        %v701 = vpack.c.b16 %v686, %v685
        %v702 = vpack.c.b16 %v688, %v687
        %v703 = vpack.c.b16 %v690, %v689
        %v704 = vpack.c.b16 %v692, %v691
        %v705 = vpack.c.b16 %v694, %v693
        %v706 = vpack.c.b16 %v696, %v695
        %v707 = vpack.c.b16 %v698, %v697
        %v708 = vpack.c.b16 %v700, %v699
        %717 = vmatprep.subr.bf16.mxu0 0
        %718 = vmatpush1.bf16.msra.mxu0 %v701
        %719 = vmatprep.subr.bf16.mxu0 0
        %720 = vmatpush1.bf16.msra.mxu0 %v702
        %721 = vmatprep.subr.bf16.mxu0 0
        %722 = vmatpush1.bf16.msra.mxu0 %v703
        %723 = vmatprep.subr.bf16.mxu0 0
        %724 = vmatpush1.bf16.msra.mxu0 %v704
        %725 = vmatprep.subr.bf16.mxu0 0
        %726 = vmatpush1.bf16.msra.mxu0 %v705
        %727 = vmatprep.subr.bf16.mxu0 0
        %728 = vmatpush1.bf16.msra.mxu0 %v706
        %729 = vmatprep.subr.bf16.mxu0 0
        %730 = vmatpush1.bf16.msra.mxu0 %v707
        %731 = vmatprep.subr.bf16.mxu0 0
        %732 = vmatpush1.bf16.msra.mxu0 %v708
        %733 = vmatprep.subr.bf16.mxu0 0
        %734 = vmatpush1.bf16.msra.mxu0 0
        %735 = vmatprep.subr.bf16.mxu0 0
        %736 = vmatpush1.bf16.msra.mxu0 0
        %737 = vmatprep.subr.bf16.mxu0 0
        %738 = vmatpush1.bf16.msra.mxu0 0
        %739 = vmatprep.subr.bf16.mxu0 0
        %740 = vmatpush1.bf16.msra.mxu0 0
        %741 = vmatprep.subr.bf16.mxu0 0
        %742 = vmatpush1.bf16.msra.mxu0 0
        %743 = vmatprep.subr.bf16.mxu0 0
        %744 = vmatpush1.bf16.msra.mxu0 0
        %745 = vmatprep.subr.bf16.mxu0 0
        %746 = vmatpush1.bf16.msra.mxu0 0
        %747 = vmatprep.subr.bf16.mxu0 0
        %748 = vmatpush1.bf16.msra.mxu0 0
        %749 = vmatprep.mubr.bf16.mxu0 0
        %750 = vmatmul.mubr.bf16.gmra.mrb[0].mxu0 %v645
        %v751 = vpop.f32.mrb[0].mxu0
        %v752 = vadd.f32 %v667, %v751
        %v753 = vpop.f32.mrb[0].mxu0
        %v754 = vpop.f32.mrb[0].mxu0
        %v755 = vpop.f32.mrb[0].mxu0
        %756 = vdwg.mxu0
        %v757 = vpack.c.bf16 %v752, %v752
        %v758 = vld [vmem:[%s466] sm:$0xf]
        %v759 = vld [vmem:[#allocation12] sm:$0xf]
        %v760 = vld [vmem:[#allocation12 + $0x4] sm:$0xf]
        %v761 = vld [vmem:[#allocation12 + $0x8] sm:$0xf]
        %v762 = vld [vmem:[#allocation12 + $0xc] sm:$0xf]
        %v763 = vld [vmem:[#allocation12 + $0x10] sm:$0xf]
        %v764 = vld [vmem:[#allocation12 + $0x14] sm:$0xf]
        %v765 = vld [vmem:[#allocation12 + $0x18] sm:$0xf]
        %v766 = vld [vmem:[#allocation12 + $0x1c] sm:$0xf]
        %v767 = vld [vmem:[#allocation12 + $0x20] sm:$0xf]
        %v768 = vld [vmem:[#allocation12 + $0x24] sm:$0xf]
        %v769 = vld [vmem:[#allocation12 + $0x28] sm:$0xf]
        %v770 = vld [vmem:[#allocation12 + $0x2c] sm:$0xf]
        %v771 = vld [vmem:[#allocation12 + $0x30] sm:$0xf]
        %v772 = vld [vmem:[#allocation12 + $0x34] sm:$0xf]
        %v773 = vld [vmem:[#allocation12 + $0x38] sm:$0xf]
        %v774 = vld [vmem:[#allocation12 + $0x3c] sm:$0xf]
        %v775 = vld [vmem:[%s8] sm:$0x1]
        %v777 = vlaneseq
        %v778 = vshrl.u32 %v777, 7
        %v779 = vsub.s32 0, %v778
        %v780 = vrot.slane %v775, %v779
        %v798 = vunpack.c.l.b16 %v759
        %v799 = vunpack.c.l.b16 %v760
        %v800 = vunpack.c.l.b16 %v761
        %v801 = vunpack.c.l.b16 %v762
        %v802 = vunpack.c.l.b16 %v763
        %v803 = vunpack.c.l.b16 %v764
        %v804 = vunpack.c.l.b16 %v765
        %v805 = vunpack.c.l.b16 %v766
        %v806 = vunpack.c.l.b16 %v767
        %v807 = vunpack.c.l.b16 %v768
        %v808 = vunpack.c.l.b16 %v769
        %v809 = vunpack.c.l.b16 %v770
        %v810 = vunpack.c.l.b16 %v771
        %v811 = vunpack.c.l.b16 %v772
        %v812 = vunpack.c.l.b16 %v773
        %v813 = vunpack.c.l.b16 %v774
        %v814 = vpack.c.b16 %v799, %v798
        %v815 = vpack.c.b16 %v801, %v800
        %v816 = vpack.c.b16 %v803, %v802
        %v817 = vpack.c.b16 %v805, %v804
        %v818 = vpack.c.b16 %v807, %v806
        %v819 = vpack.c.b16 %v809, %v808
        %v820 = vpack.c.b16 %v811, %v810
        %v821 = vpack.c.b16 %v813, %v812
        %830 = vmatprep.subr.bf16.mxu0 0
        %831 = vmatpush1.bf16.msra.mxu0 %v814
        %832 = vmatprep.subr.bf16.mxu0 0
        %833 = vmatpush1.bf16.msra.mxu0 %v815
        %834 = vmatprep.subr.bf16.mxu0 0
        %835 = vmatpush1.bf16.msra.mxu0 %v816
        %836 = vmatprep.subr.bf16.mxu0 0
        %837 = vmatpush1.bf16.msra.mxu0 %v817
        %838 = vmatprep.subr.bf16.mxu0 0
        %839 = vmatpush1.bf16.msra.mxu0 %v818
        %840 = vmatprep.subr.bf16.mxu0 0
        %841 = vmatpush1.bf16.msra.mxu0 %v819
        %842 = vmatprep.subr.bf16.mxu0 0
        %843 = vmatpush1.bf16.msra.mxu0 %v820
        %844 = vmatprep.subr.bf16.mxu0 0
        %845 = vmatpush1.bf16.msra.mxu0 %v821
        %846 = vmatprep.subr.bf16.mxu0 0
        %847 = vmatpush1.bf16.msra.mxu0 0
        %848 = vmatprep.subr.bf16.mxu0 0
        %849 = vmatpush1.bf16.msra.mxu0 0
        %850 = vmatprep.subr.bf16.mxu0 0
        %851 = vmatpush1.bf16.msra.mxu0 0
        %852 = vmatprep.subr.bf16.mxu0 0
        %853 = vmatpush1.bf16.msra.mxu0 0
        %854 = vmatprep.subr.bf16.mxu0 0
        %855 = vmatpush1.bf16.msra.mxu0 0
        %856 = vmatprep.subr.bf16.mxu0 0
        %857 = vmatpush1.bf16.msra.mxu0 0
        %858 = vmatprep.subr.bf16.mxu0 0
        %859 = vmatpush1.bf16.msra.mxu0 0
        %860 = vmatprep.subr.bf16.mxu0 0
        %861 = vmatpush1.bf16.msra.mxu0 0
        %862 = vmatprep.mubr.bf16.mxu0 0
        %863 = vmatmul.mubr.bf16.gmra.mrb[0].mxu0 %v758
        %v864 = vpop.f32.mrb[0].mxu0
        %v865 = vadd.f32 %v780, %v864
        %v866 = vpop.f32.mrb[0].mxu0
        %v867 = vpop.f32.mrb[0].mxu0
        %v868 = vpop.f32.mrb[0].mxu0
        %869 = vdwg.mxu0
        %v870 = vpack.c.bf16 %v865, %v865
        %vm871 = vcmask 261120
        %v873 = vsel %vm871, %v644, 0
        %v876 = vsel %vm871, %v757, 0
        %878 = vmatprep.subr.bf16.mxu0 0
        %879 = vmatpush1.bf16.xpose.msra.mxu0 %v876
        %880 = vmatprep.subr.bf16.mxu0 0
        %881 = vmatpush1.bf16.xpose.msra.mxu0 0
        %882 = vmatprep.subr.bf16.mxu0 0
        %883 = vmatpush1.bf16.xpose.msra.mxu0 0
        %884 = vmatprep.subr.bf16.mxu0 0
        %885 = vmatpush1.bf16.xpose.msra.mxu0 0
        %886 = vmatprep.subr.bf16.mxu0 0
        %887 = vmatpush1.bf16.xpose.msra.mxu0 0
        %888 = vmatprep.subr.bf16.mxu0 0
        %889 = vmatpush1.bf16.xpose.msra.mxu0 0
        %890 = vmatprep.subr.bf16.mxu0 0
        %891 = vmatpush1.bf16.xpose.msra.mxu0 0
        %892 = vmatprep.subr.bf16.mxu0 0
        %893 = vmatpush1.bf16.xpose.msra.mxu0 0
        %894 = vmatprep.subr.bf16.mxu0 0
        %895 = vmatpush1.bf16.xpose.msra.mxu0 0
        %896 = vmatprep.subr.bf16.mxu0 0
        %897 = vmatpush1.bf16.xpose.msra.mxu0 0
        %898 = vmatprep.subr.bf16.mxu0 0
        %899 = vmatpush1.bf16.xpose.msra.mxu0 0
        %900 = vmatprep.subr.bf16.mxu0 0
        %901 = vmatpush1.bf16.xpose.msra.mxu0 0
        %902 = vmatprep.subr.bf16.mxu0 0
        %903 = vmatpush1.bf16.xpose.msra.mxu0 0
        %904 = vmatprep.subr.bf16.mxu0 0
        %905 = vmatpush1.bf16.xpose.msra.mxu0 0
        %906 = vmatprep.subr.bf16.mxu0 0
        %907 = vmatpush1.bf16.xpose.msra.mxu0 0
        %908 = vmatprep.subr.bf16.mxu0 0
        %909 = vmatpush1.bf16.xpose.msra.mxu0 0
        %910 = vmatprep.mubr.bf16.mxu0 0
        %911 = vmatmul.mubr.bf16.gmra.mrb[0].mxu0 %v873
        %v912 = vpop.f32.mrb[0].mxu0
        %v913 = vadd.f32 0.0, %v912
        %v914 = vpop.f32.mrb[0].mxu0
        %v915 = vpop.f32.mrb[0].mxu0
        %v916 = vpop.f32.mrb[0].mxu0
        %917 = vdwg.mxu0
        %vm918 = vcmask 64512
        %v919 = vsel %vm918, %v913, -inf
        %920 = vmax.xlane.f32.xlu0 %v919
        %v921 = vpop.xlane.xlu0 %920
        %v922 = vsub.f32 %v913, %v921
        %v923 = vmul.f32 %v922, 1.442695
        %v924 = vpow.pop %v923
        %v925 = vsel %vm918, %v924, 0.0
        %926 = vadd.xlane.f32.xlu0 %v925
        %v927 = vpop.xlane.xlu0 %926
        %v928 = vpack.c.bf16 %v924, %v924
        %v930 = vsel %vm918, %v928, 0
        %vm932 = vcmask 1043456
        %v934 = vsel %vm932, %v870, 0
        %936 = vmatprep.subr.bf16.mxu0 0
        %937 = vmatpush1.bf16.msra.mxu0 %v934
        %938 = vmatprep.subr.bf16.mxu0 0
        %939 = vmatpush1.bf16.msra.mxu0 0
        %940 = vmatprep.subr.bf16.mxu0 0
        %941 = vmatpush1.bf16.msra.mxu0 0
        %942 = vmatprep.subr.bf16.mxu0 0
        %943 = vmatpush1.bf16.msra.mxu0 0
        %944 = vmatprep.subr.bf16.mxu0 0
        %945 = vmatpush1.bf16.msra.mxu0 0
        %946 = vmatprep.subr.bf16.mxu0 0
        %947 = vmatpush1.bf16.msra.mxu0 0
        %948 = vmatprep.subr.bf16.mxu0 0
        %949 = vmatpush1.bf16.msra.mxu0 0
        %950 = vmatprep.subr.bf16.mxu0 0
        %951 = vmatpush1.bf16.msra.mxu0 0
        %952 = vmatprep.subr.bf16.mxu0 0
        %953 = vmatpush1.bf16.msra.mxu0 0
        %954 = vmatprep.subr.bf16.mxu0 0
        %955 = vmatpush1.bf16.msra.mxu0 0
        %956 = vmatprep.subr.bf16.mxu0 0
        %957 = vmatpush1.bf16.msra.mxu0 0
        %958 = vmatprep.subr.bf16.mxu0 0
        %959 = vmatpush1.bf16.msra.mxu0 0
        %960 = vmatprep.subr.bf16.mxu0 0
        %961 = vmatpush1.bf16.msra.mxu0 0
        %962 = vmatprep.subr.bf16.mxu0 0
        %963 = vmatpush1.bf16.msra.mxu0 0
        %964 = vmatprep.subr.bf16.mxu0 0
        %965 = vmatpush1.bf16.msra.mxu0 0
        %966 = vmatprep.subr.bf16.mxu0 0
        %967 = vmatpush1.bf16.msra.mxu0 0
        %968 = vmatprep.mubr.bf16.mxu0 0
        %969 = vmatmul.mubr.bf16.gmra.mrb[0].mxu0 %v930
        %v970 = vpop.f32.mrb[0].mxu0
        %v971 = vadd.f32 0.0, %v970
        %v972 = vpop.f32.mrb[0].mxu0
        %v973 = vpop.f32.mrb[0].mxu0
        %v974 = vpop.f32.mrb[0].mxu0
        %975 = vdwg.mxu0
        %v976 = vrcp.pop %v927
        %v977 = vmul.f32 %v971, %v976
        %v978 = vpack.c.bf16 %v977, %v977
        %vm979 = vcmask 257024
        %980 = vst.msk [vmem:[#allocation2] sm:$0xf] %vm979, %v978
        %982 = vrot.lane.b32.xlu0 %v644, 96
        %v983 = vpop.permute.xlu0 %982
        %985 = vrot.lane.b32.xlu0 %v757, 96
        %v986 = vpop.permute.xlu0 %985
        %v988 = vsel %vm871, %v983, 0
        %v991 = vsel %vm871, %v986, 0
        %993 = vmatprep.subr.bf16.mxu0 0
        %994 = vmatpush1.bf16.xpose.msra.mxu0 %v991
        %995 = vmatprep.subr.bf16.mxu0 0
        %996 = vmatpush1.bf16.xpose.msra.mxu0 0
        %997 = vmatprep.subr.bf16.mxu0 0
        %998 = vmatpush1.bf16.xpose.msra.mxu0 0
        %999 = vmatprep.subr.bf16.mxu0 0
        %1000 = vmatpush1.bf16.xpose.msra.mxu0 0
        %1001 = vmatprep.subr.bf16.mxu0 0
        %1002 = vmatpush1.bf16.xpose.msra.mxu0 0
        %1003 = vmatprep.subr.bf16.mxu0 0
        %1004 = vmatpush1.bf16.xpose.msra.mxu0 0
        %1005 = vmatprep.subr.bf16.mxu0 0
        %1006 = vmatpush1.bf16.xpose.msra.mxu0 0
        %1007 = vmatprep.subr.bf16.mxu0 0
        %1008 = vmatpush1.bf16.xpose.msra.mxu0 0
        %1009 = vmatprep.subr.bf16.mxu0 0
        %1010 = vmatpush1.bf16.xpose.msra.mxu0 0
        %1011 = vmatprep.subr.bf16.mxu0 0
        %1012 = vmatpush1.bf16.xpose.msra.mxu0 0
        %1013 = vmatprep.subr.bf16.mxu0 0
        %1014 = vmatpush1.bf16.xpose.msra.mxu0 0
        %1015 = vmatprep.subr.bf16.mxu0 0
        %1016 = vmatpush1.bf16.xpose.msra.mxu0 0
        %1017 = vmatprep.subr.bf16.mxu0 0
        %1018 = vmatpush1.bf16.xpose.msra.mxu0 0
        %1019 = vmatprep.subr.bf16.mxu0 0
        %1020 = vmatpush1.bf16.xpose.msra.mxu0 0
        %1021 = vmatprep.subr.bf16.mxu0 0
        %1022 = vmatpush1.bf16.xpose.msra.mxu0 0
        %1023 = vmatprep.subr.bf16.mxu0 0
        %1024 = vmatpush1.bf16.xpose.msra.mxu0 0
        %1025 = vmatprep.mubr.bf16.mxu0 0
        %1026 = vmatmul.mubr.bf16.gmra.mrb[0].mxu0 %v988
        %v1027 = vpop.f32.mrb[0].mxu0
        %v1028 = vadd.f32 0.0, %v1027
        %v1029 = vpop.f32.mrb[0].mxu0
        %v1030 = vpop.f32.mrb[0].mxu0
        %v1031 = vpop.f32.mrb[0].mxu0
        %1032 = vdwg.mxu0
        %v1033 = vsel %vm918, %v1028, -inf
        %1034 = vmax.xlane.f32.xlu0 %v1033
        %v1035 = vpop.xlane.xlu0 %1034
        %v1036 = vsub.f32 %v1028, %v1035
        %v1037 = vmul.f32 %v1036, 1.442695
        %v1038 = vpow.pop %v1037
        %v1039 = vsel %vm918, %v1038, 0.0
        %1040 = vadd.xlane.f32.xlu0 %v1039
        %v1041 = vpop.xlane.xlu0 %1040
        %v1042 = vpack.c.bf16 %v1038, %v1038
        %1044 = vrot.lane.b32.xlu0 %v870, 96
        %v1045 = vpop.permute.xlu0 %1044
        %v1047 = vsel %vm918, %v1042, 0
        %v1050 = vsel %vm932, %v1045, 0
        %1052 = vmatprep.subr.bf16.mxu0 0
        %1053 = vmatpush1.bf16.msra.mxu0 %v1050
        %1054 = vmatprep.subr.bf16.mxu0 0
        %1055 = vmatpush1.bf16.msra.mxu0 0
        %1056 = vmatprep.subr.bf16.mxu0 0
        %1057 = vmatpush1.bf16.msra.mxu0 0
        %1058 = vmatprep.subr.bf16.mxu0 0
        %1059 = vmatpush1.bf16.msra.mxu0 0
        %1060 = vmatprep.subr.bf16.mxu0 0
        %1061 = vmatpush1.bf16.msra.mxu0 0
        %1062 = vmatprep.subr.bf16.mxu0 0
        %1063 = vmatpush1.bf16.msra.mxu0 0
        %1064 = vmatprep.subr.bf16.mxu0 0
        %1065 = vmatpush1.bf16.msra.mxu0 0
        %1066 = vmatprep.subr.bf16.mxu0 0
        %1067 = vmatpush1.bf16.msra.mxu0 0
        %1068 = vmatprep.subr.bf16.mxu0 0
        %1069 = vmatpush1.bf16.msra.mxu0 0
        %1070 = vmatprep.subr.bf16.mxu0 0
        %1071 = vmatpush1.bf16.msra.mxu0 0
        %1072 = vmatprep.subr.bf16.mxu0 0
        %1073 = vmatpush1.bf16.msra.mxu0 0
        %1074 = vmatprep.subr.bf16.mxu0 0
        %1075 = vmatpush1.bf16.msra.mxu0 0
        %1076 = vmatprep.subr.bf16.mxu0 0
        %1077 = vmatpush1.bf16.msra.mxu0 0
        %1078 = vmatprep.subr.bf16.mxu0 0
        %1079 = vmatpush1.bf16.msra.mxu0 0
        %1080 = vmatprep.subr.bf16.mxu0 0
        %1081 = vmatpush1.bf16.msra.mxu0 0
        %1082 = vmatprep.subr.bf16.mxu0 0
        %1083 = vmatpush1.bf16.msra.mxu0 0
        %1084 = vmatprep.mubr.bf16.mxu0 0
        %1085 = vmatmul.mubr.bf16.gmra.mrb[0].mxu0 %v1047
        %v1086 = vpop.f32.mrb[0].mxu0
        %v1087 = vadd.f32 0.0, %v1086
        %v1088 = vpop.f32.mrb[0].mxu0
        %v1089 = vpop.f32.mrb[0].mxu0
        %v1090 = vpop.f32.mrb[0].mxu0
        %1091 = vdwg.mxu0
        %v1092 = vrcp.pop %v1041
        %v1093 = vmul.f32 %v1087, %v1092
        %v1094 = vpack.c.bf16 %v1093, %v1093
        %v1096 = vunpack.c.l.b16 %v1094
        %v1097 = vpack.c.b16 %v1096, %v1096
        %1098 = vrot.lane.b32.xlu0 %v1097, 32
        %v1099 = vpop.permute.xlu0 %1098
        %vm1101 = vcmask 519424
        %1102 = vst.msk [vmem:[#allocation2] sm:$0xf] %vm1101, %v1099
        %1103 = vrot.lane.b32.xlu0 %v644, 64
        %v1104 = vpop.permute.xlu0 %1103
        %1105 = vrot.lane.b32.xlu0 %v757, 64
        %v1106 = vpop.permute.xlu0 %1105
        %v1108 = vsel %vm871, %v1104, 0
        %v1111 = vsel %vm871, %v1106, 0
        %1113 = vmatprep.subr.bf16.mxu0 0
        %1114 = vmatpush1.bf16.xpose.msra.mxu0 %v1111
        %1115 = vmatprep.subr.bf16.mxu0 0
        %1116 = vmatpush1.bf16.xpose.msra.mxu0 0
        %1117 = vmatprep.subr.bf16.mxu0 0
        %1118 = vmatpush1.bf16.xpose.msra.mxu0 0
        %1119 = vmatprep.subr.bf16.mxu0 0
        %1120 = vmatpush1.bf16.xpose.msra.mxu0 0
        %1121 = vmatprep.subr.bf16.mxu0 0
        %1122 = vmatpush1.bf16.xpose.msra.mxu0 0
        %1123 = vmatprep.subr.bf16.mxu0 0
        %1124 = vmatpush1.bf16.xpose.msra.mxu0 0
        %1125 = vmatprep.subr.bf16.mxu0 0
        %1126 = vmatpush1.bf16.xpose.msra.mxu0 0
        %1127 = vmatprep.subr.bf16.mxu0 0
        %1128 = vmatpush1.bf16.xpose.msra.mxu0 0
        %1129 = vmatprep.subr.bf16.mxu0 0
        %1130 = vmatpush1.bf16.xpose.msra.mxu0 0
        %1131 = vmatprep.subr.bf16.mxu0 0
        %1132 = vmatpush1.bf16.xpose.msra.mxu0 0
        %1133 = vmatprep.subr.bf16.mxu0 0
        %1134 = vmatpush1.bf16.xpose.msra.mxu0 0
        %1135 = vmatprep.subr.bf16.mxu0 0
        %1136 = vmatpush1.bf16.xpose.msra.mxu0 0
        %1137 = vmatprep.subr.bf16.mxu0 0
        %1138 = vmatpush1.bf16.xpose.msra.mxu0 0
        %1139 = vmatprep.subr.bf16.mxu0 0
        %1140 = vmatpush1.bf16.xpose.msra.mxu0 0
        %1141 = vmatprep.subr.bf16.mxu0 0
        %1142 = vmatpush1.bf16.xpose.msra.mxu0 0
        %1143 = vmatprep.subr.bf16.mxu0 0
        %1144 = vmatpush1.bf16.xpose.msra.mxu0 0
        %1145 = vmatprep.mubr.bf16.mxu0 0
        %1146 = vmatmul.mubr.bf16.gmra.mrb[0].mxu0 %v1108
        %v1147 = vpop.f32.mrb[0].mxu0
        %v1148 = vadd.f32 0.0, %v1147
        %v1149 = vpop.f32.mrb[0].mxu0
        %v1150 = vpop.f32.mrb[0].mxu0
        %v1151 = vpop.f32.mrb[0].mxu0
        %1152 = vdwg.mxu0
        %v1153 = vsel %vm918, %v1148, -inf
        %1154 = vmax.xlane.f32.xlu0 %v1153
        %v1155 = vpop.xlane.xlu0 %1154
        %v1156 = vsub.f32 %v1148, %v1155
        %v1157 = vmul.f32 %v1156, 1.442695
        %v1158 = vpow.pop %v1157
        %v1159 = vsel %vm918, %v1158, 0.0
        %1160 = vadd.xlane.f32.xlu0 %v1159
        %v1161 = vpop.xlane.xlu0 %1160
        %v1162 = vpack.c.bf16 %v1158, %v1158
        %1163 = vrot.lane.b32.xlu0 %v870, 64
        %v1164 = vpop.permute.xlu0 %1163
        %v1166 = vsel %vm918, %v1162, 0
        %v1169 = vsel %vm932, %v1164, 0
        %1171 = vmatprep.subr.bf16.mxu0 0
        %1172 = vmatpush1.bf16.msra.mxu0 %v1169
        %1173 = vmatprep.subr.bf16.mxu0 0
        %1174 = vmatpush1.bf16.msra.mxu0 0
        %1175 = vmatprep.subr.bf16.mxu0 0
        %1176 = vmatpush1.bf16.msra.mxu0 0
        %1177 = vmatprep.subr.bf16.mxu0 0
        %1178 = vmatpush1.bf16.msra.mxu0 0
        %1179 = vmatprep.subr.bf16.mxu0 0
        %1180 = vmatpush1.bf16.msra.mxu0 0
        %1181 = vmatprep.subr.bf16.mxu0 0
        %1182 = vmatpush1.bf16.msra.mxu0 0
        %1183 = vmatprep.subr.bf16.mxu0 0
        %1184 = vmatpush1.bf16.msra.mxu0 0
        %1185 = vmatprep.subr.bf16.mxu0 0
        %1186 = vmatpush1.bf16.msra.mxu0 0
        %1187 = vmatprep.subr.bf16.mxu0 0
        %1188 = vmatpush1.bf16.msra.mxu0 0
        %1189 = vmatprep.subr.bf16.mxu0 0
        %1190 = vmatpush1.bf16.msra.mxu0 0
        %1191 = vmatprep.subr.bf16.mxu0 0
        %1192 = vmatpush1.bf16.msra.mxu0 0
        %1193 = vmatprep.subr.bf16.mxu0 0
        %1194 = vmatpush1.bf16.msra.mxu0 0
        %1195 = vmatprep.subr.bf16.mxu0 0
        %1196 = vmatpush1.bf16.msra.mxu0 0
        %1197 = vmatprep.subr.bf16.mxu0 0
        %1198 = vmatpush1.bf16.msra.mxu0 0
        %1199 = vmatprep.subr.bf16.mxu0 0
        %1200 = vmatpush1.bf16.msra.mxu0 0
        %1201 = vmatprep.subr.bf16.mxu0 0
        %1202 = vmatpush1.bf16.msra.mxu0 0
        %1203 = vmatprep.mubr.bf16.mxu0 0
        %1204 = vmatmul.mubr.bf16.gmra.mrb[0].mxu0 %v1166
        %v1205 = vpop.f32.mrb[0].mxu0
        %v1206 = vadd.f32 0.0, %v1205
        %v1207 = vpop.f32.mrb[0].mxu0
        %v1208 = vpop.f32.mrb[0].mxu0
        %v1209 = vpop.f32.mrb[0].mxu0
        %1210 = vdwg.mxu0
        %v1211 = vrcp.pop %v1161
        %v1212 = vmul.f32 %v1206, %v1211
        %v1213 = vpack.c.bf16 %v1212, %v1212
        %v1215 = vunpack.c.l.b16 %v1213
        %v1216 = vpack.c.b16 %v1215, %v1215
        %1217 = vrot.lane.b32.xlu0 %v1216, 64
        %v1218 = vpop.permute.xlu0 %1217
        %vm1220 = vcmask 781824
        %1221 = vst.msk [vmem:[#allocation2] sm:$0xf] %vm1220, %v1218
        %1222 = vrot.lane.b32.xlu0 %v644, 32
        %v1223 = vpop.permute.xlu0 %1222
        %1224 = vrot.lane.b32.xlu0 %v757, 32
        %v1225 = vpop.permute.xlu0 %1224
        %v1227 = vsel %vm871, %v1223, 0
        %v1230 = vsel %vm871, %v1225, 0
        %1232 = vmatprep.subr.bf16.mxu0 0
        %1233 = vmatpush1.bf16.xpose.msra.mxu0 %v1230
        %1234 = vmatprep.subr.bf16.mxu0 0
        %1235 = vmatpush1.bf16.xpose.msra.mxu0 0
        %1236 = vmatprep.subr.bf16.mxu0 0
        %1237 = vmatpush1.bf16.xpose.msra.mxu0 0
        %1238 = vmatprep.subr.bf16.mxu0 0
        %1239 = vmatpush1.bf16.xpose.msra.mxu0 0
        %1240 = vmatprep.subr.bf16.mxu0 0
        %1241 = vmatpush1.bf16.xpose.msra.mxu0 0
        %1242 = vmatprep.subr.bf16.mxu0 0
        %1243 = vmatpush1.bf16.xpose.msra.mxu0 0
        %1244 = vmatprep.subr.bf16.mxu0 0
        %1245 = vmatpush1.bf16.xpose.msra.mxu0 0
        %1246 = vmatprep.subr.bf16.mxu0 0
        %1247 = vmatpush1.bf16.xpose.msra.mxu0 0
        %1248 = vmatprep.subr.bf16.mxu0 0
        %1249 = vmatpush1.bf16.xpose.msra.mxu0 0
        %1250 = vmatprep.subr.bf16.mxu0 0
        %1251 = vmatpush1.bf16.xpose.msra.mxu0 0
        %1252 = vmatprep.subr.bf16.mxu0 0
        %1253 = vmatpush1.bf16.xpose.msra.mxu0 0
        %1254 = vmatprep.subr.bf16.mxu0 0
        %1255 = vmatpush1.bf16.xpose.msra.mxu0 0
        %1256 = vmatprep.subr.bf16.mxu0 0
        %1257 = vmatpush1.bf16.xpose.msra.mxu0 0
        %1258 = vmatprep.subr.bf16.mxu0 0
        %1259 = vmatpush1.bf16.xpose.msra.mxu0 0
        %1260 = vmatprep.subr.bf16.mxu0 0
        %1261 = vmatpush1.bf16.xpose.msra.mxu0 0
        %1262 = vmatprep.subr.bf16.mxu0 0
        %1263 = vmatpush1.bf16.xpose.msra.mxu0 0
        %1264 = vmatprep.mubr.bf16.mxu0 0
        %1265 = vmatmul.mubr.bf16.gmra.mrb[0].mxu0 %v1227
        %v1266 = vpop.f32.mrb[0].mxu0
        %v1267 = vadd.f32 0.0, %v1266
        %v1268 = vpop.f32.mrb[0].mxu0
        %v1269 = vpop.f32.mrb[0].mxu0
        %v1270 = vpop.f32.mrb[0].mxu0
        %1271 = vdwg.mxu0
        %v1272 = vsel %vm918, %v1267, -inf
        %1273 = vmax.xlane.f32.xlu0 %v1272
        %v1274 = vpop.xlane.xlu0 %1273
        %v1275 = vsub.f32 %v1267, %v1274
        %v1276 = vmul.f32 %v1275, 1.442695
        %v1277 = vpow.pop %v1276
        %v1278 = vsel %vm918, %v1277, 0.0
        %1279 = vadd.xlane.f32.xlu0 %v1278
        %v1280 = vpop.xlane.xlu0 %1279
        %v1281 = vpack.c.bf16 %v1277, %v1277
        %1282 = vrot.lane.b32.xlu0 %v870, 32
        %v1283 = vpop.permute.xlu0 %1282
        %v1285 = vsel %vm918, %v1281, 0
        %v1288 = vsel %vm932, %v1283, 0
        %1290 = vmatprep.subr.bf16.mxu0 0
        %1291 = vmatpush1.bf16.msra.mxu0 %v1288
        %1292 = vmatprep.subr.bf16.mxu0 0
        %1293 = vmatpush1.bf16.msra.mxu0 0
        %1294 = vmatprep.subr.bf16.mxu0 0
        %1295 = vmatpush1.bf16.msra.mxu0 0
        %1296 = vmatprep.subr.bf16.mxu0 0
        %1297 = vmatpush1.bf16.msra.mxu0 0
        %1298 = vmatprep.subr.bf16.mxu0 0
        %1299 = vmatpush1.bf16.msra.mxu0 0
        %1300 = vmatprep.subr.bf16.mxu0 0
        %1301 = vmatpush1.bf16.msra.mxu0 0
        %1302 = vmatprep.subr.bf16.mxu0 0
        %1303 = vmatpush1.bf16.msra.mxu0 0
        %1304 = vmatprep.subr.bf16.mxu0 0
        %1305 = vmatpush1.bf16.msra.mxu0 0
        %1306 = vmatprep.subr.bf16.mxu0 0
        %1307 = vmatpush1.bf16.msra.mxu0 0
        %1308 = vmatprep.subr.bf16.mxu0 0
        %1309 = vmatpush1.bf16.msra.mxu0 0
        %1310 = vmatprep.subr.bf16.mxu0 0
        %1311 = vmatpush1.bf16.msra.mxu0 0
        %1312 = vmatprep.subr.bf16.mxu0 0
        %1313 = vmatpush1.bf16.msra.mxu0 0
        %1314 = vmatprep.subr.bf16.mxu0 0
        %1315 = vmatpush1.bf16.msra.mxu0 0
        %1316 = vmatprep.subr.bf16.mxu0 0
        %1317 = vmatpush1.bf16.msra.mxu0 0
        %1318 = vmatprep.subr.bf16.mxu0 0
        %1319 = vmatpush1.bf16.msra.mxu0 0
        %1320 = vmatprep.subr.bf16.mxu0 0
        %1321 = vmatpush1.bf16.msra.mxu0 0
        %1322 = vmatprep.mubr.bf16.mxu0 0
        %1323 = vmatmul.mubr.bf16.gmra.mrb[0].mxu0 %v1285
        %v1324 = vpop.f32.mrb[0].mxu0
        %v1325 = vadd.f32 0.0, %v1324
        %v1326 = vpop.f32.mrb[0].mxu0
        %v1327 = vpop.f32.mrb[0].mxu0
        %v1328 = vpop.f32.mrb[0].mxu0
        %1329 = vdwg.mxu0
        %v1330 = vrcp.pop %v1280
        %v1331 = vmul.f32 %v1325, %v1330
        %v1332 = vpack.c.bf16 %v1331, %v1331
        %v1334 = vunpack.c.l.b16 %v1332
        %v1335 = vpack.c.b16 %v1334, %v1334
        %1336 = vrot.lane.b32.xlu0 %v1335, 96
        %v1337 = vpop.permute.xlu0 %1336
        %vm1339 = vcmask 1044224
        %1340 = vst.msk [vmem:[#allocation2] sm:$0xf] %vm1339, %v1337
        %v1341 = vld [vmem:[#allocation2] sm:$0xf]
        %v1342 = vld [vmem:[#allocation14] sm:$0xf]
        %v1343 = vld [vmem:[#allocation14 + $0x4] sm:$0xf]
        %v1344 = vld [vmem:[#allocation14 + $0x8] sm:$0xf]
        %v1345 = vld [vmem:[#allocation14 + $0xc] sm:$0xf]
        %v1346 = vld [vmem:[#allocation14 + $0x10] sm:$0xf]
        %v1347 = vld [vmem:[#allocation14 + $0x14] sm:$0xf]
        %v1348 = vld [vmem:[#allocation14 + $0x18] sm:$0xf]
        %v1349 = vld [vmem:[#allocation14 + $0x1c] sm:$0xf]
        %v1350 = vld [vmem:[#allocation14 + $0x20] sm:$0xf]
        %v1351 = vld [vmem:[#allocation14 + $0x24] sm:$0xf]
        %v1352 = vld [vmem:[#allocation14 + $0x28] sm:$0xf]
        %v1353 = vld [vmem:[#allocation14 + $0x2c] sm:$0xf]
        %v1354 = vld [vmem:[#allocation14 + $0x30] sm:$0xf]
        %v1355 = vld [vmem:[#allocation14 + $0x34] sm:$0xf]
        %v1356 = vld [vmem:[#allocation14 + $0x38] sm:$0xf]
        %v1357 = vld [vmem:[#allocation14 + $0x3c] sm:$0xf]
        %v1358 = vld [vmem:[%s10] sm:$0x1]
        %v1360 = vlaneseq
        %v1361 = vshrl.u32 %v1360, 7
        %v1362 = vsub.s32 0, %v1361
        %v1363 = vrot.slane %v1358, %v1362
        %v1381 = vunpack.c.l.b16 %v1342
        %v1382 = vunpack.c.l.b16 %v1343
        %v1383 = vunpack.c.l.b16 %v1344
        %v1384 = vunpack.c.l.b16 %v1345
        %v1385 = vunpack.c.l.b16 %v1346
        %v1386 = vunpack.c.l.b16 %v1347
        %v1387 = vunpack.c.l.b16 %v1348
        %v1388 = vunpack.c.l.b16 %v1349
        %v1389 = vunpack.c.l.b16 %v1350
        %v1390 = vunpack.c.l.b16 %v1351
        %v1391 = vunpack.c.l.b16 %v1352
        %v1392 = vunpack.c.l.b16 %v1353
        %v1393 = vunpack.c.l.b16 %v1354
        %v1394 = vunpack.c.l.b16 %v1355
        %v1395 = vunpack.c.l.b16 %v1356
        %v1396 = vunpack.c.l.b16 %v1357
        %v1397 = vpack.c.b16 %v1382, %v1381
        %v1398 = vpack.c.b16 %v1384, %v1383
        %v1399 = vpack.c.b16 %v1386, %v1385
        %v1400 = vpack.c.b16 %v1388, %v1387
        %v1401 = vpack.c.b16 %v1390, %v1389
        %v1402 = vpack.c.b16 %v1392, %v1391
        %v1403 = vpack.c.b16 %v1394, %v1393
        %v1404 = vpack.c.b16 %v1396, %v1395
        %1413 = vmatprep.subr.bf16.mxu0 0
        %1414 = vmatpush1.bf16.msra.mxu0 %v1397
        %1415 = vmatprep.subr.bf16.mxu0 0
        %1416 = vmatpush1.bf16.msra.mxu0 %v1398
        %1417 = vmatprep.subr.bf16.mxu0 0
        %1418 = vmatpush1.bf16.msra.mxu0 %v1399
        %1419 = vmatprep.subr.bf16.mxu0 0
        %1420 = vmatpush1.bf16.msra.mxu0 %v1400
        %1421 = vmatprep.subr.bf16.mxu0 0
        %1422 = vmatpush1.bf16.msra.mxu0 %v1401
        %1423 = vmatprep.subr.bf16.mxu0 0
        %1424 = vmatpush1.bf16.msra.mxu0 %v1402
        %1425 = vmatprep.subr.bf16.mxu0 0
        %1426 = vmatpush1.bf16.msra.mxu0 %v1403
        %1427 = vmatprep.subr.bf16.mxu0 0
        %1428 = vmatpush1.bf16.msra.mxu0 %v1404
        %1429 = vmatprep.subr.bf16.mxu0 0
        %1430 = vmatpush1.bf16.msra.mxu0 0
        %1431 = vmatprep.subr.bf16.mxu0 0
        %1432 = vmatpush1.bf16.msra.mxu0 0
        %1433 = vmatprep.subr.bf16.mxu0 0
        %1434 = vmatpush1.bf16.msra.mxu0 0
        %1435 = vmatprep.subr.bf16.mxu0 0
        %1436 = vmatpush1.bf16.msra.mxu0 0
        %1437 = vmatprep.subr.bf16.mxu0 0
        %1438 = vmatpush1.bf16.msra.mxu0 0
        %1439 = vmatprep.subr.bf16.mxu0 0
        %1440 = vmatpush1.bf16.msra.mxu0 0
        %1441 = vmatprep.subr.bf16.mxu0 0
        %1442 = vmatpush1.bf16.msra.mxu0 0
        %1443 = vmatprep.subr.bf16.mxu0 0
        %1444 = vmatpush1.bf16.msra.mxu0 0
        %1445 = vmatprep.mubr.bf16.mxu0 0
        %1446 = vmatmul.mubr.bf16.gmra.mrb[0].mxu0 %v1341
        %v1447 = vpop.f32.mrb[0].mxu0
        %v1448 = vadd.f32 %v1363, %v1447
        %v1449 = vpop.f32.mrb[0].mxu0
        %v1450 = vpop.f32.mrb[0].mxu0
        %v1451 = vpop.f32.mrb[0].mxu0
        %1452 = vdwg.mxu0
        %1453 = vst [vmem:[%s530] sm:$0xff] %v1448
        %s1454 = sand.u32 %s287, 1
        %s1455 = scalar_lea.sflag [#allocation5], %s1454
        %s1456 = sand.u32 %s287, 1
        %s1457 = smul.addr %s1456, 8
        %s1458 = scalar_lea.vmem [#allocation15], %s1457
        // Predicated region
        $region93: #{tpu_custom_call.1} parent=63 // pred_check
          %p1459 = pneg %p297
        $region94: #{tpu_custom_call.1} parent=63 // pred_check_branch
          %1461 = sbr.rel (%p1459) target = $region96
        $region95: #{tpu_custom_call.1} parent=63 // pred_region
          %s1463 = ssub.s32 128, 128
          %1464 = vsyncadd %s1455, %s1463
          %s1465 = smul.addr %s33, 128
          %s1466 = scalar_lea.hbm %s11, %s1465
          %s1468 = sshll.u32 %s1458, 4
          %s1469 = int_to_ptr.vmem [resolvable:$true] %s1468
          %1471 = dma.vmem_to_hbm [thread:$0]  %s1469, 128, %s1466, %s1455
        $region96: #{tpu_custom_call.1} parent=63 // pred_fallthru
          _
      $region64: #{tpu_custom_call.1} parent=5 // pred_fallthru
        _
      %p1472 = scmp.le.s32.totalorder 2, %s28
      // Predicated region
      $region97: #{tpu_custom_call.1} parent=5 // pred_check
        %p1473 = pneg %p1472
      $region98: #{tpu_custom_call.1} parent=5 // pred_check_branch
        %1475 = sbr.rel (%p1473) target = $region100
      $region99: #{tpu_custom_call.1} parent=5 // pred_region
        %s1476 = ssub.s32 %s28, 2
        // Predicated region
        $region101: #{tpu_custom_call.1} parent=99 // pred_check
          %p1477 = pneg %p303
        $region102: #{tpu_custom_call.1} parent=99 // pred_check_branch
          %1479 = sbr.rel (%p1477) target = $region104
        $region103: #{tpu_custom_call.1} parent=99 // pred_region
          %s1480 = sand.u32 %s288, 1
          %s1481 = scalar_lea.sflag [#allocation5], %s1480
          %s1482 = sand.u32 %s288, 1
          %s1483 = smul.addr %s1482, 8
          %s1484 = scalar_lea.vmem [#allocation15], %s1483
          %1485 = dma.done %s1481, 128
        $region104: #{tpu_custom_call.1} parent=99 // pred_fallthru
          _
      $region100: #{tpu_custom_call.1} parent=5 // pred_fallthru
        _
    $region6: #{tpu_custom_call.1} parent=1 // loop_footer
      %s32 = sadd.s32 1, %s28
    $region7: #{tpu_custom_call.1} parent=1 // loop_footer_branch
      %27 = sbr.rel target = $region3
    $region8: #{tpu_custom_call.1} parent=1 // loop_exit
      _
    %1486 = vsyncpa [#allocation4], 1
    %s1487 = scalar_lea.sflag [#allocation4], 1
    %1488 = vsyncpa %s1487, 1
    %1489 = vsyncpa [#allocation7], 1
    %s1490 = scalar_lea.sflag [#allocation7], 1
    %1491 = vsyncpa %s1490, 1
    %1492 = vsyncpa [#allocation10], 1
    %1493 = vsyncpa [#allocation13], 1
    %1494 = vsyncpa [#allocation5], 1
    %s1495 = scalar_lea.sflag [#allocation5], 1
    %1496 = vsyncpa %s1495, 1

// kernel: tpu_custom_call.1
$region0: #{tpu_custom_call.1}
  #allocation0 [shape = 'u32[]', space=smem, size = 0x4, offset = 0x4, fixed_abs, tag = 'smem constant byte address 0x4 - core index']
  #allocation1 [shape = 'u32[144,128]{1,0:T(1,128)}', space=vmem, size = 0x12000, scoped, tag = 'internal scratch']
  #allocation2 [shape = 'bf16[8,128]{1,0:T(8,128)(2,1)}', space=vmem, size = 0x800, scoped, tag = 'scratch operand']
  %s0 = inlined_call_operand.hbm [shape: bf16[2,8,128], index: 0, kind: input, shape index: {}]
  %s1 = inlined_call_operand.hbm [shape: bf16[2,8,128], index: 1, kind: input, shape index: {}]
  %s2 = inlined_call_operand.hbm [shape: bf16[2,8,128], index: 2, kind: input, shape index: {}]
  %s3 = inlined_call_operand.hbm [shape: bf16[128,128], index: 3, kind: input, shape index: {}]
  %s4 = inlined_call_operand.vmem [shape: f32[1,128], index: 4, kind: input, shape index: {}]
  %s5 = inlined_call_operand.hbm [shape: bf16[128,128], index: 5, kind: input, shape index: {}]
  %s6 = inlined_call_operand.vmem [shape: f32[1,128], index: 6, kind: input, shape index: {}]
  %s7 = inlined_call_operand.hbm [shape: bf16[128,128], index: 7, kind: input, shape index: {}]
  %s8 = inlined_call_operand.vmem [shape: f32[1,128], index: 8, kind: input, shape index: {}]
  %s9 = inlined_call_operand.hbm [shape: bf16[128,128], index: 9, kind: input, shape index: {}]
  %s10 = inlined_call_operand.vmem [shape: f32[1,128], index: 10, kind: input, shape index: {}]
  %s11 = inlined_call_operand.hbm [shape: f32[2,8,128], index: 11, kind: output, shape index: {}]
  %s12 = sld [smem:[#allocation0]]
  $region105: #{tpu_custom_call.1} parent=0
    _
  %s14 = ssub.s32 1, %s12
  %s15 = scalar_select 0, %s14, %s12
  $region1: #{tpu_custom_call.1} parent=0
    #allocation3 [shape = 'u8[4096]{0}', space=vmem, size = 0x1000, scoped, tag = 'input window, operand 0']
    #allocation4 [shape = 's32[2]{0}', space=sflag, size = 0x8, scoped, tag = 'scoped memory for tpu_custom_call.1']
    #allocation5 [shape = 's32[2]{0}', space=sflag, size = 0x8, scoped, tag = 'scoped memory for tpu_custom_call.1']
    #allocation6 [shape = 'u8[4096]{0}', space=vmem, size = 0x1000, scoped, tag = 'input window, operand 1']
    #allocation7 [shape = 's32[2]{0}', space=sflag, size = 0x8, scoped, tag = 'scoped memory for tpu_custom_call.1']
    #allocation8 [shape = 'u8[4096]{0}', space=vmem, size = 0x1000, scoped, tag = 'input window, operand 2']
    #allocation9 [shape = 'u8[32768]{0}', space=vmem, size = 0x8000, scoped, tag = 'input window, operand 3, single buffered']
    #allocation10 [shape = 's32[1]{0}', space=sflag, size = 0x4, scoped, tag = 'scoped memory for tpu_custom_call.1']
    #allocation11 [shape = 'u8[32768]{0}', space=vmem, size = 0x8000, scoped, tag = 'input window, operand 5, single buffered']
    #allocation12 [shape = 'u8[32768]{0}', space=vmem, size = 0x8000, scoped, tag = 'input window, operand 7, single buffered']
    #allocation13 [shape = 's32[1]{0}', space=sflag, size = 0x4, scoped, tag = 'scoped memory for tpu_custom_call.1']
    #allocation14 [shape = 'u8[32768]{0}', space=vmem, size = 0x8000, scoped, tag = 'input window, operand 9, single buffered']
    #allocation15 [shape = 'u8[8192]{0}', space=vmem, size = 0x2000, scoped, tag = 'output window, operand 0']
    %16 = vsyncpa [#allocation4], 0
    %s17 = scalar_lea.sflag [#allocation4], 1
    %18 = vsyncpa %s17, 0
    %19 = vsyncpa [#allocation7], 0
    %s20 = scalar_lea.sflag [#allocation7], 1
    %21 = vsyncpa %s20, 0
    %22 = vsyncpa [#allocation10], 0
    %23 = vsyncpa [#allocation13], 0
    %24 = vsyncpa [#allocation5], 0
    %s25 = scalar_lea.sflag [#allocation5], 1
    %26 = vsyncpa %s25, 0
    loop: start=0, step=1, limit=4
    $region2: #{tpu_custom_call.1} parent=1 // loop_pre_header
      _
    $region3: #{tpu_custom_call.1} parent=1 // loop_header
      %s28 = sphi 0, %s32
      %p29 = scmp.ge.s32.totalorder %s28, 4
      %s38 = sphi 0, %s40
      %s41 = sphi 0, %s38
      %s42 = sphi 0, %s41
      %s58 = sphi 0, %s42
      %s64 = sphi 0, %s66
      %s67 = sphi 0, %s64
      %s68 = sphi 0, %s67
      %s84 = sphi 0, %s68
      %s90 = sphi 0, %s92
      %s93 = sphi 0, %s90
      %s94 = sphi 0, %s93
      %s110 = sphi 0, %s94
      %s114 = sphi 0, %s114
      %s116 = sphi 0, %s114
      %s117 = sphi 0, %s116
      %s131 = sphi 0, %s117
      %s135 = sphi 0, %s135
      %s137 = sphi 0, %s135
      %s138 = sphi 0, %s137
      %s152 = sphi 0, %s138
      %s156 = sphi 0, %s156
      %s158 = sphi 0, %s156
      %s159 = sphi 0, %s158
      %s173 = sphi 0, %s159
      %s177 = sphi 0, %s177
      %s179 = sphi 0, %s177
      %s180 = sphi 0, %s179
      %s194 = sphi 0, %s180
      %s198 = sphi 0, %s198
      %s200 = sphi 0, %s198
      %s201 = sphi 0, %s200
      %s215 = sphi 0, %s201
      %s219 = sphi 0, %s219
      %s221 = sphi 0, %s219
      %s222 = sphi 0, %s221
      %s236 = sphi 0, %s222
      %s240 = sphi 0, %s240
      %s242 = sphi 0, %s240
      %s243 = sphi 0, %s242
      %s257 = sphi 0, %s243
      %s261 = sphi 0, %s261
      %s263 = sphi 0, %s261
      %s264 = sphi 0, %s263
      %s278 = sphi 0, %s264
      %s284 = sphi 0, %s286
      %s287 = sphi 0, %s284
      %s288 = sphi 0, %s287
      %s304 = sphi 0, %s288
    $region4: #{tpu_custom_call.1} parent=1 // loop_header_branch
      %31 = sbr.rel (%p29) target = $region8
    $region5: #{tpu_custom_call.1} parent=1 // loop_body
      %s33 = ssub.s32 %s28, 1
      %s34 = ssub.s32 %s28, 2
      %s35 = sadd.s32 %s28, 1
      %s36 = ssub.s32 %s28, %s35
      %p37 = scmp.eq.s32.totalorder %s36, 0
      %s39 = sadd.s32 %s38, 1
      %s40 = scalar_select %p37, %s38, %s39
      %p43 = pneg %p37
      %p44 = scmp.eq.s32.totalorder %s28, 1
      %p45 = por %p43, %p44
      %p46 = scmp.ne.s32.totalorder %s38, %s41
      %p47 = scmp.eq.s32.totalorder %s28, 0
      %p48 = por %p46, %p47
      %p49 = scmp.ne.s32.totalorder %s38, %s41
      %p50 = scmp.eq.s32.totalorder %s33, 1
      %p51 = por %p49, %p50
      %p52 = scmp.ne.s32.totalorder %s41, %s42
      %p53 = scmp.eq.s32.totalorder %s33, 0
      %p54 = por %p52, %p53
      %p55 = scmp.ne.s32.totalorder %s41, %s42
      %p56 = scmp.eq.s32.totalorder %s34, 1
      %p57 = por %p55, %p56
      %p59 = scmp.ne.s32.totalorder %s42, %s58
      %p60 = scmp.eq.s32.totalorder %s34, 0
      %p61 = por %p59, %p60
      %s62 = ssub.s32 %s28, %s35
      %p63 = scmp.eq.s32.totalorder %s62, 0
      %s65 = sadd.s32 %s64, 1
      %s66 = scalar_select %p63, %s64, %s65
      %p69 = pneg %p63
      %p70 = scmp.eq.s32.totalorder %s28, 1
      %p71 = por %p69, %p70
      %p72 = scmp.ne.s32.totalorder %s64, %s67
      %p73 = scmp.eq.s32.totalorder %s28, 0
      %p74 = por %p72, %p73
      %p75 = scmp.ne.s32.totalorder %s64, %s67
      %p76 = scmp.eq.s32.totalorder %s33, 1
      %p77 = por %p75, %p76
      %p78 = scmp.ne.s32.totalorder %s67, %s68
      %p79 = scmp.eq.s32.totalorder %s33, 0
      %p80 = por %p78, %p79
      %p81 = scmp.ne.s32.totalorder %s67, %s68
      %p82 = scmp.eq.s32.totalorder %s34, 1
      %p83 = por %p81, %p82
      %p85 = scmp.ne.s32.totalorder %s68, %s84
      %p86 = scmp.eq.s32.totalorder %s34, 0
      %p87 = por %p85, %p86
      %s88 = ssub.s32 %s28, %s35
      %p89 = scmp.eq.s32.totalorder %s88, 0
      %s91 = sadd.s32 %s90, 1
      %s92 = scalar_select %p89, %s90, %s91
      %p95 = pneg %p89
      %p96 = scmp.eq.s32.totalorder %s28, 1
      %p97 = por %p95, %p96
      %p98 = scmp.ne.s32.totalorder %s90, %s93
      %p99 = scmp.eq.s32.totalorder %s28, 0
      %p100 = por %p98, %p99
      %p101 = scmp.ne.s32.totalorder %s90, %s93
      %p102 = scmp.eq.s32.totalorder %s33, 1
      %p103 = por %p101, %p102
      %p104 = scmp.ne.s32.totalorder %s93, %s94
      %p105 = scmp.eq.s32.totalorder %s33, 0
      %p106 = por %p104, %p105
      %p107 = scmp.ne.s32.totalorder %s93, %s94
      %p108 = scmp.eq.s32.totalorder %s34, 1
      %p109 = por %p107, %p108
      %p111 = scmp.ne.s32.totalorder %s94, %s110
      %p112 = scmp.eq.s32.totalorder %s34, 0
      %p113 = por %p111, %p112
      %s115 = sadd.s32 %s114, 1
      %p118 = scmp.eq.s32.totalorder %s28, 1
      %p119 = scmp.ne.s32.totalorder %s114, %s116
      %p120 = scmp.eq.s32.totalorder %s28, 0
      %p121 = por %p119, %p120
      %p122 = scmp.ne.s32.totalorder %s114, %s116
      %p123 = scmp.eq.s32.totalorder %s33, 1
      %p124 = por %p122, %p123
      %p125 = scmp.ne.s32.totalorder %s116, %s117
      %p126 = scmp.eq.s32.totalorder %s33, 0
      %p127 = por %p125, %p126
      %p128 = scmp.ne.s32.totalorder %s116, %s117
      %p129 = scmp.eq.s32.totalorder %s34, 1
      %p130 = por %p128, %p129
      %p132 = scmp.ne.s32.totalorder %s117, %s131
      %p133 = scmp.eq.s32.totalorder %s34, 0
      %p134 = por %p132, %p133
      %s136 = sadd.s32 %s135, 1
      %p139 = scmp.eq.s32.totalorder %s28, 1
      %p140 = scmp.ne.s32.totalorder %s135, %s137
      %p141 = scmp.eq.s32.totalorder %s28, 0
      %p142 = por %p140, %p141
      %p143 = scmp.ne.s32.totalorder %s135, %s137
      %p144 = scmp.eq.s32.totalorder %s33, 1
      %p145 = por %p143, %p144
      %p146 = scmp.ne.s32.totalorder %s137, %s138
      %p147 = scmp.eq.s32.totalorder %s33, 0
      %p148 = por %p146, %p147
      %p149 = scmp.ne.s32.totalorder %s137, %s138
      %p150 = scmp.eq.s32.totalorder %s34, 1
      %p151 = por %p149, %p150
      %p153 = scmp.ne.s32.totalorder %s138, %s152
      %p154 = scmp.eq.s32.totalorder %s34, 0
      %p155 = por %p153, %p154
      %s157 = sadd.s32 %s156, 1
      %p160 = scmp.eq.s32.totalorder %s28, 1
      %p161 = scmp.ne.s32.totalorder %s156, %s158
      %p162 = scmp.eq.s32.totalorder %s28, 0
      %p163 = por %p161, %p162
      %p164 = scmp.ne.s32.totalorder %s156, %s158
      %p165 = scmp.eq.s32.totalorder %s33, 1
      %p166 = por %p164, %p165
      %p167 = scmp.ne.s32.totalorder %s158, %s159
      %p168 = scmp.eq.s32.totalorder %s33, 0
      %p169 = por %p167, %p168
      %p170 = scmp.ne.s32.totalorder %s158, %s159
      %p171 = scmp.eq.s32.totalorder %s34, 1
      %p172 = por %p170, %p171
      %p174 = scmp.ne.s32.totalorder %s159, %s173
      %p175 = scmp.eq.s32.totalorder %s34, 0
      %p176 = por %p174, %p175
      %s178 = sadd.s32 %s177, 1
      %p181 = scmp.eq.s32.totalorder %s28, 1
      %p182 = scmp.ne.s32.totalorder %s177, %s179
      %p183 = scmp.eq.s32.totalorder %s28, 0
      %p184 = por %p182, %p183
      %p185 = scmp.ne.s32.totalorder %s177, %s179
      %p186 = scmp.eq.s32.totalorder %s33, 1
      %p187 = por %p185, %p186
      %p188 = scmp.ne.s32.totalorder %s179, %s180
      %p189 = scmp.eq.s32.totalorder %s33, 0
      %p190 = por %p188, %p189
      %p191 = scmp.ne.s32.totalorder %s179, %s180
      %p192 = scmp.eq.s32.totalorder %s34, 1
      %p193 = por %p191, %p192
      %p195 = scmp.ne.s32.totalorder %s180, %s194
      %p196 = scmp.eq.s32.totalorder %s34, 0
      %p197 = por %p195, %p196
      %s199 = sadd.s32 %s198, 1
      %p202 = scmp.eq.s32.totalorder %s28, 1
      %p203 = scmp.ne.s32.totalorder %s198, %s200
      %p204 = scmp.eq.s32.totalorder %s28, 0
      %p205 = por %p203, %p204
      %p206 = scmp.ne.s32.totalorder %s198, %s200
      %p207 = scmp.eq.s32.totalorder %s33, 1
      %p208 = por %p206, %p207
      %p209 = scmp.ne.s32.totalorder %s200, %s201
      %p210 = scmp.eq.s32.totalorder %s33, 0
      %p211 = por %p209, %p210
      %p212 = scmp.ne.s32.totalorder %s200, %s201
      %p213 = scmp.eq.s32.totalorder %s34, 1
      %p214 = por %p212, %p213
      %p216 = scmp.ne.s32.totalorder %s201, %s215
      %p217 = scmp.eq.s32.totalorder %s34, 0
      %p218 = por %p216, %p217
      %s220 = sadd.s32 %s219, 1
      %p223 = scmp.eq.s32.totalorder %s28, 1
      %p224 = scmp.ne.s32.totalorder %s219, %s221
      %p225 = scmp.eq.s32.totalorder %s28, 0
      %p226 = por %p224, %p225
      %p227 = scmp.ne.s32.totalorder %s219, %s221
      %p228 = scmp.eq.s32.totalorder %s33, 1
      %p229 = por %p227, %p228
      %p230 = scmp.ne.s32.totalorder %s221, %s222
      %p231 = scmp.eq.s32.totalorder %s33, 0
      %p232 = por %p230, %p231
      %p233 = scmp.ne.s32.totalorder %s221, %s222
      %p234 = scmp.eq.s32.totalorder %s34, 1
      %p235 = por %p233, %p234
      %p237 = scmp.ne.s32.totalorder %s222, %s236
      %p238 = scmp.eq.s32.totalorder %s34, 0
      %p239 = por %p237, %p238
      %s241 = sadd.s32 %s240, 1
      %p244 = scmp.eq.s32.totalorder %s28, 1
      %p245 = scmp.ne.s32.totalorder %s240, %s242
      %p246 = scmp.eq.s32.totalorder %s28, 0
      %p247 = por %p245, %p246
      %p248 = scmp.ne.s32.totalorder %s240, %s242
      %p249 = scmp.eq.s32.totalorder %s33, 1
      %p250 = por %p248, %p249
      %p251 = scmp.ne.s32.totalorder %s242, %s243
      %p252 = scmp.eq.s32.totalorder %s33, 0
      %p253 = por %p251, %p252
      %p254 = scmp.ne.s32.totalorder %s242, %s243
      %p255 = scmp.eq.s32.totalorder %s34, 1
      %p256 = por %p254, %p255
      %p258 = scmp.ne.s32.totalorder %s243, %s257
      %p259 = scmp.eq.s32.totalorder %s34, 0
      %p260 = por %p258, %p259
      %s262 = sadd.s32 %s261, 1
      %p265 = scmp.eq.s32.totalorder %s28, 1
      %p266 = scmp.ne.s32.totalorder %s261, %s263
      %p267 = scmp.eq.s32.totalorder %s28, 0
      %p268 = por %p266, %p267
      %p269 = scmp.ne.s32.totalorder %s261, %s263
      %p270 = scmp.eq.s32.totalorder %s33, 1
      %p271 = por %p269, %p270
      %p272 = scmp.ne.s32.totalorder %s263, %s264
      %p273 = scmp.eq.s32.totalorder %s33, 0
      %p274 = por %p272, %p273
      %p275 = scmp.ne.s32.totalorder %s263, %s264
      %p276 = scmp.eq.s32.totalorder %s34, 1
      %p277 = por %p275, %p276
      %p279 = scmp.ne.s32.totalorder %s264, %s278
      %p280 = scmp.eq.s32.totalorder %s34, 0
      %p281 = por %p279, %p280
      %s282 = ssub.s32 %s28, %s35
      %p283 = scmp.eq.s32.totalorder %s282, 0
      %s285 = sadd.s32 %s284, 1
      %s286 = scalar_select %p283, %s284, %s285
      %p289 = pneg %p283
      %p290 = scmp.eq.s32.totalorder %s28, 1
      %p291 = por %p289, %p290
      %p292 = scmp.ne.s32.totalorder %s284, %s287
      %p293 = scmp.eq.s32.totalorder %s28, 0
      %p294 = por %p292, %p293
      %p295 = scmp.ne.s32.totalorder %s284, %s287
      %p296 = scmp.eq.s32.totalorder %s33, 1
      %p297 = por %p295, %p296
      %p298 = scmp.ne.s32.totalorder %s287, %s288
      %p299 = scmp.eq.s32.totalorder %s33, 0
      %p300 = por %p298, %p299
      %p301 = scmp.ne.s32.totalorder %s287, %s288
      %p302 = scmp.eq.s32.totalorder %s34, 1
      %p303 = por %p301, %p302
      %p305 = scmp.ne.s32.totalorder %s288, %s304
      %p306 = scmp.eq.s32.totalorder %s34, 0
      %p307 = por %p305, %p306
      %p308 = scmp.le.s32.totalorder 1, %s28
      %p309 = scmp.lt.s32.totalorder %s28, 3
      %p310 = pnand %p308, %p309
      %p311 = pneg %p310
      // Predicated region
      $region9: #{tpu_custom_call.1} parent=5 // pred_check
        _
      $region10: #{tpu_custom_call.1} parent=5 // pred_check_branch
        %313 = sbr.rel (%p310) target = $region12
      $region11: #{tpu_custom_call.1} parent=5 // pred_region
        %s314 = ssub.s32 %s28, 1
        // Predicated region
        $region13: #{tpu_custom_call.1} parent=11 // pred_check
          %p315 = pneg %p127
        $region14: #{tpu_custom_call.1} parent=11 // pred_check_branch
          %317 = sbr.rel (%p315) target = $region16
        $region15: #{tpu_custom_call.1} parent=11 // pred_region
          %s319 = ssub.s32 1024, 1024
          %320 = vsyncadd [#allocation10], %s319
          %s321 = sshll.u32 [#allocation9], 4
          %s322 = int_to_ptr.vmem [resolvable:$true] %s321
          %327 = dma.hbm_to_vmem [thread:$0]  %s3, 1024, %s322, [#allocation10], 64, 64, 4
        $region16: #{tpu_custom_call.1} parent=11 // pred_fallthru
          _
        // Predicated region
        $region17: #{tpu_custom_call.1} parent=11 // pred_check
          %p328 = pneg %p148
        $region18: #{tpu_custom_call.1} parent=11 // pred_check_branch
          %330 = sbr.rel (%p328) target = $region20
        $region19: #{tpu_custom_call.1} parent=11 // pred_region
          _
        $region20: #{tpu_custom_call.1} parent=11 // pred_fallthru
          _
        // Predicated region
        $region21: #{tpu_custom_call.1} parent=11 // pred_check
          %p331 = pneg %p169
        $region22: #{tpu_custom_call.1} parent=11 // pred_check_branch
          %333 = sbr.rel (%p331) target = $region24
        $region23: #{tpu_custom_call.1} parent=11 // pred_region
          %s335 = ssub.s32 1024, 1024
          %336 = vsyncadd [#allocation10], %s335
          %s337 = sshll.u32 [#allocation11], 4
          %s338 = int_to_ptr.vmem [resolvable:$true] %s337
          %343 = dma.hbm_to_vmem [thread:$0]  %s5, 1024, %s338, [#allocation10], 64, 64, 4
        $region24: #{tpu_custom_call.1} parent=11 // pred_fallthru
          _
        // Predicated region
        $region25: #{tpu_custom_call.1} parent=11 // pred_check
          %p344 = pneg %p190
        $region26: #{tpu_custom_call.1} parent=11 // pred_check_branch
          %346 = sbr.rel (%p344) target = $region28
        $region27: #{tpu_custom_call.1} parent=11 // pred_region
          _
        $region28: #{tpu_custom_call.1} parent=11 // pred_fallthru
          _
        // Predicated region
        $region29: #{tpu_custom_call.1} parent=11 // pred_check
          %p347 = pneg %p211
        $region30: #{tpu_custom_call.1} parent=11 // pred_check_branch
          %349 = sbr.rel (%p347) target = $region32
        $region31: #{tpu_custom_call.1} parent=11 // pred_region
          %s351 = ssub.s32 1024, 1024
          %352 = vsyncadd [#allocation13], %s351
          %s353 = sshll.u32 [#allocation12], 4
          %s354 = int_to_ptr.vmem [resolvable:$true] %s353
          %359 = dma.hbm_to_vmem [thread:$0]  %s7, 1024, %s354, [#allocation13], 64, 64, 4
        $region32: #{tpu_custom_call.1} parent=11 // pred_fallthru
          _
        // Predicated region
        $region33: #{tpu_custom_call.1} parent=11 // pred_check
          %p360 = pneg %p232
        $region34: #{tpu_custom_call.1} parent=11 // pred_check_branch
          %362 = sbr.rel (%p360) target = $region36
        $region35: #{tpu_custom_call.1} parent=11 // pred_region
          _
        $region36: #{tpu_custom_call.1} parent=11 // pred_fallthru
          _
        // Predicated region
        $region37: #{tpu_custom_call.1} parent=11 // pred_check
          %p363 = pneg %p253
        $region38: #{tpu_custom_call.1} parent=11 // pred_check_branch
          %365 = sbr.rel (%p363) target = $region40
        $region39: #{tpu_custom_call.1} parent=11 // pred_region
          %s367 = ssub.s32 1024, 1024
          %368 = vsyncadd [#allocation13], %s367
          %s369 = sshll.u32 [#allocation14], 4
          %s370 = int_to_ptr.vmem [resolvable:$true] %s369
          %375 = dma.hbm_to_vmem [thread:$0]  %s9, 1024, %s370, [#allocation13], 64, 64, 4
        $region40: #{tpu_custom_call.1} parent=11 // pred_fallthru
          _
        // Predicated region
        $region41: #{tpu_custom_call.1} parent=11 // pred_check
          %p376 = pneg %p274
        $region42: #{tpu_custom_call.1} parent=11 // pred_check_branch
          %378 = sbr.rel (%p376) target = $region44
        $region43: #{tpu_custom_call.1} parent=11 // pred_region
          _
        $region44: #{tpu_custom_call.1} parent=11 // pred_fallthru
          _
      $region12: #{tpu_custom_call.1} parent=5 // pred_fallthru
        _
      %p379 = scmp.lt.s32.totalorder %s28, 2
      // Predicated region
      $region45: #{tpu_custom_call.1} parent=5 // pred_check
        %p380 = pneg %p379
      $region46: #{tpu_custom_call.1} parent=5 // pred_check_branch
        %382 = sbr.rel (%p380) target = $region48
      $region47: #{tpu_custom_call.1} parent=5 // pred_region
        // Predicated region
        $region49: #{tpu_custom_call.1} parent=47 // pred_check
          %p383 = pneg %p48
        $region50: #{tpu_custom_call.1} parent=47 // pred_check_branch
          %385 = sbr.rel (%p383) target = $region52
        $region51: #{tpu_custom_call.1} parent=47 // pred_region
          %s386 = sand.u32 %s38, 1
          %s387 = scalar_lea.sflag [#allocation4], %s386
          %s388 = sand.u32 %s38, 1
          %s389 = smul.addr %s388, 4
          %s390 = scalar_lea.vmem [#allocation3], %s389
          %s392 = ssub.s32 64, 64
          %393 = vsyncadd %s387, %s392
          %s394 = smul.addr %s28, 64
          %s395 = scalar_lea.hbm %s0, %s394
          %s397 = sshll.u32 %s390, 4
          %s398 = int_to_ptr.vmem [resolvable:$true] %s397
          %400 = dma.hbm_to_vmem [thread:$0]  %s395, 64, %s398, %s387
        $region52: #{tpu_custom_call.1} parent=47 // pred_fallthru
          _
        // Predicated region
        $region53: #{tpu_custom_call.1} parent=47 // pred_check
          %p401 = pneg %p74
        $region54: #{tpu_custom_call.1} parent=47 // pred_check_branch
          %403 = sbr.rel (%p401) target = $region56
        $region55: #{tpu_custom_call.1} parent=47 // pred_region
          %s404 = sand.u32 %s28, 1
          %s405 = scalar_lea.sflag [#allocation7], %s404
          %s406 = sand.u32 %s64, 1
          %s407 = smul.addr %s406, 4
          %s408 = scalar_lea.vmem [#allocation6], %s407
          %s410 = ssub.s32 64, 64
          %411 = vsyncadd %s405, %s410
          %s412 = smul.addr %s28, 64
          %s413 = scalar_lea.hbm %s1, %s412
          %s415 = sshll.u32 %s408, 4
          %s416 = int_to_ptr.vmem [resolvable:$true] %s415
          %418 = dma.hbm_to_vmem [thread:$0]  %s413, 64, %s416, %s405
        $region56: #{tpu_custom_call.1} parent=47 // pred_fallthru
          _
        // Predicated region
        $region57: #{tpu_custom_call.1} parent=47 // pred_check
          %p419 = pneg %p100
        $region58: #{tpu_custom_call.1} parent=47 // pred_check_branch
          %421 = sbr.rel (%p419) target = $region60
        $region59: #{tpu_custom_call.1} parent=47 // pred_region
          %s422 = sand.u32 %s28, 1
          %s423 = scalar_lea.sflag [#allocation7], %s422
          %s424 = sand.u32 %s90, 1
          %s425 = smul.addr %s424, 4
          %s426 = scalar_lea.vmem [#allocation8], %s425
          %s428 = ssub.s32 64, 64
          %429 = vsyncadd %s423, %s428
          %s430 = smul.addr %s28, 64
          %s431 = scalar_lea.hbm %s2, %s430
          %s433 = sshll.u32 %s426, 4
          %s434 = int_to_ptr.vmem [resolvable:$true] %s433
          %436 = dma.hbm_to_vmem [thread:$0]  %s431, 64, %s434, %s423
        $region60: #{tpu_custom_call.1} parent=47 // pred_fallthru
          _
      $region48: #{tpu_custom_call.1} parent=5 // pred_fallthru
        _
      %p437 = scmp.le.s32.totalorder 1, %s28
      %p438 = scmp.lt.s32.totalorder %s28, 3
      %p439 = pnand %p437, %p438
      %p440 = pneg %p439
      // Predicated region
      $region61: #{tpu_custom_call.1} parent=5 // pred_check
        _
      $region62: #{tpu_custom_call.1} parent=5 // pred_check_branch
        %442 = sbr.rel (%p439) target = $region64
      $region63: #{tpu_custom_call.1} parent=5 // pred_region
        %s443 = ssub.s32 %s28, 1
        %s444 = sand.u32 %s41, 1
        %s445 = scalar_lea.sflag [#allocation4], %s444
        %s446 = sand.u32 %s41, 1
        %s447 = smul.addr %s446, 4
        %s448 = scalar_lea.vmem [#allocation3], %s447
        // Predicated region
        $region65: #{tpu_custom_call.1} parent=63 // pred_check
          %p449 = pneg %p54
        $region66: #{tpu_custom_call.1} parent=63 // pred_check_branch
          %451 = sbr.rel (%p449) target = $region68
        $region67: #{tpu_custom_call.1} parent=63 // pred_region
          %452 = dma.done %s445, 64
        $region68: #{tpu_custom_call.1} parent=63 // pred_fallthru
          _
        %s453 = sand.u32 %s33, 1
        %s454 = scalar_lea.sflag [#allocation7], %s453
        %s455 = sand.u32 %s67, 1
        %s456 = smul.addr %s455, 4
        %s457 = scalar_lea.vmem [#allocation6], %s456
        // Predicated region
        $region69: #{tpu_custom_call.1} parent=63 // pred_check
          %p458 = pneg %p80
        $region70: #{tpu_custom_call.1} parent=63 // pred_check_branch
          %460 = sbr.rel (%p458) target = $region72
        $region71: #{tpu_custom_call.1} parent=63 // pred_region
          %461 = dma.done %s454, 64
        $region72: #{tpu_custom_call.1} parent=63 // pred_fallthru
          _
        %s462 = sand.u32 %s33, 1
        %s463 = scalar_lea.sflag [#allocation7], %s462
        %s464 = sand.u32 %s93, 1
        %s465 = smul.addr %s464, 4
        %s466 = scalar_lea.vmem [#allocation8], %s465
        // Predicated region
        $region73: #{tpu_custom_call.1} parent=63 // pred_check
          %p467 = pneg %p106
        $region74: #{tpu_custom_call.1} parent=63 // pred_check_branch
          %469 = sbr.rel (%p467) target = $region76
        $region75: #{tpu_custom_call.1} parent=63 // pred_region
          %470 = dma.done %s463, 64
        $region76: #{tpu_custom_call.1} parent=63 // pred_fallthru
          _
        // Predicated region
        $region77: #{tpu_custom_call.1} parent=63 // pred_check
          %p471 = pneg %p127
        $region78: #{tpu_custom_call.1} parent=63 // pred_check_branch
          %473 = sbr.rel (%p471) target = $region80
        $region79: #{tpu_custom_call.1} parent=63 // pred_region
          %474 = dma.done [#allocation10], 1024
        $region80: #{tpu_custom_call.1} parent=63 // pred_fallthru
          _
        // Predicated region
        $region81: #{tpu_custom_call.1} parent=63 // pred_check
          %p475 = pneg %p169
        $region82: #{tpu_custom_call.1} parent=63 // pred_check_branch
          %477 = sbr.rel (%p475) target = $region84
        $region83: #{tpu_custom_call.1} parent=63 // pred_region
          %478 = dma.done [#allocation10], 1024
        $region84: #{tpu_custom_call.1} parent=63 // pred_fallthru
          _
        // Predicated region
        $region85: #{tpu_custom_call.1} parent=63 // pred_check
          %p479 = pneg %p211
        $region86: #{tpu_custom_call.1} parent=63 // pred_check_branch
          %481 = sbr.rel (%p479) target = $region88
        $region87: #{tpu_custom_call.1} parent=63 // pred_region
          %482 = dma.done [#allocation13], 1024
        $region88: #{tpu_custom_call.1} parent=63 // pred_fallthru
          _
        // Predicated region
        $region89: #{tpu_custom_call.1} parent=63 // pred_check
          %p483 = pneg %p253
        $region90: #{tpu_custom_call.1} parent=63 // pred_check_branch
          %485 = sbr.rel (%p483) target = $region92
        $region91: #{tpu_custom_call.1} parent=63 // pred_region
          %486 = dma.done [#allocation13], 1024
        $region92: #{tpu_custom_call.1} parent=63 // pred_fallthru
          _
        %s487 = sand.u32 %s41, 1
        %s488 = scalar_lea.sflag [#allocation4], %s487
        %s489 = sand.u32 %s41, 1
        %s490 = smul.addr %s489, 4
        %s491 = scalar_lea.vmem [#allocation3], %s490
        %p492 = pneg %p54
        %p493 = pneg %p51
        %s494 = sand.u32 %s33, 1
        %s495 = scalar_lea.sflag [#allocation7], %s494
        %s496 = sand.u32 %s67, 1
        %s497 = smul.addr %s496, 4
        %s498 = scalar_lea.vmem [#allocation6], %s497
        %p499 = pneg %p80
        %p500 = pneg %p77
        %s501 = sand.u32 %s33, 1
        %s502 = scalar_lea.sflag [#allocation7], %s501
        %s503 = sand.u32 %s93, 1
        %s504 = smul.addr %s503, 4
        %s505 = scalar_lea.vmem [#allocation8], %s504
        %p506 = pneg %p106
        %p507 = pneg %p103
        %p508 = pneg %p127
        %p509 = pneg %p124
        %p510 = pneg %p148
        %p511 = pneg %p145
        %p512 = pneg %p169
        %p513 = pneg %p166
        %p514 = pneg %p190
        %p515 = pneg %p187
        %p516 = pneg %p211
        %p517 = pneg %p208
        %p518 = pneg %p232
        %p519 = pneg %p229
        %p520 = pneg %p253
        %p521 = pneg %p250
        %p522 = pneg %p274
        %p523 = pneg %p271
        %p524 = pneg %p300
        %p525 = pneg %p297
        %s526 = sand.u32 %s287, 1
        %s527 = scalar_lea.sflag [#allocation5], %s526
        %s528 = sand.u32 %s287, 1
        %s529 = smul.addr %s528, 8
        %s530 = scalar_lea.vmem [#allocation15], %s529
        %v532 = vld [vmem:[%s448] sm:$0xf]
        %v533 = vld [vmem:[#allocation9] sm:$0xf]
        %v534 = vld [vmem:[#allocation9 + $0x4] sm:$0xf]
        %v535 = vld [vmem:[#allocation9 + $0x8] sm:$0xf]
        %v536 = vld [vmem:[#allocation9 + $0xc] sm:$0xf]
        %v537 = vld [vmem:[#allocation9 + $0x10] sm:$0xf]
        %v538 = vld [vmem:[#allocation9 + $0x14] sm:$0xf]
        %v539 = vld [vmem:[#allocation9 + $0x18] sm:$0xf]
        %v540 = vld [vmem:[#allocation9 + $0x1c] sm:$0xf]
        %v541 = vld [vmem:[#allocation9 + $0x20] sm:$0xf]
        %v542 = vld [vmem:[#allocation9 + $0x24] sm:$0xf]
        %v543 = vld [vmem:[#allocation9 + $0x28] sm:$0xf]
        %v544 = vld [vmem:[#allocation9 + $0x2c] sm:$0xf]
        %v545 = vld [vmem:[#allocation9 + $0x30] sm:$0xf]
        %v546 = vld [vmem:[#allocation9 + $0x34] sm:$0xf]
        %v547 = vld [vmem:[#allocation9 + $0x38] sm:$0xf]
        %v548 = vld [vmem:[#allocation9 + $0x3c] sm:$0xf]
        %v549 = vld [vmem:[%s4] sm:$0x1]
        %v551 = vlaneseq
        %v552 = vshrl.u32 %v551, 7
        %v553 = vsub.s32 0, %v552
        %v554 = vrot.slane %v549, %v553
        %v572 = vunpack.c.l.b16 %v533
        %v573 = vunpack.c.l.b16 %v534
        %v574 = vunpack.c.l.b16 %v535
        %v575 = vunpack.c.l.b16 %v536
        %v576 = vunpack.c.l.b16 %v537
        %v577 = vunpack.c.l.b16 %v538
        %v578 = vunpack.c.l.b16 %v539
        %v579 = vunpack.c.l.b16 %v540
        %v580 = vunpack.c.l.b16 %v541
        %v581 = vunpack.c.l.b16 %v542
        %v582 = vunpack.c.l.b16 %v543
        %v583 = vunpack.c.l.b16 %v544
        %v584 = vunpack.c.l.b16 %v545
        %v585 = vunpack.c.l.b16 %v546
        %v586 = vunpack.c.l.b16 %v547
        %v587 = vunpack.c.l.b16 %v548
        %v588 = vpack.c.b16 %v573, %v572
        %v589 = vpack.c.b16 %v575, %v574
        %v590 = vpack.c.b16 %v577, %v576
        %v591 = vpack.c.b16 %v579, %v578
        %v592 = vpack.c.b16 %v581, %v580
        %v593 = vpack.c.b16 %v583, %v582
        %v594 = vpack.c.b16 %v585, %v584
        %v595 = vpack.c.b16 %v587, %v586
        %604 = vmatprep.subr.bf16.mxu0 0
        %605 = vmatpush1.bf16.msra.mxu0 %v588
        %606 = vmatprep.subr.bf16.mxu0 0
        %607 = vmatpush1.bf16.msra.mxu0 %v589
        %608 = vmatprep.subr.bf16.mxu0 0
        %609 = vmatpush1.bf16.msra.mxu0 %v590
        %610 = vmatprep.subr.bf16.mxu0 0
        %611 = vmatpush1.bf16.msra.mxu0 %v591
        %612 = vmatprep.subr.bf16.mxu0 0
        %613 = vmatpush1.bf16.msra.mxu0 %v592
        %614 = vmatprep.subr.bf16.mxu0 0
        %615 = vmatpush1.bf16.msra.mxu0 %v593
        %616 = vmatprep.subr.bf16.mxu0 0
        %617 = vmatpush1.bf16.msra.mxu0 %v594
        %618 = vmatprep.subr.bf16.mxu0 0
        %619 = vmatpush1.bf16.msra.mxu0 %v595
        %620 = vmatprep.subr.bf16.mxu0 0
        %621 = vmatpush1.bf16.msra.mxu0 0
        %622 = vmatprep.subr.bf16.mxu0 0
        %623 = vmatpush1.bf16.msra.mxu0 0
        %624 = vmatprep.subr.bf16.mxu0 0
        %625 = vmatpush1.bf16.msra.mxu0 0
        %626 = vmatprep.subr.bf16.mxu0 0
        %627 = vmatpush1.bf16.msra.mxu0 0
        %628 = vmatprep.subr.bf16.mxu0 0
        %629 = vmatpush1.bf16.msra.mxu0 0
        %630 = vmatprep.subr.bf16.mxu0 0
        %631 = vmatpush1.bf16.msra.mxu0 0
        %632 = vmatprep.subr.bf16.mxu0 0
        %633 = vmatpush1.bf16.msra.mxu0 0
        %634 = vmatprep.subr.bf16.mxu0 0
        %635 = vmatpush1.bf16.msra.mxu0 0
        %636 = vmatprep.mubr.bf16.mxu0 0
        %637 = vmatmul.mubr.bf16.gmra.mrb[0].mxu0 %v532
        %v638 = vpop.f32.mrb[0].mxu0
        %v639 = vadd.f32 %v554, %v638
        %v640 = vpop.f32.mrb[0].mxu0
        %v641 = vpop.f32.mrb[0].mxu0
        %v642 = vpop.f32.mrb[0].mxu0
        %643 = vdwg.mxu0
        %v644 = vpack.c.bf16 %v639, %v639
        %v645 = vld [vmem:[%s457] sm:$0xf]
        %v646 = vld [vmem:[#allocation11] sm:$0xf]
        %v647 = vld [vmem:[#allocation11 + $0x4] sm:$0xf]
        %v648 = vld [vmem:[#allocation11 + $0x8] sm:$0xf]
        %v649 = vld [vmem:[#allocation11 + $0xc] sm:$0xf]
        %v650 = vld [vmem:[#allocation11 + $0x10] sm:$0xf]
        %v651 = vld [vmem:[#allocation11 + $0x14] sm:$0xf]
        %v652 = vld [vmem:[#allocation11 + $0x18] sm:$0xf]
        %v653 = vld [vmem:[#allocation11 + $0x1c] sm:$0xf]
        %v654 = vld [vmem:[#allocation11 + $0x20] sm:$0xf]
        %v655 = vld [vmem:[#allocation11 + $0x24] sm:$0xf]
        %v656 = vld [vmem:[#allocation11 + $0x28] sm:$0xf]
        %v657 = vld [vmem:[#allocation11 + $0x2c] sm:$0xf]
        %v658 = vld [vmem:[#allocation11 + $0x30] sm:$0xf]
        %v659 = vld [vmem:[#allocation11 + $0x34] sm:$0xf]
        %v660 = vld [vmem:[#allocation11 + $0x38] sm:$0xf]
        %v661 = vld [vmem:[#allocation11 + $0x3c] sm:$0xf]
        %v662 = vld [vmem:[%s6] sm:$0x1]
        %v664 = vlaneseq
        %v665 = vshrl.u32 %v664, 7
        %v666 = vsub.s32 0, %v665
        %v667 = vrot.slane %v662, %v666
        %v685 = vunpack.c.l.b16 %v646
        %v686 = vunpack.c.l.b16 %v647
        %v687 = vunpack.c.l.b16 %v648
        %v688 = vunpack.c.l.b16 %v649
        %v689 = vunpack.c.l.b16 %v650
        %v690 = vunpack.c.l.b16 %v651
        %v691 = vunpack.c.l.b16 %v652
        %v692 = vunpack.c.l.b16 %v653
        %v693 = vunpack.c.l.b16 %v654
        %v694 = vunpack.c.l.b16 %v655
        %v695 = vunpack.c.l.b16 %v656
        %v696 = vunpack.c.l.b16 %v657
        %v697 = vunpack.c.l.b16 %v658
        %v698 = vunpack.c.l.b16 %v659
        %v699 = vunpack.c.l.b16 %v660
        %v700 = vunpack.c.l.b16 %v661
        %v701 = vpack.c.b16 %v686, %v685
        %v702 = vpack.c.b16 %v688, %v687
        %v703 = vpack.c.b16 %v690, %v689
        %v704 = vpack.c.b16 %v692, %v691
        %v705 = vpack.c.b16 %v694, %v693
        %v706 = vpack.c.b16 %v696, %v695
        %v707 = vpack.c.b16 %v698, %v697
        %v708 = vpack.c.b16 %v700, %v699
        %717 = vmatprep.subr.bf16.mxu0 0
        %718 = vmatpush1.bf16.msra.mxu0 %v701
        %719 = vmatprep.subr.bf16.mxu0 0
        %720 = vmatpush1.bf16.msra.mxu0 %v702
        %721 = vmatprep.subr.bf16.mxu0 0
        %722 = vmatpush1.bf16.msra.mxu0 %v703
        %723 = vmatprep.subr.bf16.mxu0 0
        %724 = vmatpush1.bf16.msra.mxu0 %v704
        %725 = vmatprep.subr.bf16.mxu0 0
        %726 = vmatpush1.bf16.msra.mxu0 %v705
        %727 = vmatprep.subr.bf16.mxu0 0
        %728 = vmatpush1.bf16.msra.mxu0 %v706
        %729 = vmatprep.subr.bf16.mxu0 0
        %730 = vmatpush1.bf16.msra.mxu0 %v707
        %731 = vmatprep.subr.bf16.mxu0 0
        %732 = vmatpush1.bf16.msra.mxu0 %v708
        %733 = vmatprep.subr.bf16.mxu0 0
        %734 = vmatpush1.bf16.msra.mxu0 0
        %735 = vmatprep.subr.bf16.mxu0 0
        %736 = vmatpush1.bf16.msra.mxu0 0
        %737 = vmatprep.subr.bf16.mxu0 0
        %738 = vmatpush1.bf16.msra.mxu0 0
        %739 = vmatprep.subr.bf16.mxu0 0
        %740 = vmatpush1.bf16.msra.mxu0 0
        %741 = vmatprep.subr.bf16.mxu0 0
        %742 = vmatpush1.bf16.msra.mxu0 0
        %743 = vmatprep.subr.bf16.mxu0 0
        %744 = vmatpush1.bf16.msra.mxu0 0
        %745 = vmatprep.subr.bf16.mxu0 0
        %746 = vmatpush1.bf16.msra.mxu0 0
        %747 = vmatprep.subr.bf16.mxu0 0
        %748 = vmatpush1.bf16.msra.mxu0 0
        %749 = vmatprep.mubr.bf16.mxu0 0
        %750 = vmatmul.mubr.bf16.gmra.mrb[0].mxu0 %v645
        %v751 = vpop.f32.mrb[0].mxu0
        %v752 = vadd.f32 %v667, %v751
        %v753 = vpop.f32.mrb[0].mxu0
        %v754 = vpop.f32.mrb[0].mxu0
        %v755 = vpop.f32.mrb[0].mxu0
        %756 = vdwg.mxu0
        %v757 = vpack.c.bf16 %v752, %v752
        %v758 = vld [vmem:[%s466] sm:$0xf]
        %v759 = vld [vmem:[#allocation12] sm:$0xf]
        %v760 = vld [vmem:[#allocation12 + $0x4] sm:$0xf]
        %v761 = vld [vmem:[#allocation12 + $0x8] sm:$0xf]
        %v762 = vld [vmem:[#allocation12 + $0xc] sm:$0xf]
        %v763 = vld [vmem:[#allocation12 + $0x10] sm:$0xf]
        %v764 = vld [vmem:[#allocation12 + $0x14] sm:$0xf]
        %v765 = vld [vmem:[#allocation12 + $0x18] sm:$0xf]
        %v766 = vld [vmem:[#allocation12 + $0x1c] sm:$0xf]
        %v767 = vld [vmem:[#allocation12 + $0x20] sm:$0xf]
        %v768 = vld [vmem:[#allocation12 + $0x24] sm:$0xf]
        %v769 = vld [vmem:[#allocation12 + $0x28] sm:$0xf]
        %v770 = vld [vmem:[#allocation12 + $0x2c] sm:$0xf]
        %v771 = vld [vmem:[#allocation12 + $0x30] sm:$0xf]
        %v772 = vld [vmem:[#allocation12 + $0x34] sm:$0xf]
        %v773 = vld [vmem:[#allocation12 + $0x38] sm:$0xf]
        %v774 = vld [vmem:[#allocation12 + $0x3c] sm:$0xf]
        %v775 = vld [vmem:[%s8] sm:$0x1]
        %v777 = vlaneseq
        %v778 = vshrl.u32 %v777, 7
        %v779 = vsub.s32 0, %v778
        %v780 = vrot.slane %v775, %v779
        %v798 = vunpack.c.l.b16 %v759
        %v799 = vunpack.c.l.b16 %v760
        %v800 = vunpack.c.l.b16 %v761
        %v801 = vunpack.c.l.b16 %v762
        %v802 = vunpack.c.l.b16 %v763
        %v803 = vunpack.c.l.b16 %v764
        %v804 = vunpack.c.l.b16 %v765
        %v805 = vunpack.c.l.b16 %v766
        %v806 = vunpack.c.l.b16 %v767
        %v807 = vunpack.c.l.b16 %v768
        %v808 = vunpack.c.l.b16 %v769
        %v809 = vunpack.c.l.b16 %v770
        %v810 = vunpack.c.l.b16 %v771
        %v811 = vunpack.c.l.b16 %v772
        %v812 = vunpack.c.l.b16 %v773
        %v813 = vunpack.c.l.b16 %v774
        %v814 = vpack.c.b16 %v799, %v798
        %v815 = vpack.c.b16 %v801, %v800
        %v816 = vpack.c.b16 %v803, %v802
        %v817 = vpack.c.b16 %v805, %v804
        %v818 = vpack.c.b16 %v807, %v806
        %v819 = vpack.c.b16 %v809, %v808
        %v820 = vpack.c.b16 %v811, %v810
        %v821 = vpack.c.b16 %v813, %v812
        %830 = vmatprep.subr.bf16.mxu0 0
        %831 = vmatpush1.bf16.msra.mxu0 %v814
        %832 = vmatprep.subr.bf16.mxu0 0
        %833 = vmatpush1.bf16.msra.mxu0 %v815
        %834 = vmatprep.subr.bf16.mxu0 0
        %835 = vmatpush1.bf16.msra.mxu0 %v816
        %836 = vmatprep.subr.bf16.mxu0 0
        %837 = vmatpush1.bf16.msra.mxu0 %v817
        %838 = vmatprep.subr.bf16.mxu0 0
        %839 = vmatpush1.bf16.msra.mxu0 %v818
        %840 = vmatprep.subr.bf16.mxu0 0
        %841 = vmatpush1.bf16.msra.mxu0 %v819
        %842 = vmatprep.subr.bf16.mxu0 0
        %843 = vmatpush1.bf16.msra.mxu0 %v820
        %844 = vmatprep.subr.bf16.mxu0 0
        %845 = vmatpush1.bf16.msra.mxu0 %v821
        %846 = vmatprep.subr.bf16.mxu0 0
        %847 = vmatpush1.bf16.msra.mxu0 0
        %848 = vmatprep.subr.bf16.mxu0 0
        %849 = vmatpush1.bf16.msra.mxu0 0
        %850 = vmatprep.subr.bf16.mxu0 0
        %851 = vmatpush1.bf16.msra.mxu0 0
        %852 = vmatprep.subr.bf16.mxu0 0
        %853 = vmatpush1.bf16.msra.mxu0 0
        %854 = vmatprep.subr.bf16.mxu0 0
        %855 = vmatpush1.bf16.msra.mxu0 0
        %856 = vmatprep.subr.bf16.mxu0 0
        %857 = vmatpush1.bf16.msra.mxu0 0
        %858 = vmatprep.subr.bf16.mxu0 0
        %859 = vmatpush1.bf16.msra.mxu0 0
        %860 = vmatprep.subr.bf16.mxu0 0
        %861 = vmatpush1.bf16.msra.mxu0 0
        %862 = vmatprep.mubr.bf16.mxu0 0
        %863 = vmatmul.mubr.bf16.gmra.mrb[0].mxu0 %v758
        %v864 = vpop.f32.mrb[0].mxu0
        %v865 = vadd.f32 %v780, %v864
        %v866 = vpop.f32.mrb[0].mxu0
        %v867 = vpop.f32.mrb[0].mxu0
        %v868 = vpop.f32.mrb[0].mxu0
        %869 = vdwg.mxu0
        %v870 = vpack.c.bf16 %v865, %v865
        %vm871 = vcmask 261120
        %v873 = vsel %vm871, %v644, 0
        %v876 = vsel %vm871, %v757, 0
        %878 = vmatprep.subr.bf16.mxu0 0
        %879 = vmatpush1.bf16.xpose.msra.mxu0 %v876
        %880 = vmatprep.subr.bf16.mxu0 0
        %881 = vmatpush1.bf16.xpose.msra.mxu0 0
        %882 = vmatprep.subr.bf16.mxu0 0
        %883 = vmatpush1.bf16.xpose.msra.mxu0 0
        %884 = vmatprep.subr.bf16.mxu0 0
        %885 = vmatpush1.bf16.xpose.msra.mxu0 0
        %886 = vmatprep.subr.bf16.mxu0 0
        %887 = vmatpush1.bf16.xpose.msra.mxu0 0
        %888 = vmatprep.subr.bf16.mxu0 0
        %889 = vmatpush1.bf16.xpose.msra.mxu0 0
        %890 = vmatprep.subr.bf16.mxu0 0
        %891 = vmatpush1.bf16.xpose.msra.mxu0 0
        %892 = vmatprep.subr.bf16.mxu0 0
        %893 = vmatpush1.bf16.xpose.msra.mxu0 0
        %894 = vmatprep.subr.bf16.mxu0 0
        %895 = vmatpush1.bf16.xpose.msra.mxu0 0
        %896 = vmatprep.subr.bf16.mxu0 0
        %897 = vmatpush1.bf16.xpose.msra.mxu0 0
        %898 = vmatprep.subr.bf16.mxu0 0
        %899 = vmatpush1.bf16.xpose.msra.mxu0 0
        %900 = vmatprep.subr.bf16.mxu0 0
        %901 = vmatpush1.bf16.xpose.msra.mxu0 0
        %902 = vmatprep.subr.bf16.mxu0 0
        %903 = vmatpush1.bf16.xpose.msra.mxu0 0
        %904 = vmatprep.subr.bf16.mxu0 0
        %905 = vmatpush1.bf16.xpose.msra.mxu0 0
        %906 = vmatprep.subr.bf16.mxu0 0
        %907 = vmatpush1.bf16.xpose.msra.mxu0 0
        %908 = vmatprep.subr.bf16.mxu0 0
        %909 = vmatpush1.bf16.xpose.msra.mxu0 0
        %910 = vmatprep.mubr.bf16.mxu0 0
        %911 = vmatmul.mubr.bf16.gmra.mrb[0].mxu0 %v873
        %v912 = vpop.f32.mrb[0].mxu0
        %v913 = vadd.f32 0.0, %v912
        %v914 = vpop.f32.mrb[0].mxu0
        %v915 = vpop.f32.mrb[0].mxu0
        %v916 = vpop.f32.mrb[0].mxu0
        %917 = vdwg.mxu0
        %vm918 = vcmask 64512
        %v919 = vsel %vm918, %v913, -inf
        %920 = vmax.xlane.f32.xlu0 %v919
        %v921 = vpop.xlane.xlu0 %920
        %v922 = vsub.f32 %v913, %v921
        %v923 = vmul.f32 %v922, 1.442695
        %v924 = vpow.pop %v923
        %v925 = vsel %vm918, %v924, 0.0
        %926 = vadd.xlane.f32.xlu0 %v925
        %v927 = vpop.xlane.xlu0 %926
        %v928 = vpack.c.bf16 %v924, %v924
        %v930 = vsel %vm918, %v928, 0
        %vm932 = vcmask 1043456
        %v934 = vsel %vm932, %v870, 0
        %936 = vmatprep.subr.bf16.mxu0 0
        %937 = vmatpush1.bf16.msra.mxu0 %v934
        %938 = vmatprep.subr.bf16.mxu0 0
        %939 = vmatpush1.bf16.msra.mxu0 0
        %940 = vmatprep.subr.bf16.mxu0 0
        %941 = vmatpush1.bf16.msra.mxu0 0
        %942 = vmatprep.subr.bf16.mxu0 0
        %943 = vmatpush1.bf16.msra.mxu0 0
        %944 = vmatprep.subr.bf16.mxu0 0
        %945 = vmatpush1.bf16.msra.mxu0 0
        %946 = vmatprep.subr.bf16.mxu0 0
        %947 = vmatpush1.bf16.msra.mxu0 0
        %948 = vmatprep.subr.bf16.mxu0 0
        %949 = vmatpush1.bf16.msra.mxu0 0
        %950 = vmatprep.subr.bf16.mxu0 0
        %951 = vmatpush1.bf16.msra.mxu0 0
        %952 = vmatprep.subr.bf16.mxu0 0
        %953 = vmatpush1.bf16.msra.mxu0 0
        %954 = vmatprep.subr.bf16.mxu0 0
        %955 = vmatpush1.bf16.msra.mxu0 0
        %956 = vmatprep.subr.bf16.mxu0 0
        %957 = vmatpush1.bf16.msra.mxu0 0
        %958 = vmatprep.subr.bf16.mxu0 0
        %959 = vmatpush1.bf16.msra.mxu0 0
        %960 = vmatprep.subr.bf16.mxu0 0
        %961 = vmatpush1.bf16.msra.mxu0 0
        %962 = vmatprep.subr.bf16.mxu0 0
        %963 = vmatpush1.bf16.msra.mxu0 0
        %964 = vmatprep.subr.bf16.mxu0 0
        %965 = vmatpush1.bf16.msra.mxu0 0
        %966 = vmatprep.subr.bf16.mxu0 0
        %967 = vmatpush1.bf16.msra.mxu0 0
        %968 = vmatprep.mubr.bf16.mxu0 0
        %969 = vmatmul.mubr.bf16.gmra.mrb[0].mxu0 %v930
        %v970 = vpop.f32.mrb[0].mxu0
        %v971 = vadd.f32 0.0, %v970
        %v972 = vpop.f32.mrb[0].mxu0
        %v973 = vpop.f32.mrb[0].mxu0
        %v974 = vpop.f32.mrb[0].mxu0
        %975 = vdwg.mxu0
        %v976 = vrcp.pop %v927
        %v977 = vmul.f32 %v971, %v976
        %v978 = vpack.c.bf16 %v977, %v977
        %vm979 = vcmask 257024
        %980 = vst.msk [vmem:[#allocation2] sm:$0xf] %vm979, %v978
        %982 = vrot.lane.b32.xlu0 %v644, 96
        %v983 = vpop.permute.xlu0 %982
        %985 = vrot.lane.b32.xlu0 %v757, 96
        %v986 = vpop.permute.xlu0 %985
        %v988 = vsel %vm871, %v983, 0
        %v991 = vsel %vm871, %v986, 0
        %993 = vmatprep.subr.bf16.mxu0 0
        %994 = vmatpush1.bf16.xpose.msra.mxu0 %v991
        %995 = vmatprep.subr.bf16.mxu0 0
        %996 = vmatpush1.bf16.xpose.msra.mxu0 0
        %997 = vmatprep.subr.bf16.mxu0 0
        %998 = vmatpush1.bf16.xpose.msra.mxu0 0
        %999 = vmatprep.subr.bf16.mxu0 0
        %1000 = vmatpush1.bf16.xpose.msra.mxu0 0
        %1001 = vmatprep.subr.bf16.mxu0 0
        %1002 = vmatpush1.bf16.xpose.msra.mxu0 0
        %1003 = vmatprep.subr.bf16.mxu0 0
        %1004 = vmatpush1.bf16.xpose.msra.mxu0 0
        %1005 = vmatprep.subr.bf16.mxu0 0
        %1006 = vmatpush1.bf16.xpose.msra.mxu0 0
        %1007 = vmatprep.subr.bf16.mxu0 0
        %1008 = vmatpush1.bf16.xpose.msra.mxu0 0
        %1009 = vmatprep.subr.bf16.mxu0 0
        %1010 = vmatpush1.bf16.xpose.msra.mxu0 0
        %1011 = vmatprep.subr.bf16.mxu0 0
        %1012 = vmatpush1.bf16.xpose.msra.mxu0 0
        %1013 = vmatprep.subr.bf16.mxu0 0
        %1014 = vmatpush1.bf16.xpose.msra.mxu0 0
        %1015 = vmatprep.subr.bf16.mxu0 0
        %1016 = vmatpush1.bf16.xpose.msra.mxu0 0
        %1017 = vmatprep.subr.bf16.mxu0 0
        %1018 = vmatpush1.bf16.xpose.msra.mxu0 0
        %1019 = vmatprep.subr.bf16.mxu0 0
        %1020 = vmatpush1.bf16.xpose.msra.mxu0 0
        %1021 = vmatprep.subr.bf16.mxu0 0
        %1022 = vmatpush1.bf16.xpose.msra.mxu0 0
        %1023 = vmatprep.subr.bf16.mxu0 0
        %1024 = vmatpush1.bf16.xpose.msra.mxu0 0
        %1025 = vmatprep.mubr.bf16.mxu0 0
        %1026 = vmatmul.mubr.bf16.gmra.mrb[0].mxu0 %v988
        %v1027 = vpop.f32.mrb[0].mxu0
        %v1028 = vadd.f32 0.0, %v1027
        %v1029 = vpop.f32.mrb[0].mxu0
        %v1030 = vpop.f32.mrb[0].mxu0
        %v1031 = vpop.f32.mrb[0].mxu0
        %1032 = vdwg.mxu0
        %v1033 = vsel %vm918, %v1028, -inf
        %1034 = vmax.xlane.f32.xlu0 %v1033
        %v1035 = vpop.xlane.xlu0 %1034
        %v1036 = vsub.f32 %v1028, %v1035
        %v1037 = vmul.f32 %v1036, 1.442695
        %v1038 = vpow.pop %v1037
        %v1039 = vsel %vm918, %v1038, 0.0
        %1040 = vadd.xlane.f32.xlu0 %v1039
        %v1041 = vpop.xlane.xlu0 %1040
        %v1042 = vpack.c.bf16 %v1038, %v1038
        %1044 = vrot.lane.b32.xlu0 %v870, 96
        %v1045 = vpop.permute.xlu0 %1044
        %v1047 = vsel %vm918, %v1042, 0
        %v1050 = vsel %vm932, %v1045, 0
        %1052 = vmatprep.subr.bf16.mxu0 0
        %1053 = vmatpush1.bf16.msra.mxu0 %v1050
        %1054 = vmatprep.subr.bf16.mxu0 0
        %1055 = vmatpush1.bf16.msra.mxu0 0
        %1056 = vmatprep.subr.bf16.mxu0 0
        %1057 = vmatpush1.bf16.msra.mxu0 0
        %1058 = vmatprep.subr.bf16.mxu0 0
        %1059 = vmatpush1.bf16.msra.mxu0 0
        %1060 = vmatprep.subr.bf16.mxu0 0
        %1061 = vmatpush1.bf16.msra.mxu0 0
        %1062 = vmatprep.subr.bf16.mxu0 0
        %1063 = vmatpush1.bf16.msra.mxu0 0
        %1064 = vmatprep.subr.bf16.mxu0 0
        %1065 = vmatpush1.bf16.msra.mxu0 0
        %1066 = vmatprep.subr.bf16.mxu0 0
        %1067 = vmatpush1.bf16.msra.mxu0 0
        %1068 = vmatprep.subr.bf16.mxu0 0
        %1069 = vmatpush1.bf16.msra.mxu0 0
        %1070 = vmatprep.subr.bf16.mxu0 0
        %1071 = vmatpush1.bf16.msra.mxu0 0
        %1072 = vmatprep.subr.bf16.mxu0 0
        %1073 = vmatpush1.bf16.msra.mxu0 0
        %1074 = vmatprep.subr.bf16.mxu0 0
        %1075 = vmatpush1.bf16.msra.mxu0 0
        %1076 = vmatprep.subr.bf16.mxu0 0
        %1077 = vmatpush1.bf16.msra.mxu0 0
        %1078 = vmatprep.subr.bf16.mxu0 0
        %1079 = vmatpush1.bf16.msra.mxu0 0
        %1080 = vmatprep.subr.bf16.mxu0 0
        %1081 = vmatpush1.bf16.msra.mxu0 0
        %1082 = vmatprep.subr.bf16.mxu0 0
        %1083 = vmatpush1.bf16.msra.mxu0 0
        %1084 = vmatprep.mubr.bf16.mxu0 0
        %1085 = vmatmul.mubr.bf16.gmra.mrb[0].mxu0 %v1047
        %v1086 = vpop.f32.mrb[0].mxu0
        %v1087 = vadd.f32 0.0, %v1086
        %v1088 = vpop.f32.mrb[0].mxu0
        %v1089 = vpop.f32.mrb[0].mxu0
        %v1090 = vpop.f32.mrb[0].mxu0
        %1091 = vdwg.mxu0
        %v1092 = vrcp.pop %v1041
        %v1093 = vmul.f32 %v1087, %v1092
        %v1094 = vpack.c.bf16 %v1093, %v1093
        %v1096 = vunpack.c.l.b16 %v1094
        %v1097 = vpack.c.b16 %v1096, %v1096
        %1098 = vrot.lane.b32.xlu0 %v1097, 32
        %v1099 = vpop.permute.xlu0 %1098
        %vm1101 = vcmask 519424
        %1102 = vst.msk [vmem:[#allocation2] sm:$0xf] %vm1101, %v1099
        %1103 = vrot.lane.b32.xlu0 %v644, 64
        %v1104 = vpop.permute.xlu0 %1103
        %1105 = vrot.lane.b32.xlu0 %v757, 64
        %v1106 = vpop.permute.xlu0 %1105
        %v1108 = vsel %vm871, %v1104, 0
        %v1111 = vsel %vm871, %v1106, 0
        %1113 = vmatprep.subr.bf16.mxu0 0
        %1114 = vmatpush1.bf16.xpose.msra.mxu0 %v1111
        %1115 = vmatprep.subr.bf16.mxu0 0
        %1116 = vmatpush1.bf16.xpose.msra.mxu0 0
        %1117 = vmatprep.subr.bf16.mxu0 0
        %1118 = vmatpush1.bf16.xpose.msra.mxu0 0
        %1119 = vmatprep.subr.bf16.mxu0 0
        %1120 = vmatpush1.bf16.xpose.msra.mxu0 0
        %1121 = vmatprep.subr.bf16.mxu0 0
        %1122 = vmatpush1.bf16.xpose.msra.mxu0 0
        %1123 = vmatprep.subr.bf16.mxu0 0
        %1124 = vmatpush1.bf16.xpose.msra.mxu0 0
        %1125 = vmatprep.subr.bf16.mxu0 0
        %1126 = vmatpush1.bf16.xpose.msra.mxu0 0
        %1127 = vmatprep.subr.bf16.mxu0 0
        %1128 = vmatpush1.bf16.xpose.msra.mxu0 0
        %1129 = vmatprep.subr.bf16.mxu0 0
        %1130 = vmatpush1.bf16.xpose.msra.mxu0 0
        %1131 = vmatprep.subr.bf16.mxu0 0
        %1132 = vmatpush1.bf16.xpose.msra.mxu0 0
        %1133 = vmatprep.subr.bf16.mxu0 0
        %1134 = vmatpush1.bf16.xpose.msra.mxu0 0
        %1135 = vmatprep.subr.bf16.mxu0 0
        %1136 = vmatpush1.bf16.xpose.msra.mxu0 0
        %1137 = vmatprep.subr.bf16.mxu0 0
        %1138 = vmatpush1.bf16.xpose.msra.mxu0 0
        %1139 = vmatprep.subr.bf16.mxu0 0
        %1140 = vmatpush1.bf16.xpose.msra.mxu0 0
        %1141 = vmatprep.subr.bf16.mxu0 0
        %1142 = vmatpush1.bf16.xpose.msra.mxu0 0
        %1143 = vmatprep.subr.bf16.mxu0 0
        %1144 = vmatpush1.bf16.xpose.msra.mxu0 0
        %1145 = vmatprep.mubr.bf16.mxu0 0
        %1146 = vmatmul.mubr.bf16.gmra.mrb[0].mxu0 %v1108
        %v1147 = vpop.f32.mrb[0].mxu0
        %v1148 = vadd.f32 0.0, %v1147
        %v1149 = vpop.f32.mrb[0].mxu0
        %v1150 = vpop.f32.mrb[0].mxu0
        %v1151 = vpop.f32.mrb[0].mxu0
        %1152 = vdwg.mxu0
        %v1153 = vsel %vm918, %v1148, -inf
        %1154 = vmax.xlane.f32.xlu0 %v1153
        %v1155 = vpop.xlane.xlu0 %1154
        %v1156 = vsub.f32 %v1148, %v1155
        %v1157 = vmul.f32 %v1156, 1.442695
        %v1158 = vpow.pop %v1157
        %v1159 = vsel %vm918, %v1158, 0.0
        %1160 = vadd.xlane.f32.xlu0 %v1159
        %v1161 = vpop.xlane.xlu0 %1160
        %v1162 = vpack.c.bf16 %v1158, %v1158
        %1163 = vrot.lane.b32.xlu0 %v870, 64
        %v1164 = vpop.permute.xlu0 %1163
        %v1166 = vsel %vm918, %v1162, 0
        %v1169 = vsel %vm932, %v1164, 0
        %1171 = vmatprep.subr.bf16.mxu0 0
        %1172 = vmatpush1.bf16.msra.mxu0 %v1169
        %1173 = vmatprep.subr.bf16.mxu0 0
        %1174 = vmatpush1.bf16.msra.mxu0 0
        %1175 = vmatprep.subr.bf16.mxu0 0
        %1176 = vmatpush1.bf16.msra.mxu0 0
        %1177 = vmatprep.subr.bf16.mxu0 0
        %1178 = vmatpush1.bf16.msra.mxu0 0
        %1179 = vmatprep.subr.bf16.mxu0 0
        %1180 = vmatpush1.bf16.msra.mxu0 0
        %1181 = vmatprep.subr.bf16.mxu0 0
        %1182 = vmatpush1.bf16.msra.mxu0 0
        %1183 = vmatprep.subr.bf16.mxu0 0
        %1184 = vmatpush1.bf16.msra.mxu0 0
        %1185 = vmatprep.subr.bf16.mxu0 0
        %1186 = vmatpush1.bf16.msra.mxu0 0
        %1187 = vmatprep.subr.bf16.mxu0 0
        %1188 = vmatpush1.bf16.msra.mxu0 0
        %1189 = vmatprep.subr.bf16.mxu0 0
        %1190 = vmatpush1.bf16.msra.mxu0 0
        %1191 = vmatprep.subr.bf16.mxu0 0
        %1192 = vmatpush1.bf16.msra.mxu0 0
        %1193 = vmatprep.subr.bf16.mxu0 0
        %1194 = vmatpush1.bf16.msra.mxu0 0
        %1195 = vmatprep.subr.bf16.mxu0 0
        %1196 = vmatpush1.bf16.msra.mxu0 0
        %1197 = vmatprep.subr.bf16.mxu0 0
        %1198 = vmatpush1.bf16.msra.mxu0 0
        %1199 = vmatprep.subr.bf16.mxu0 0
        %1200 = vmatpush1.bf16.msra.mxu0 0
        %1201 = vmatprep.subr.bf16.mxu0 0
        %1202 = vmatpush1.bf16.msra.mxu0 0
        %1203 = vmatprep.mubr.bf16.mxu0 0
        %1204 = vmatmul.mubr.bf16.gmra.mrb[0].mxu0 %v1166
        %v1205 = vpop.f32.mrb[0].mxu0
        %v1206 = vadd.f32 0.0, %v1205
        %v1207 = vpop.f32.mrb[0].mxu0
        %v1208 = vpop.f32.mrb[0].mxu0
        %v1209 = vpop.f32.mrb[0].mxu0
        %1210 = vdwg.mxu0
        %v1211 = vrcp.pop %v1161
        %v1212 = vmul.f32 %v1206, %v1211
        %v1213 = vpack.c.bf16 %v1212, %v1212
        %v1215 = vunpack.c.l.b16 %v1213
        %v1216 = vpack.c.b16 %v1215, %v1215
        %1217 = vrot.lane.b32.xlu0 %v1216, 64
        %v1218 = vpop.permute.xlu0 %1217
        %vm1220 = vcmask 781824
        %1221 = vst.msk [vmem:[#allocation2] sm:$0xf] %vm1220, %v1218
        %1222 = vrot.lane.b32.xlu0 %v644, 32
        %v1223 = vpop.permute.xlu0 %1222
        %1224 = vrot.lane.b32.xlu0 %v757, 32
        %v1225 = vpop.permute.xlu0 %1224
        %v1227 = vsel %vm871, %v1223, 0
        %v1230 = vsel %vm871, %v1225, 0
        %1232 = vmatprep.subr.bf16.mxu0 0
        %1233 = vmatpush1.bf16.xpose.msra.mxu0 %v1230
        %1234 = vmatprep.subr.bf16.mxu0 0
        %1235 = vmatpush1.bf16.xpose.msra.mxu0 0
        %1236 = vmatprep.subr.bf16.mxu0 0
        %1237 = vmatpush1.bf16.xpose.msra.mxu0 0
        %1238 = vmatprep.subr.bf16.mxu0 0
        %1239 = vmatpush1.bf16.xpose.msra.mxu0 0
        %1240 = vmatprep.subr.bf16.mxu0 0
        %1241 = vmatpush1.bf16.xpose.msra.mxu0 0
        %1242 = vmatprep.subr.bf16.mxu0 0
        %1243 = vmatpush1.bf16.xpose.msra.mxu0 0
        %1244 = vmatprep.subr.bf16.mxu0 0
        %1245 = vmatpush1.bf16.xpose.msra.mxu0 0
        %1246 = vmatprep.subr.bf16.mxu0 0
        %1247 = vmatpush1.bf16.xpose.msra.mxu0 0
        %1248 = vmatprep.subr.bf16.mxu0 0
        %1249 = vmatpush1.bf16.xpose.msra.mxu0 0
        %1250 = vmatprep.subr.bf16.mxu0 0
        %1251 = vmatpush1.bf16.xpose.msra.mxu0 0
        %1252 = vmatprep.subr.bf16.mxu0 0
        %1253 = vmatpush1.bf16.xpose.msra.mxu0 0
        %1254 = vmatprep.subr.bf16.mxu0 0
        %1255 = vmatpush1.bf16.xpose.msra.mxu0 0
        %1256 = vmatprep.subr.bf16.mxu0 0
        %1257 = vmatpush1.bf16.xpose.msra.mxu0 0
        %1258 = vmatprep.subr.bf16.mxu0 0
        %1259 = vmatpush1.bf16.xpose.msra.mxu0 0
        %1260 = vmatprep.subr.bf16.mxu0 0
        %1261 = vmatpush1.bf16.xpose.msra.mxu0 0
        %1262 = vmatprep.subr.bf16.mxu0 0
        %1263 = vmatpush1.bf16.xpose.msra.mxu0 0
        %1264 = vmatprep.mubr.bf16.mxu0 0
        %1265 = vmatmul.mubr.bf16.gmra.mrb[0].mxu0 %v1227
        %v1266 = vpop.f32.mrb[0].mxu0
        %v1267 = vadd.f32 0.0, %v1266
        %v1268 = vpop.f32.mrb[0].mxu0
        %v1269 = vpop.f32.mrb[0].mxu0
        %v1270 = vpop.f32.mrb[0].mxu0
        %1271 = vdwg.mxu0
        %v1272 = vsel %vm918, %v1267, -inf
        %1273 = vmax.xlane.f32.xlu0 %v1272
        %v1274 = vpop.xlane.xlu0 %1273
        %v1275 = vsub.f32 %v1267, %v1274
        %v1276 = vmul.f32 %v1275, 1.442695
        %v1277 = vpow.pop %v1276
        %v1278 = vsel %vm918, %v1277, 0.0
        %1279 = vadd.xlane.f32.xlu0 %v1278
        %v1280 = vpop.xlane.xlu0 %1279
        %v1281 = vpack.c.bf16 %v1277, %v1277
        %1282 = vrot.lane.b32.xlu0 %v870, 32
        %v1283 = vpop.permute.xlu0 %1282
        %v1285 = vsel %vm918, %v1281, 0
        %v1288 = vsel %vm932, %v1283, 0
        %1290 = vmatprep.subr.bf16.mxu0 0
        %1291 = vmatpush1.bf16.msra.mxu0 %v1288
        %1292 = vmatprep.subr.bf16.mxu0 0
        %1293 = vmatpush1.bf16.msra.mxu0 0
        %1294 = vmatprep.subr.bf16.mxu0 0
        %1295 = vmatpush1.bf16.msra.mxu0 0
        %1296 = vmatprep.subr.bf16.mxu0 0
        %1297 = vmatpush1.bf16.msra.mxu0 0
        %1298 = vmatprep.subr.bf16.mxu0 0
        %1299 = vmatpush1.bf16.msra.mxu0 0
        %1300 = vmatprep.subr.bf16.mxu0 0
        %1301 = vmatpush1.bf16.msra.mxu0 0
        %1302 = vmatprep.subr.bf16.mxu0 0
        %1303 = vmatpush1.bf16.msra.mxu0 0
        %1304 = vmatprep.subr.bf16.mxu0 0
        %1305 = vmatpush1.bf16.msra.mxu0 0
        %1306 = vmatprep.subr.bf16.mxu0 0
        %1307 = vmatpush1.bf16.msra.mxu0 0
        %1308 = vmatprep.subr.bf16.mxu0 0
        %1309 = vmatpush1.bf16.msra.mxu0 0
        %1310 = vmatprep.subr.bf16.mxu0 0
        %1311 = vmatpush1.bf16.msra.mxu0 0
        %1312 = vmatprep.subr.bf16.mxu0 0
        %1313 = vmatpush1.bf16.msra.mxu0 0
        %1314 = vmatprep.subr.bf16.mxu0 0
        %1315 = vmatpush1.bf16.msra.mxu0 0
        %1316 = vmatprep.subr.bf16.mxu0 0
        %1317 = vmatpush1.bf16.msra.mxu0 0
        %1318 = vmatprep.subr.bf16.mxu0 0
        %1319 = vmatpush1.bf16.msra.mxu0 0
        %1320 = vmatprep.subr.bf16.mxu0 0
        %1321 = vmatpush1.bf16.msra.mxu0 0
        %1322 = vmatprep.mubr.bf16.mxu0 0
        %1323 = vmatmul.mubr.bf16.gmra.mrb[0].mxu0 %v1285
        %v1324 = vpop.f32.mrb[0].mxu0
        %v1325 = vadd.f32 0.0, %v1324
        %v1326 = vpop.f32.mrb[0].mxu0
        %v1327 = vpop.f32.mrb[0].mxu0
        %v1328 = vpop.f32.mrb[0].mxu0
        %1329 = vdwg.mxu0
        %v1330 = vrcp.pop %v1280
        %v1331 = vmul.f32 %v1325, %v1330
        %v1332 = vpack.c.bf16 %v1331, %v1331
        %v1334 = vunpack.c.l.b16 %v1332
        %v1335 = vpack.c.b16 %v1334, %v1334
        %1336 = vrot.lane.b32.xlu0 %v1335, 96
        %v1337 = vpop.permute.xlu0 %1336
        %vm1339 = vcmask 1044224
        %1340 = vst.msk [vmem:[#allocation2] sm:$0xf] %vm1339, %v1337
        %v1341 = vld [vmem:[#allocation2] sm:$0xf]
        %v1342 = vld [vmem:[#allocation14] sm:$0xf]
        %v1343 = vld [vmem:[#allocation14 + $0x4] sm:$0xf]
        %v1344 = vld [vmem:[#allocation14 + $0x8] sm:$0xf]
        %v1345 = vld [vmem:[#allocation14 + $0xc] sm:$0xf]
        %v1346 = vld [vmem:[#allocation14 + $0x10] sm:$0xf]
        %v1347 = vld [vmem:[#allocation14 + $0x14] sm:$0xf]
        %v1348 = vld [vmem:[#allocation14 + $0x18] sm:$0xf]
        %v1349 = vld [vmem:[#allocation14 + $0x1c] sm:$0xf]
        %v1350 = vld [vmem:[#allocation14 + $0x20] sm:$0xf]
        %v1351 = vld [vmem:[#allocation14 + $0x24] sm:$0xf]
        %v1352 = vld [vmem:[#allocation14 + $0x28] sm:$0xf]
        %v1353 = vld [vmem:[#allocation14 + $0x2c] sm:$0xf]
        %v1354 = vld [vmem:[#allocation14 + $0x30] sm:$0xf]
        %v1355 = vld [vmem:[#allocation14 + $0x34] sm:$0xf]
        %v1356 = vld [vmem:[#allocation14 + $0x38] sm:$0xf]
        %v1357 = vld [vmem:[#allocation14 + $0x3c] sm:$0xf]
        %v1358 = vld [vmem:[%s10] sm:$0x1]
        %v1360 = vlaneseq
        %v1361 = vshrl.u32 %v1360, 7
        %v1362 = vsub.s32 0, %v1361
        %v1363 = vrot.slane %v1358, %v1362
        %v1381 = vunpack.c.l.b16 %v1342
        %v1382 = vunpack.c.l.b16 %v1343
        %v1383 = vunpack.c.l.b16 %v1344
        %v1384 = vunpack.c.l.b16 %v1345
        %v1385 = vunpack.c.l.b16 %v1346
        %v1386 = vunpack.c.l.b16 %v1347
        %v1387 = vunpack.c.l.b16 %v1348
        %v1388 = vunpack.c.l.b16 %v1349
        %v1389 = vunpack.c.l.b16 %v1350
        %v1390 = vunpack.c.l.b16 %v1351
        %v1391 = vunpack.c.l.b16 %v1352
        %v1392 = vunpack.c.l.b16 %v1353
        %v1393 = vunpack.c.l.b16 %v1354
        %v1394 = vunpack.c.l.b16 %v1355
        %v1395 = vunpack.c.l.b16 %v1356
        %v1396 = vunpack.c.l.b16 %v1357
        %v1397 = vpack.c.b16 %v1382, %v1381
        %v1398 = vpack.c.b16 %v1384, %v1383
        %v1399 = vpack.c.b16 %v1386, %v1385
        %v1400 = vpack.c.b16 %v1388, %v1387
        %v1401 = vpack.c.b16 %v1390, %v1389
        %v1402 = vpack.c.b16 %v1392, %v1391
        %v1403 = vpack.c.b16 %v1394, %v1393
        %v1404 = vpack.c.b16 %v1396, %v1395
        %1413 = vmatprep.subr.bf16.mxu0 0
        %1414 = vmatpush1.bf16.msra.mxu0 %v1397
        %1415 = vmatprep.subr.bf16.mxu0 0
        %1416 = vmatpush1.bf16.msra.mxu0 %v1398
        %1417 = vmatprep.subr.bf16.mxu0 0
        %1418 = vmatpush1.bf16.msra.mxu0 %v1399
        %1419 = vmatprep.subr.bf16.mxu0 0
        %1420 = vmatpush1.bf16.msra.mxu0 %v1400
        %1421 = vmatprep.subr.bf16.mxu0 0
        %1422 = vmatpush1.bf16.msra.mxu0 %v1401
        %1423 = vmatprep.subr.bf16.mxu0 0
        %1424 = vmatpush1.bf16.msra.mxu0 %v1402
        %1425 = vmatprep.subr.bf16.mxu0 0
        %1426 = vmatpush1.bf16.msra.mxu0 %v1403
        %1427 = vmatprep.subr.bf16.mxu0 0
        %1428 = vmatpush1.bf16.msra.mxu0 %v1404
        %1429 = vmatprep.subr.bf16.mxu0 0
        %1430 = vmatpush1.bf16.msra.mxu0 0
        %1431 = vmatprep.subr.bf16.mxu0 0
        %1432 = vmatpush1.bf16.msra.mxu0 0
        %1433 = vmatprep.subr.bf16.mxu0 0
        %1434 = vmatpush1.bf16.msra.mxu0 0
        %1435 = vmatprep.subr.bf16.mxu0 0
        %1436 = vmatpush1.bf16.msra.mxu0 0
        %1437 = vmatprep.subr.bf16.mxu0 0
        %1438 = vmatpush1.bf16.msra.mxu0 0
        %1439 = vmatprep.subr.bf16.mxu0 0
        %1440 = vmatpush1.bf16.msra.mxu0 0
        %1441 = vmatprep.subr.bf16.mxu0 0
        %1442 = vmatpush1.bf16.msra.mxu0 0
        %1443 = vmatprep.subr.bf16.mxu0 0
        %1444 = vmatpush1.bf16.msra.mxu0 0
        %1445 = vmatprep.mubr.bf16.mxu0 0
        %1446 = vmatmul.mubr.bf16.gmra.mrb[0].mxu0 %v1341
        %v1447 = vpop.f32.mrb[0].mxu0
        %v1448 = vadd.f32 %v1363, %v1447
        %v1449 = vpop.f32.mrb[0].mxu0
        %v1450 = vpop.f32.mrb[0].mxu0
        %v1451 = vpop.f32.mrb[0].mxu0
        %1452 = vdwg.mxu0
        %1453 = vst [vmem:[%s530] sm:$0xff] %v1448
        %s1454 = sand.u32 %s287, 1
        %s1455 = scalar_lea.sflag [#allocation5], %s1454
        %s1456 = sand.u32 %s287, 1
        %s1457 = smul.addr %s1456, 8
        %s1458 = scalar_lea.vmem [#allocation15], %s1457
        // Predicated region
        $region93: #{tpu_custom_call.1} parent=63 // pred_check
          %p1459 = pneg %p297
        $region94: #{tpu_custom_call.1} parent=63 // pred_check_branch
          %1461 = sbr.rel (%p1459) target = $region96
        $region95: #{tpu_custom_call.1} parent=63 // pred_region
          %s1463 = ssub.s32 128, 128
          %1464 = vsyncadd %s1455, %s1463
          %s1465 = smul.addr %s33, 128
          %s1466 = scalar_lea.hbm %s11, %s1465
          %s1468 = sshll.u32 %s1458, 4
          %s1469 = int_to_ptr.vmem [resolvable:$true] %s1468
          %1471 = dma.vmem_to_hbm [thread:$0]  %s1469, 128, %s1466, %s1455
        $region96: #{tpu_custom_call.1} parent=63 // pred_fallthru
          _
      $region64: #{tpu_custom_call.1} parent=5 // pred_fallthru
        _
      %p1472 = scmp.le.s32.totalorder 2, %s28
      // Predicated region
      $region97: #{tpu_custom_call.1} parent=5 // pred_check
        %p1473 = pneg %p1472
      $region98: #{tpu_custom_call.1} parent=5 // pred_check_branch
        %1475 = sbr.rel (%p1473) target = $region100
      $region99: #{tpu_custom_call.1} parent=5 // pred_region
        %s1476 = ssub.s32 %s28, 2
        // Predicated region
        $region101: #{tpu_custom_call.1} parent=99 // pred_check
          %p1477 = pneg %p303
        $region102: #{tpu_custom_call.1} parent=99 // pred_check_branch
          %1479 = sbr.rel (%p1477) target = $region104
        $region103: #{tpu_custom_call.1} parent=99 // pred_region
          %s1480 = sand.u32 %s288, 1
          %s1481 = scalar_lea.sflag [#allocation5], %s1480
          %s1482 = sand.u32 %s288, 1
          %s1483 = smul.addr %s1482, 8
          %s1484 = scalar_lea.vmem [#allocation15], %s1483
          %1485 = dma.done %s1481, 128
        $region104: #{tpu_custom_call.1} parent=99 // pred_fallthru
          _
      $region100: #{tpu_custom_call.1} parent=5 // pred_fallthru
        _
    $region6: #{tpu_custom_call.1} parent=1 // loop_footer
      %s32 = sadd.s32 1, %s28
    $region7: #{tpu_custom_call.1} parent=1 // loop_footer_branch
      %27 = sbr.rel target = $region3
    $region8: #{tpu_custom_call.1} parent=1 // loop_exit
      _
    %1486 = vsyncpa [#allocation4], 1
    %s1487 = scalar_lea.sflag [#allocation4], 1
    %1488 = vsyncpa %s1487, 1
    %1489 = vsyncpa [#allocation7], 1
    %s1490 = scalar_lea.sflag [#allocation7], 1
    %1491 = vsyncpa %s1490, 1
    %1492 = vsyncpa [#allocation10], 1
    %1493 = vsyncpa [#allocation13], 1
    %1494 = vsyncpa [#allocation5], 1
    %s1495 = scalar_lea.sflag [#allocation5], 1
    %1496 = vsyncpa %s1495, 1

</llo_original>
